<compile_context>
chip_gen: v7x
topology: tpu7x:2x2x1
jax: 0.10.0
libtpu: 0.0.40
codegen_flags: <defaults>
</compile_context>

<pallas_src>
import jax
import jax.numpy as jnp
import numpy as np
from jax.experimental import pallas as pl
from jax.experimental.pallas import tpu as pltpu

# Problem sizes (consistent with the module's constructor args)
N, H, W = 2, 16, 16
CIN, CMID, COUT = 4, 8, 8
KH = KW = 3
EPS = 1e-5

NH = N * H              # 32 rows (sublane axis)
WCIN = W * CIN          # 64
WMID = W * CMID         # 128  (lane-dense)
WOUT = W * COUT         # 128  (lane-dense)
OFF2 = KH * WCIN        # row offset of conv2 weights inside the packed array


def _mxu(a, b):
    # MXU idles at these shapes (kernel is VALU/XLU/overhead-bound), so HIGHEST
    # precision is kept for correctness margin (review item 10: verify-only).
    return jnp.dot(a, b, preferred_element_type=jnp.float32,
                   precision=jax.lax.Precision.HIGHEST)


def _bn_relu(y, gamma_l, beta_l, c):
    """Training-mode BatchNorm2d (biased batch stats over N,H,W) + ReLU on a
    lane-dense activation.  y: (N*H, W*c); gamma_l/beta_l: (1, W*c) per-channel
    params pre-tiled over w.  Single reduction pass (sum & sum-of-squares),
    then one fused affine + ReLU.
    NOTE: single-pass variance E[y^2]-E[y]^2 with a >=0 clamp; passes 1e-3
    here, switch to two-pass (y-mean)^2 if activations grow / tolerance
    tightens.  For v6e/v7x at scale these reductions can move onto the idle
    MXU (ones-vector row-sum + 0/1 channel-gather matmul) -- see header."""
    rows, lanes = y.shape
    inv_n = 1.0 / float(rows * (lanes // c))
    # sublane reduce of sum and sum^2 carried together as (2, lanes)
    ss = jnp.concatenate(
        [jnp.sum(y, axis=0, keepdims=True),
         jnp.sum(y * y, axis=0, keepdims=True)], axis=0)
    # lane roll-add tree (XLU): after log2(W) steps every lane w*c+o holds the
    # full per-channel sum, already broadcast over w -> no re-broadcast needed.
    step = c
    while step < lanes:
        ss = ss + pltpu.roll(ss, shift=step, axis=1)
        step *= 2
    mean = ss[0:1, :] * inv_n
    var = jnp.maximum(ss[1:2, :] * inv_n - mean * mean, 0.0)
    scale = gamma_l * jax.lax.rsqrt(var + EPS)
    shift = beta_l - scale * mean
    return jnp.maximum(y * scale + shift, 0.0)


def unet_block_kernel(x_ref, w_ref, p_ref, out_ref):
    # x_ref : (N*H, W*CIN)               un-padded input, lane-dense
    # w_ref : (3*W*CIN + 3*W*CMID, 128)  packed block-Toeplitz weights (f32)
    # p_ref : (4, 128)                   lane-tiled BN params: g1, be1, g2, be2
    p = p_ref[...]
    g1, be1 = p[0:1, :], p[1:2, :]
    g2, be2 = p[2:3, :], p[3:4, :]

    # ---- H-halo masks: built ONCE, reused by all 4 shifted taps (both convs).
    row_h = jax.lax.broadcasted_iota(jnp.int32, (NH, 1), 0) % H
    mask_dn = row_h > 0          # rows where pulling from h-1 (d=-1) is valid
    mask_up = row_h < (H - 1)    # rows where pulling from h+1 (d=+1) is valid

    def shift_rows(a, d, mask):
        # s[n*H+h] = a[n*H+(h+d)] for 0 <= h+d < H else 0.  One circular
        # sublane roll (XLU) + the pre-hoisted mask; the wrapped rows are
        # exactly the rows the mask zeroes (the image-boundary padding).
        rolled = pltpu.roll(a, shift=(-d) % NH, axis=0)
        return jnp.where(mask, rolled, 0.0)

    def conv3x3(a, off, k):
        # 3 block-Toeplitz MXU matmuls, one per ky tap.  No conv bias: it is
        # cancelled exactly by the training-mode BN mean subtraction, so the
        # accumulator is initialized from the first tap (no broadcast + add).
        w0 = w_ref[off:off + k, :]
        w1 = w_ref[off + k:off + 2 * k, :]
        w2 = w_ref[off + 2 * k:off + 3 * k, :]
        y = _mxu(shift_rows(a, -1, mask_dn), w0)
        y = y + _mxu(a, w1)
        y = y + _mxu(shift_rows(a, +1, mask_up), w2)
        return y

    x = x_ref[...]
    a1 = _bn_relu(conv3x3(x, 0, WCIN), g1, be1, CMID)       # (N*H, 128), in regs
    # lane-dense (32, 128) output -> full unmasked stores
    out_ref[...] = _bn_relu(conv3x3(a1, OFF2, WMID), g2, be2, COUT)


def unet_conv2d_block(x_nchw, params):
    """Pallas forward.  x_nchw: (N, CIN, H, W) f32 -> (N, COUT, H, W) f32."""
    x = jnp.transpose(x_nchw, (0, 2, 3, 1)).astype(jnp.float32)    # NHWC
    x2d = x.reshape(NH, WCIN)                                      # lane-dense, unpadded

    vmem = pl.BlockSpec(memory_space=pltpu.MemorySpace.VMEM)
    # Single invocation; the whole problem fits in VMEM at these toy sizes.
    # At real UNet sizes this would need: a grid over (N, H-tiles) with 1-row
    # halo BlockSpecs and "parallel" dimension_semantics (megacore / v7x 2-TC),
    # a grid-invariant weight index_map (lambda *_: (0, 0)) so the weight slab
    # is DMA'd once and stays VMEM-resident, tiles re-derived against v7x's
    # 64 MiB VMEM, a two-pass cross-tile BatchNorm, NHWC-native surroundings
    # (drop the wrapper transposes), and -- after re-validating tolerance --
    # bf16 weight storage to halve the mostly-zero Toeplitz slab (v5e HBM BW).
    out2d = pl.pallas_call(
        unet_block_kernel,
        out_shape=jax.ShapeDtypeStruct((NH, WOUT), jnp.float32),
        in_specs=[vmem, vmem, vmem],
        out_specs=vmem,
    )(x2d, params["w_packed"], params["p_packed"])

    out = out2d.reshape(N, H, W, COUT)
    return jnp.transpose(out, (0, 3, 1, 2))                        # NCHW


# ---------------- host-side weight preprocessing -----------------------------
def _block_toeplitz(w_kkio, width):
    """w_kkio: (3,3,Ci,Co).  Returns (3, width*Ci, width*Co) where slab ky is
    T with T[wi*Ci+c, wo*Co+o] = w[ky, wi-wo+1, c, o] (zero outside the 3-tap
    band) -- the W-dimension conv + its zero padding folded into a matmul."""
    kh, kw, ci, co = w_kkio.shape
    t = np.zeros((kh, width * ci, width * co), np.float32)
    for ky in range(kh):
        for wo in range(width):
            for kx in range(kw):
                wi = wo + kx - 1
                if 0 <= wi < width:
                    t[ky, wi * ci:(wi + 1) * ci, wo * co:(wo + 1) * co] = w_kkio[ky, kx]
    return t


def make_params(key):
    ks = jax.random.split(key, 8)
    w1_oihw = 0.2 * jax.random.normal(ks[0], (CMID, CIN, KH, KW), jnp.float32)
    b1 = 0.1 * jax.random.normal(ks[1], (CMID,), jnp.float32)
    g1 = 1.0 + 0.1 * jax.random.normal(ks[2], (CMID,), jnp.float32)
    be1 = 0.1 * jax.random.normal(ks[3], (CMID,), jnp.float32)
    w2_oihw = 0.2 * jax.random.normal(ks[4], (COUT, CMID, KH, KW), jnp.float32)
    b2 = 0.1 * jax.random.normal(ks[5], (COUT,), jnp.float32)
    g2 = 1.0 + 0.1 * jax.random.normal(ks[6], (COUT,), jnp.float32)
    be2 = 0.1 * jax.random.normal(ks[7], (COUT,), jnp.float32)

    # kernel-layout weights: (ky, kx, cin, cout) -> block-Toeplitz -> packed.
    # Kept in f32: bf16 storage would halve the DMA but its ~2e-3 relative
    # rounding is amplified through two BN divisions and risks the 1e-3 check.
    w1_kkio = np.transpose(np.asarray(w1_oihw), (2, 3, 1, 0))
    w2_kkio = np.transpose(np.asarray(w2_oihw), (2, 3, 1, 0))
    t1 = _block_toeplitz(w1_kkio, W).reshape(KH * WCIN, WMID)      # (192, 128)
    t2 = _block_toeplitz(w2_kkio, W).reshape(KH * WMID, WOUT)      # (384, 128)
    w_packed = jnp.asarray(np.concatenate([t1, t2], axis=0))       # (576, 128)

    # BN per-channel params only (conv biases cancel against training-mode BN
    # and are not shipped to the kernel), pre-tiled to lane-dense rows.
    def lane_tile(v):
        return np.tile(np.asarray(v, np.float32), W)               # (W*C,)

    p = np.zeros((4, WOUT), np.float32)
    p[0], p[1] = lane_tile(g1), lane_tile(be1)
    p[2], p[3] = lane_tile(g2), lane_tile(be2)
    p_packed = jnp.asarray(p)                                      # (4, 128)

    return {
        "w_packed": w_packed, "p_packed": p_packed,
        # reference (PyTorch OIHW) layout -- biases kept for the reference path
        "w1_oihw": w1_oihw, "b1f": b1, "g1f": g1, "be1f": be1,
        "w2_oihw": w2_oihw, "b2f": b2, "g2f": g2, "be2f": be2,
    }


# ---------------- pure-JAX reference (NCHW, like the PyTorch module) ---------
def reference(x_nchw, p):
    def conv(x, w_oihw, b):
        y = jax.lax.conv_general_dilated(
            x, w_oihw, window_strides=(1, 1), padding=((1, 1), (1, 1)),
            dimension_numbers=("NCHW", "OIHW", "NCHW"),
            precision=jax.lax.Precision.HIGHEST)
        return y + b.reshape(1, -1, 1, 1)

    def bn_relu(y, g, be):
        mean = y.mean(axis=(0, 2, 3), keepdims=True)
        var = ((y - mean) ** 2).mean(axis=(0, 2, 3), keepdims=True)
        yhat = (y - mean) / jnp.sqrt(var + EPS)
        return jnp.maximum(g.reshape(1, -1, 1, 1) * yhat + be.reshape(1, -1, 1, 1), 0.0)

    y = bn_relu(conv(x_nchw, p["w1_oihw"], p["b1f"]), p["g1f"], p["be1f"])
    y = bn_relu(conv(y, p["w2_oihw"], p["b2f"]), p["g2f"], p["be2f"])
    return y


if __name__ == "__main__":
    key = jax.random.PRNGKey(0)
    kx, kp = jax.random.split(key)
    x = jax.random.normal(kx, (N, CIN, H, W), jnp.float32)   # NCHW like PyTorch
    params = make_params(kp)

    out = jax.block_until_ready(unet_conv2d_block(x, params))

    ref = reference(x, params)
    np.testing.assert_allclose(np.asarray(out), np.asarray(ref),
                               rtol=1e-3, atol=1e-3)
    assert out.shape == (N, COUT, H, W)
    print("KERNEL_OK")
</pallas_src>

<mosaic_0001>
module attributes {stable_mosaic.version = 11 : i64} {
  func.func @unet_block_kernel(%arg0: memref<32x64xf32, #tpu.memory_space<vmem>>, %arg1: memref<576x128xf32, #tpu.memory_space<vmem>>, %arg2: memref<4x128xf32, #tpu.memory_space<vmem>>, %arg3: memref<32x128xf32, #tpu.memory_space<vmem>>) attributes {dimension_semantics = [], scalar_prefetch = 0 : i64, scratch_operands = 0 : i64, tpu.core_type = #tpu.core_type<tc>} {
    %c0 = arith.constant 0 : index
    %c0_0 = arith.constant 0 : index
    %0 = vector.load %arg2[%c0, %c0_0] : memref<4x128xf32, #tpu.memory_space<vmem>>, vector<4x128xf32>
    %1 = vector.extract_strided_slice %0 {offsets = [0, 0], sizes = [1, 128], strides = [1, 1]} : vector<4x128xf32> to vector<1x128xf32>
    %2 = vector.extract_strided_slice %0 {offsets = [1, 0], sizes = [1, 128], strides = [1, 1]} : vector<4x128xf32> to vector<1x128xf32>
    %3 = vector.extract_strided_slice %0 {offsets = [2, 0], sizes = [1, 128], strides = [1, 1]} : vector<4x128xf32> to vector<1x128xf32>
    %4 = vector.extract_strided_slice %0 {offsets = [3, 0], sizes = [1, 128], strides = [1, 1]} : vector<4x128xf32> to vector<1x128xf32>
    %5 = tpu.iota {dimensions = array<i32: 0>} : vector<32x1xi32>
    %c16_i32 = arith.constant 16 : i32
    %c0_i32 = arith.constant 0 : i32
    %6 = arith.cmpi eq, %c16_i32, %c0_i32 : i32
    %c1_i32 = arith.constant 1 : i32
    %7 = arith.select %6, %c1_i32, %c16_i32 : i32
    %8 = vector.broadcast %7 : i32 to vector<32x1xi32>
    %9 = arith.remsi %5, %8 : vector<32x1xi32>
    %c0_i32_1 = arith.constant 0 : i32
    %10 = vector.broadcast %c0_i32_1 : i32 to vector<32x1xi32>
    %11 = arith.cmpi ne, %9, %10 : vector<32x1xi32>
    %c0_i32_2 = arith.constant 0 : i32
    %12 = vector.broadcast %c0_i32_2 : i32 to vector<32x1xi32>
    %13 = arith.cmpi slt, %9, %12 : vector<32x1xi32>
    %c0_i32_3 = arith.constant 0 : i32
    %14 = arith.cmpi slt, %7, %c0_i32_3 : i32
    %15 = vector.broadcast %14 : i1 to vector<32x1xi1>
    %16 = vector.broadcast %15 : vector<32x1xi1> to vector<32x1xi1>
    %17 = arith.xori %13, %16 : vector<32x1xi1>
    %18 = arith.andi %17, %11 : vector<32x1xi1>
    %19 = vector.broadcast %7 : i32 to vector<32x1xi32>
    %20 = arith.addi %9, %19 : vector<32x1xi32>
    %21 = arith.select %18, %20, %9 : vector<32x1xi1>, vector<32x1xi32>
    %c0_i32_4 = arith.constant 0 : i32
    %22 = vector.broadcast %c0_i32_4 : i32 to vector<32x1xi32>
    %23 = arith.cmpi sgt, %21, %22 : vector<32x1xi32>
    %c15_i32 = arith.constant 15 : i32
    %24 = vector.broadcast %c15_i32 : i32 to vector<32x1xi32>
    %25 = arith.cmpi slt, %21, %24 : vector<32x1xi32>
    %c0_5 = arith.constant 0 : index
    %c0_6 = arith.constant 0 : index
    %26 = vector.load %arg0[%c0_5, %c0_6] : memref<32x64xf32, #tpu.memory_space<vmem>>, vector<32x64xf32>
    %c0_7 = arith.constant 0 : index
    %c0_8 = arith.constant 0 : index
    %27 = vector.load %arg1[%c0_7, %c0_8] : memref<576x128xf32, #tpu.memory_space<vmem>>, vector<64x128xf32>
    %c64 = arith.constant 64 : index
    %c0_9 = arith.constant 0 : index
    %28 = vector.load %arg1[%c64, %c0_9] : memref<576x128xf32, #tpu.memory_space<vmem>>, vector<64x128xf32>
    %c128 = arith.constant 128 : index
    %c0_10 = arith.constant 0 : index
    %29 = vector.load %arg1[%c128, %c0_10] : memref<576x128xf32, #tpu.memory_space<vmem>>, vector<64x128xf32>
    %c1_i32_11 = arith.constant 1 : i32
    %30 = tpu.dynamic_rotate %26 by %c1_i32_11 dim 0 : vector<32x64xf32>, i32 -> vector<32x64xf32>
    %cst = arith.constant 0.000000e+00 : f32
    %31 = vector.shape_cast %23 : vector<32x1xi1> to vector<32x1xi1>
    %32 = vector.broadcast %31 : vector<32x1xi1> to vector<32x64xi1>
    %33 = vector.broadcast %cst : f32 to vector<32x64xf32>
    %34 = arith.select %32, %30, %33 : vector<32x64xi1>, vector<32x64xf32>
    %cst_12 = arith.constant dense<0.000000e+00> : vector<32x128xf32>
    %35 = tpu.matmul %34, %27, %cst_12 {dimension_numbers = #tpu.dot_dimension_numbers<[1], [0], [0], [1], [0, 0, 1, 1], [], []>, precision = #tpu.contract_precision<fp32>} : vector<32x64xf32>, vector<64x128xf32>, vector<32x128xf32> -> vector<32x128xf32>
    %cst_13 = arith.constant dense<0.000000e+00> : vector<32x128xf32>
    %36 = tpu.matmul %26, %28, %cst_13 {dimension_numbers = #tpu.dot_dimension_numbers<[1], [0], [0], [1], [0, 0, 1, 1], [], []>, precision = #tpu.contract_precision<fp32>} : vector<32x64xf32>, vector<64x128xf32>, vector<32x128xf32> -> vector<32x128xf32>
    %37 = arith.addf %35, %36 : vector<32x128xf32>
    %c31_i32 = arith.constant 31 : i32
    %38 = tpu.dynamic_rotate %26 by %c31_i32 dim 0 : vector<32x64xf32>, i32 -> vector<32x64xf32>
    %cst_14 = arith.constant 0.000000e+00 : f32
    %39 = vector.shape_cast %25 : vector<32x1xi1> to vector<32x1xi1>
    %40 = vector.broadcast %39 : vector<32x1xi1> to vector<32x64xi1>
    %41 = vector.broadcast %cst_14 : f32 to vector<32x64xf32>
    %42 = arith.select %40, %38, %41 : vector<32x64xi1>, vector<32x64xf32>
    %cst_15 = arith.constant dense<0.000000e+00> : vector<32x128xf32>
    %43 = tpu.matmul %42, %29, %cst_15 {dimension_numbers = #tpu.dot_dimension_numbers<[1], [0], [0], [1], [0, 0, 1, 1], [], []>, precision = #tpu.contract_precision<fp32>} : vector<32x64xf32>, vector<64x128xf32>, vector<32x128xf32> -> vector<32x128xf32>
    %44 = arith.addf %37, %43 : vector<32x128xf32>
    %cst_16 = arith.constant dense<0.000000e+00> : vector<128xf32>
    %45 = vector.multi_reduction <add>, %44, %cst_16 [0] : vector<32x128xf32> to vector<128xf32>
    %46 = vector.shape_cast %45 : vector<128xf32> to vector<1x128xf32>
    %47 = arith.mulf %44, %44 : vector<32x128xf32>
    %cst_17 = arith.constant dense<0.000000e+00> : vector<128xf32>
    %48 = vector.multi_reduction <add>, %47, %cst_17 [0] : vector<32x128xf32> to vector<128xf32>
    %49 = vector.shape_cast %48 : vector<128xf32> to vector<1x128xf32>
    %50 = tpu.concatenate %46, %49 in 0 : vector<1x128xf32>, vector<1x128xf32> -> vector<2x128xf32>
    %c8_i32 = arith.constant 8 : i32
    %51 = tpu.dynamic_rotate %50 by %c8_i32 dim 1 : vector<2x128xf32>, i32 -> vector<2x128xf32>
    %52 = arith.addf %50, %51 : vector<2x128xf32>
    %c16_i32_18 = arith.constant 16 : i32
    %53 = tpu.dynamic_rotate %52 by %c16_i32_18 dim 1 : vector<2x128xf32>, i32 -> vector<2x128xf32>
    %54 = arith.addf %52, %53 : vector<2x128xf32>
    %c32_i32 = arith.constant 32 : i32
    %55 = tpu.dynamic_rotate %54 by %c32_i32 dim 1 : vector<2x128xf32>, i32 -> vector<2x128xf32>
    %56 = arith.addf %54, %55 : vector<2x128xf32>
    %c64_i32 = arith.constant 64 : i32
    %57 = tpu.dynamic_rotate %56 by %c64_i32 dim 1 : vector<2x128xf32>, i32 -> vector<2x128xf32>
    %58 = arith.addf %56, %57 : vector<2x128xf32>
    %59 = vector.extract_strided_slice %58 {offsets = [0, 0], sizes = [1, 128], strides = [1, 1]} : vector<2x128xf32> to vector<1x128xf32>
    %cst_19 = arith.constant 0.001953125 : f32
    %60 = vector.broadcast %cst_19 : f32 to vector<1x128xf32>
    %61 = arith.mulf %59, %60 : vector<1x128xf32>
    %62 = vector.extract_strided_slice %58 {offsets = [1, 0], sizes = [1, 128], strides = [1, 1]} : vector<2x128xf32> to vector<1x128xf32>
    %cst_20 = arith.constant 0.001953125 : f32
    %63 = vector.broadcast %cst_20 : f32 to vector<1x128xf32>
    %64 = arith.mulf %62, %63 : vector<1x128xf32>
    %65 = arith.mulf %61, %61 : vector<1x128xf32>
    %66 = arith.subf %64, %65 : vector<1x128xf32>
    %cst_21 = arith.constant 0.000000e+00 : f32
    %67 = vector.broadcast %cst_21 : f32 to vector<1x128xf32>
    %68 = arith.maximumf %66, %67 : vector<1x128xf32>
    %cst_22 = arith.constant 9.99999974E-6 : f32
    %69 = vector.broadcast %cst_22 : f32 to vector<1x128xf32>
    %70 = arith.addf %68, %69 : vector<1x128xf32>
    %71 = math.rsqrt %70 : vector<1x128xf32>
    %72 = arith.mulf %1, %71 : vector<1x128xf32>
    %73 = arith.mulf %72, %61 : vector<1x128xf32>
    %74 = arith.subf %2, %73 : vector<1x128xf32>
    %75 = vector.broadcast %72 : vector<1x128xf32> to vector<32x128xf32>
    %76 = arith.mulf %44, %75 : vector<32x128xf32>
    %77 = vector.broadcast %74 : vector<1x128xf32> to vector<32x128xf32>
    %78 = arith.addf %76, %77 : vector<32x128xf32>
    %cst_23 = arith.constant 0.000000e+00 : f32
    %79 = vector.broadcast %cst_23 : f32 to vector<32x128xf32>
    %80 = arith.maximumf %78, %79 : vector<32x128xf32>
    %c192 = arith.constant 192 : index
    %c0_24 = arith.constant 0 : index
    %81 = vector.load %arg1[%c192, %c0_24] : memref<576x128xf32, #tpu.memory_space<vmem>>, vector<128x128xf32>
    %c320 = arith.constant 320 : index
    %c0_25 = arith.constant 0 : index
    %82 = vector.load %arg1[%c320, %c0_25] : memref<576x128xf32, #tpu.memory_space<vmem>>, vector<128x128xf32>
    %c448 = arith.constant 448 : index
    %c0_26 = arith.constant 0 : index
    %83 = vector.load %arg1[%c448, %c0_26] : memref<576x128xf32, #tpu.memory_space<vmem>>, vector<128x128xf32>
    %c1_i32_27 = arith.constant 1 : i32
    %84 = tpu.dynamic_rotate %80 by %c1_i32_27 dim 0 : vector<32x128xf32>, i32 -> vector<32x128xf32>
    %cst_28 = arith.constant 0.000000e+00 : f32
    %85 = vector.shape_cast %23 : vector<32x1xi1> to vector<32x1xi1>
    %86 = vector.broadcast %85 : vector<32x1xi1> to vector<32x128xi1>
    %87 = vector.broadcast %cst_28 : f32 to vector<32x128xf32>
    %88 = arith.select %86, %84, %87 : vector<32x128xi1>, vector<32x128xf32>
    %cst_29 = arith.constant dense<0.000000e+00> : vector<32x128xf32>
    %89 = tpu.matmul %88, %81, %cst_29 {dimension_numbers = #tpu.dot_dimension_numbers<[1], [0], [0], [1], [0, 0, 1, 1], [], []>, precision = #tpu.contract_precision<fp32>} : vector<32x128xf32>, vector<128x128xf32>, vector<32x128xf32> -> vector<32x128xf32>
    %cst_30 = arith.constant dense<0.000000e+00> : vector<32x128xf32>
    %90 = tpu.matmul %80, %82, %cst_30 {dimension_numbers = #tpu.dot_dimension_numbers<[1], [0], [0], [1], [0, 0, 1, 1], [], []>, precision = #tpu.contract_precision<fp32>} : vector<32x128xf32>, vector<128x128xf32>, vector<32x128xf32> -> vector<32x128xf32>
    %91 = arith.addf %89, %90 : vector<32x128xf32>
    %c31_i32_31 = arith.constant 31 : i32
    %92 = tpu.dynamic_rotate %80 by %c31_i32_31 dim 0 : vector<32x128xf32>, i32 -> vector<32x128xf32>
    %cst_32 = arith.constant 0.000000e+00 : f32
    %93 = vector.shape_cast %25 : vector<32x1xi1> to vector<32x1xi1>
    %94 = vector.broadcast %93 : vector<32x1xi1> to vector<32x128xi1>
    %95 = vector.broadcast %cst_32 : f32 to vector<32x128xf32>
    %96 = arith.select %94, %92, %95 : vector<32x128xi1>, vector<32x128xf32>
    %cst_33 = arith.constant dense<0.000000e+00> : vector<32x128xf32>
    %97 = tpu.matmul %96, %83, %cst_33 {dimension_numbers = #tpu.dot_dimension_numbers<[1], [0], [0], [1], [0, 0, 1, 1], [], []>, precision = #tpu.contract_precision<fp32>} : vector<32x128xf32>, vector<128x128xf32>, vector<32x128xf32> -> vector<32x128xf32>
    %98 = arith.addf %91, %97 : vector<32x128xf32>
    %cst_34 = arith.constant dense<0.000000e+00> : vector<128xf32>
    %99 = vector.multi_reduction <add>, %98, %cst_34 [0] : vector<32x128xf32> to vector<128xf32>
    %100 = vector.shape_cast %99 : vector<128xf32> to vector<1x128xf32>
    %101 = arith.mulf %98, %98 : vector<32x128xf32>
    %cst_35 = arith.constant dense<0.000000e+00> : vector<128xf32>
    %102 = vector.multi_reduction <add>, %101, %cst_35 [0] : vector<32x128xf32> to vector<128xf32>
    %103 = vector.shape_cast %102 : vector<128xf32> to vector<1x128xf32>
    %104 = tpu.concatenate %100, %103 in 0 : vector<1x128xf32>, vector<1x128xf32> -> vector<2x128xf32>
    %c8_i32_36 = arith.constant 8 : i32
    %105 = tpu.dynamic_rotate %104 by %c8_i32_36 dim 1 : vector<2x128xf32>, i32 -> vector<2x128xf32>
    %106 = arith.addf %104, %105 : vector<2x128xf32>
    %c16_i32_37 = arith.constant 16 : i32
    %107 = tpu.dynamic_rotate %106 by %c16_i32_37 dim 1 : vector<2x128xf32>, i32 -> vector<2x128xf32>
    %108 = arith.addf %106, %107 : vector<2x128xf32>
    %c32_i32_38 = arith.constant 32 : i32
    %109 = tpu.dynamic_rotate %108 by %c32_i32_38 dim 1 : vector<2x128xf32>, i32 -> vector<2x128xf32>
    %110 = arith.addf %108, %109 : vector<2x128xf32>
    %c64_i32_39 = arith.constant 64 : i32
    %111 = tpu.dynamic_rotate %110 by %c64_i32_39 dim 1 : vector<2x128xf32>, i32 -> vector<2x128xf32>
    %112 = arith.addf %110, %111 : vector<2x128xf32>
    %113 = vector.extract_strided_slice %112 {offsets = [0, 0], sizes = [1, 128], strides = [1, 1]} : vector<2x128xf32> to vector<1x128xf32>
    %cst_40 = arith.constant 0.001953125 : f32
    %114 = vector.broadcast %cst_40 : f32 to vector<1x128xf32>
    %115 = arith.mulf %113, %114 : vector<1x128xf32>
    %116 = vector.extract_strided_slice %112 {offsets = [1, 0], sizes = [1, 128], strides = [1, 1]} : vector<2x128xf32> to vector<1x128xf32>
    %cst_41 = arith.constant 0.001953125 : f32
    %117 = vector.broadcast %cst_41 : f32 to vector<1x128xf32>
    %118 = arith.mulf %116, %117 : vector<1x128xf32>
    %119 = arith.mulf %115, %115 : vector<1x128xf32>
    %120 = arith.subf %118, %119 : vector<1x128xf32>
    %cst_42 = arith.constant 0.000000e+00 : f32
    %121 = vector.broadcast %cst_42 : f32 to vector<1x128xf32>
    %122 = arith.maximumf %120, %121 : vector<1x128xf32>
    %cst_43 = arith.constant 9.99999974E-6 : f32
    %123 = vector.broadcast %cst_43 : f32 to vector<1x128xf32>
    %124 = arith.addf %122, %123 : vector<1x128xf32>
    %125 = math.rsqrt %124 : vector<1x128xf32>
    %126 = arith.mulf %3, %125 : vector<1x128xf32>
    %127 = arith.mulf %126, %115 : vector<1x128xf32>
    %128 = arith.subf %4, %127 : vector<1x128xf32>
    %129 = vector.broadcast %126 : vector<1x128xf32> to vector<32x128xf32>
    %130 = arith.mulf %98, %129 : vector<32x128xf32>
    %131 = vector.broadcast %128 : vector<1x128xf32> to vector<32x128xf32>
    %132 = arith.addf %130, %131 : vector<32x128xf32>
    %cst_44 = arith.constant 0.000000e+00 : f32
    %133 = vector.broadcast %cst_44 : f32 to vector<32x128xf32>
    %134 = arith.maximumf %132, %133 : vector<32x128xf32>
    %c0_45 = arith.constant 0 : index
    %c0_46 = arith.constant 0 : index
    %135 = vector.load %arg3[%c0_45, %c0_46] : memref<32x128xf32, #tpu.memory_space<vmem>>, vector<32x128xf32>
    tpu.vector_store %arg3[%c0_45, %c0_46], %134 {strides = array<i32>} : memref<32x128xf32, #tpu.memory_space<vmem>>, vector<32x128xf32>,
    return
  }
}

</mosaic_0001>

<llo_original>
// kernel: tpu_custom_call.1
$region0: #{tpu_custom_call.1}
  #allocation0 [shape = 'u32[]', space=smem, size = 0x4, offset = 0x4, fixed_abs, tag = 'smem constant byte address 0x4 - core index']
  #allocation1 [shape = 'u32[144,128]{1,0:T(1,128)}', space=vmem, size = 0x12000, scoped, tag = 'internal scratch']
  %s0 = inlined_call_operand.hbm [shape: f32[32,64], index: 0, kind: input, shape index: {}]
  %s1 = inlined_call_operand.hbm [shape: f32[576,128], index: 1, kind: input, shape index: {}]
  %s2 = inlined_call_operand.vmem [shape: f32[4,128], index: 2, kind: input, shape index: {}]
  %s3 = inlined_call_operand.hbm [shape: f32[32,128], index: 3, kind: output, shape index: {}]
  %s4 = sld [smem:[#allocation0]]
  $region30: #{tpu_custom_call.1} parent=0
    _
  %s6 = ssub.s32 1, %s4
  %s7 = scalar_select 0, %s6, %s4
  $region1: #{tpu_custom_call.1} parent=0
    #allocation2 [shape = 'u8[16384]{0}', space=vmem, size = 0x4000, scoped, tag = 'input window, operand 0, single buffered']
    #allocation3 [shape = 's32[1]{0}', space=sflag, size = 0x4, scoped, tag = 'scoped memory for tpu_custom_call.1']
    #allocation4 [shape = 's32[1]{0}', space=sflag, size = 0x4, scoped, tag = 'scoped memory for tpu_custom_call.1']
    #allocation5 [shape = 'u8[294912]{0}', space=vmem, size = 0x48000, scoped, tag = 'input window, operand 1, single buffered']
    #allocation6 [shape = 's32[1]{0}', space=sflag, size = 0x4, scoped, tag = 'scoped memory for tpu_custom_call.1']
    #allocation7 [shape = 'u8[16384]{0}', space=vmem, size = 0x4000, scoped, tag = 'output window, operand 0, single buffered']
    %8 = vsyncpa [#allocation3], 0
    %9 = vsyncpa [#allocation6], 0
    %10 = vsyncpa [#allocation4], 0
    // Predicated region
    $region2: #{tpu_custom_call.1} parent=1 // pred_check
      _
    $region3: #{tpu_custom_call.1} parent=1 // pred_check_branch
      %12 = sbr.rel (0) target = $region5
    $region4: #{tpu_custom_call.1} parent=1 // pred_region
      %s14 = ssub.s32 512, 512
      %15 = vsyncadd [#allocation3], %s14
      %s16 = sshll.u32 [#allocation2], 4
      %s17 = int_to_ptr.vmem [resolvable:$true] %s16
      %22 = dma.hbm_to_vmem [thread:$0]  %s0, 512, %s17, [#allocation3], 128, 128, 8
    $region5: #{tpu_custom_call.1} parent=1 // pred_fallthru
      _
    // Predicated region
    $region6: #{tpu_custom_call.1} parent=1 // pred_check
      _
    $region7: #{tpu_custom_call.1} parent=1 // pred_check_branch
      %24 = sbr.rel (0) target = $region9
    $region8: #{tpu_custom_call.1} parent=1 // pred_region
      %s26 = ssub.s32 9216, 9216
      %27 = vsyncadd [#allocation6], %s26
      %s28 = sshll.u32 [#allocation5], 4
      %s29 = int_to_ptr.vmem [resolvable:$true] %s28
      %34 = dma.hbm_to_vmem [thread:$0]  %s1, 9216, %s29, [#allocation6], 128, 128, 8
    $region9: #{tpu_custom_call.1} parent=1 // pred_fallthru
      _
    // Predicated region
    $region10: #{tpu_custom_call.1} parent=1 // pred_check
      _
    $region11: #{tpu_custom_call.1} parent=1 // pred_check_branch
      %36 = sbr.rel (0) target = $region13
    $region12: #{tpu_custom_call.1} parent=1 // pred_region
      _
    $region13: #{tpu_custom_call.1} parent=1 // pred_fallthru
      _
    // Predicated region
    $region14: #{tpu_custom_call.1} parent=1 // pred_check
      _
    $region15: #{tpu_custom_call.1} parent=1 // pred_check_branch
      %38 = sbr.rel (0) target = $region17
    $region16: #{tpu_custom_call.1} parent=1 // pred_region
      %39 = dma.done [#allocation3], 512
    $region17: #{tpu_custom_call.1} parent=1 // pred_fallthru
      _
    // Predicated region
    $region18: #{tpu_custom_call.1} parent=1 // pred_check
      _
    $region19: #{tpu_custom_call.1} parent=1 // pred_check_branch
      %41 = sbr.rel (0) target = $region21
    $region20: #{tpu_custom_call.1} parent=1 // pred_region
      %42 = dma.done [#allocation6], 9216
    $region21: #{tpu_custom_call.1} parent=1 // pred_fallthru
      _
    %v43 = vld [vmem:[%s2] sm:$0xf]
    %v44 = vlaneseq
    %v45 = vshrl.u32 %v44, 7
    %v46 = vadd.s32 %v45, 8
    %v47 = vadd.s32 %v45, 16
    %v48 = vadd.s32 %v45, 24
    %vm49 = vcmp.lt.s32.totalorder %v45, 0
    %v50 = vsub.s32 0, %v45
    %v51 = vsel %vm49, %v50, %v45
    %v52 = vshrl.u32 %v51, 4
    %v53 = vand.u32 %v51, 15
    %v54 = vsub.s32 0, %v53
    %v55 = vsel %vm49, %v54, %v53
    %vm56 = vcmp.lt.s32.totalorder %v46, 0
    %v57 = vsub.s32 0, %v46
    %v58 = vsel %vm56, %v57, %v46
    %v59 = vshrl.u32 %v58, 4
    %v60 = vand.u32 %v58, 15
    %v61 = vsub.s32 0, %v60
    %v62 = vsel %vm56, %v61, %v60
    %vm63 = vcmp.lt.s32.totalorder %v47, 0
    %v64 = vsub.s32 0, %v47
    %v65 = vsel %vm63, %v64, %v47
    %v66 = vshrl.u32 %v65, 4
    %v67 = vand.u32 %v65, 15
    %v68 = vsub.s32 0, %v67
    %v69 = vsel %vm63, %v68, %v67
    %vm70 = vcmp.lt.s32.totalorder %v48, 0
    %v71 = vsub.s32 0, %v48
    %v72 = vsel %vm70, %v71, %v48
    %v73 = vshrl.u32 %v72, 4
    %v74 = vand.u32 %v72, 15
    %v75 = vsub.s32 0, %v74
    %v76 = vsel %vm70, %v75, %v74
    %vm77 = vcmp.ne.s32.totalorder %v55, 0
    %vm78 = vcmp.ne.s32.totalorder %v62, 0
    %vm79 = vcmp.ne.s32.totalorder %v69, 0
    %vm80 = vcmp.ne.s32.totalorder %v76, 0
    %vm81 = vcmp.lt.s32.totalorder %v55, 0
    %vm82 = vcmp.lt.s32.totalorder %v62, 0
    %vm83 = vcmp.lt.s32.totalorder %v69, 0
    %vm84 = vcmp.lt.s32.totalorder %v76, 0
    %vm85 = vmand %vm81, %vm77
    %vm86 = vmand %vm82, %vm78
    %vm87 = vmand %vm83, %vm79
    %vm88 = vmand %vm84, %vm80
    %v89 = vadd.s32 %v55, 16
    %v90 = vadd.s32 %v62, 16
    %v91 = vadd.s32 %v69, 16
    %v92 = vadd.s32 %v76, 16
    %v93 = vsel %vm85, %v89, %v55
    %v94 = vsel %vm86, %v90, %v62
    %v95 = vsel %vm87, %v91, %v69
    %v96 = vsel %vm88, %v92, %v76
    %vm97 = vcmp.gt.s32.totalorder %v93, 0
    %vm98 = vcmp.gt.s32.totalorder %v94, 0
    %vm99 = vcmp.gt.s32.totalorder %v95, 0
    %vm100 = vcmp.gt.s32.totalorder %v96, 0
    %vm101 = vcmp.lt.s32.totalorder %v93, 15
    %vm102 = vcmp.lt.s32.totalorder %v94, 15
    %vm103 = vcmp.lt.s32.totalorder %v95, 15
    %vm104 = vcmp.lt.s32.totalorder %v96, 15
    %v105 = vld [vmem:[#allocation2] sm:$0xff]
    %v106 = vld [vmem:[#allocation2 + $0x8] sm:$0xff]
    %v107 = vld [vmem:[#allocation2 + $0x10] sm:$0xff]
    %v108 = vld [vmem:[#allocation2 + $0x18] sm:$0xff]
    %v109 = vld [vmem:[#allocation5] sm:$0xff]
    %v110 = vld [vmem:[#allocation5 + $0x8] sm:$0xff]
    %v111 = vld [vmem:[#allocation5 + $0x10] sm:$0xff]
    %v112 = vld [vmem:[#allocation5 + $0x18] sm:$0xff]
    %v113 = vld [vmem:[#allocation5 + $0x20] sm:$0xff]
    %v114 = vld [vmem:[#allocation5 + $0x28] sm:$0xff]
    %v115 = vld [vmem:[#allocation5 + $0x30] sm:$0xff]
    %v116 = vld [vmem:[#allocation5 + $0x38] sm:$0xff]
    %v117 = vld [vmem:[#allocation5 + $0x40] sm:$0xff]
    %v118 = vld [vmem:[#allocation5 + $0x48] sm:$0xff]
    %v119 = vld [vmem:[#allocation5 + $0x50] sm:$0xff]
    %v120 = vld [vmem:[#allocation5 + $0x58] sm:$0xff]
    %v121 = vld [vmem:[#allocation5 + $0x60] sm:$0xff]
    %v122 = vld [vmem:[#allocation5 + $0x68] sm:$0xff]
    %v123 = vld [vmem:[#allocation5 + $0x70] sm:$0xff]
    %v124 = vld [vmem:[#allocation5 + $0x78] sm:$0xff]
    %v125 = vld [vmem:[#allocation5 + $0x80] sm:$0xff]
    %v126 = vld [vmem:[#allocation5 + $0x88] sm:$0xff]
    %v127 = vld [vmem:[#allocation5 + $0x90] sm:$0xff]
    %v128 = vld [vmem:[#allocation5 + $0x98] sm:$0xff]
    %v129 = vld [vmem:[#allocation5 + $0xa0] sm:$0xff]
    %v130 = vld [vmem:[#allocation5 + $0xa8] sm:$0xff]
    %v131 = vld [vmem:[#allocation5 + $0xb0] sm:$0xff]
    %v132 = vld [vmem:[#allocation5 + $0xb8] sm:$0xff]
    %v133 = vrot.slane %v105, 7
    %v134 = vrot.slane %v106, 7
    %v135 = vrot.slane %v107, 7
    %v136 = vrot.slane %v108, 7
    %vm137 = vcmp.lt.s32.totalorder %v45, 1
    %v138 = vsel %vm137, %v135, %v136
    %v139 = vsel %vm137, %v134, %v135
    %v140 = vsel %vm137, %v133, %v134
    %v141 = vsel %vm137, %v136, %v133
    %v142 = vsel %vm97, 1, 0
    %v143 = vsel %vm98, 1, 0
    %v144 = vsel %vm99, 1, 0
    %v145 = vsel %vm100, 1, 0
    %vm146 = vcmp.eq.s32.totalorder %v142, 1
    %vm147 = vcmp.eq.s32.totalorder %v143, 1
    %vm148 = vcmp.eq.s32.totalorder %v144, 1
    %vm149 = vcmp.eq.s32.totalorder %v145, 1
    %v150 = vsel %vm146, %v141, 0.0
    %v151 = vsel %vm147, %v140, 0.0
    %v152 = vsel %vm148, %v139, 0.0
    %v153 = vsel %vm149, %v138, 0.0
    %vm154 = vcmask 523264
    %v156 = vsel %vm154, %v105, 0
    %v159 = vsel %vm154, %v106, 0
    %v162 = vsel %vm154, %v107, 0
    %v165 = vsel %vm154, %v108, 0
    %167 = vmatprep.subr.mxu0 0.0
    %v168 = vand.u32 %v117, 4294901760
    %169 = vmatpush1.msra.mxu0 %v168
    %170 = vmatprep.subr.mxu0 0.0
    %v171 = vand.u32 %v118, 4294901760
    %172 = vmatpush1.msra.mxu0 %v171
    %173 = vmatprep.subr.mxu0 0.0
    %v174 = vand.u32 %v119, 4294901760
    %175 = vmatpush1.msra.mxu0 %v174
    %176 = vmatprep.subr.mxu0 0.0
    %v177 = vand.u32 %v120, 4294901760
    %178 = vmatpush1.msra.mxu0 %v177
    %179 = vmatprep.subr.mxu0 0.0
    %v180 = vand.u32 %v121, 4294901760
    %181 = vmatpush1.msra.mxu0 %v180
    %182 = vmatprep.subr.mxu0 0.0
    %v183 = vand.u32 %v122, 4294901760
    %184 = vmatpush1.msra.mxu0 %v183
    %185 = vmatprep.subr.mxu0 0.0
    %v186 = vand.u32 %v123, 4294901760
    %187 = vmatpush1.msra.mxu0 %v186
    %188 = vmatprep.subr.mxu0 0.0
    %v189 = vand.u32 %v124, 4294901760
    %190 = vmatpush1.msra.mxu0 %v189
    %191 = vmatprep.subr.mxu0 0.0
    %192 = vmatpush1.msra.mxu0 0.0
    %193 = vmatprep.subr.mxu0 0.0
    %194 = vmatpush1.msra.mxu0 0.0
    %195 = vmatprep.subr.mxu0 0.0
    %196 = vmatpush1.msra.mxu0 0.0
    %197 = vmatprep.subr.mxu0 0.0
    %198 = vmatpush1.msra.mxu0 0.0
    %199 = vmatprep.subr.mxu0 0.0
    %200 = vmatpush1.msra.mxu0 0.0
    %201 = vmatprep.subr.mxu0 0.0
    %202 = vmatpush1.msra.mxu0 0.0
    %203 = vmatprep.subr.mxu0 0.0
    %204 = vmatpush1.msra.mxu0 0.0
    %205 = vmatprep.subr.mxu0 0.0
    %206 = vmatpush1.msra.mxu0 0.0
    %207 = vmatprep.subr.mxu0 0.0
    %208 = vmatpush1.msra.mxu0 0.0
    %209 = vmatprep.subr.mxu0 0.0
    %210 = vmatpush1.msra.mxu0 0.0
    %211 = vmatprep.subr.mxu0 0.0
    %212 = vmatpush1.msra.mxu0 0.0
    %213 = vmatprep.subr.mxu0 0.0
    %214 = vmatpush1.msra.mxu0 0.0
    %215 = vmatprep.subr.mxu0 0.0
    %216 = vmatpush1.msra.mxu0 0.0
    %217 = vmatprep.subr.mxu0 0.0
    %218 = vmatpush1.msra.mxu0 0.0
    %219 = vmatprep.subr.mxu0 0.0
    %220 = vmatpush1.msra.mxu0 0.0
    %221 = vmatprep.subr.mxu0 0.0
    %222 = vmatpush1.msra.mxu0 0.0
    %223 = vmatprep.subr.mxu0 0.0
    %224 = vmatpush1.msra.mxu0 0.0
    %225 = vmatprep.subr.mxu0 0.0
    %226 = vmatpush1.msra.mxu0 0.0
    %227 = vmatprep.subr.mxu0 0.0
    %228 = vmatpush1.msra.mxu0 0.0
    %229 = vmatprep.subr.mxu0 0.0
    %230 = vmatpush1.msra.mxu0 0.0
    %231 = vmatprep.subr.mxu0 0.0
    %232 = vmatpush1.msra.mxu0 0.0
    %233 = vmatprep.subr.mxu0 0.0
    %234 = vmatpush1.msra.mxu0 0.0
    %235 = vmatprep.subr.mxu0 0.0
    %236 = vmatpush1.msra.mxu0 0.0
    %237 = vmatprep.subr.mxu0 0.0
    %238 = vmatpush1.msra.mxu0 0.0
    %239 = vmatprep.mubr.f32.mxu0 0.0
    %v240 = vand.u32 %v156, 4294901760
    %v241 = vsub.f32 %v156, %v240
    %v242 = vand.u32 %v241, 4294901760
    %v243 = vsub.f32 %v241, %v242
    %v244 = vand.u32 %v243, 4294901760
    %245 = vmatmul.mubr.f32.gmra.mrb[0].mxu0 %v244
    %v246 = vpop.f32.mrb[0].mxu0
    %v247 = vadd.f32 0.0, %v246
    %v248 = vpop.f32.mrb[0].mxu0
    %249 = vmatprep.mubr.f32.mxu0 0.0
    %v250 = vand.u32 %v159, 4294901760
    %v251 = vsub.f32 %v159, %v250
    %v252 = vand.u32 %v251, 4294901760
    %v253 = vsub.f32 %v251, %v252
    %v254 = vand.u32 %v253, 4294901760
    %255 = vmatmul.mubr.f32.gmra.mrb[0].mxu0 %v254
    %v256 = vpop.f32.mrb[0].mxu0
    %v257 = vadd.f32 0.0, %v256
    %v258 = vpop.f32.mrb[0].mxu0
    %259 = vmatprep.mubr.f32.mxu0 0.0
    %v260 = vand.u32 %v162, 4294901760
    %v261 = vsub.f32 %v162, %v260
    %v262 = vand.u32 %v261, 4294901760
    %v263 = vsub.f32 %v261, %v262
    %v264 = vand.u32 %v263, 4294901760
    %265 = vmatmul.mubr.f32.gmra.mrb[0].mxu0 %v264
    %v266 = vpop.f32.mrb[0].mxu0
    %v267 = vadd.f32 0.0, %v266
    %v268 = vpop.f32.mrb[0].mxu0
    %269 = vmatprep.mubr.f32.mxu0 0.0
    %v270 = vand.u32 %v165, 4294901760
    %v271 = vsub.f32 %v165, %v270
    %v272 = vand.u32 %v271, 4294901760
    %v273 = vsub.f32 %v271, %v272
    %v274 = vand.u32 %v273, 4294901760
    %275 = vmatmul.mubr.f32.gmra.mrb[0].mxu0 %v274
    %v276 = vpop.f32.mrb[0].mxu0
    %v277 = vadd.f32 0.0, %v276
    %v278 = vpop.f32.mrb[0].mxu0
    %279 = vdwg.mxu0
    %280 = vmatprep.subr.mxu0 0.0
    %v281 = vand.u32 %v117, 4294901760
    %v282 = vsub.f32 %v117, %v281
    %v283 = vand.u32 %v282, 4294901760
    %v284 = vsub.f32 %v282, %v283
    %v285 = vand.u32 %v284, 4294901760
    %286 = vmatpush1.msra.mxu0 %v285
    %287 = vmatprep.subr.mxu0 0.0
    %v288 = vand.u32 %v118, 4294901760
    %v289 = vsub.f32 %v118, %v288
    %v290 = vand.u32 %v289, 4294901760
    %v291 = vsub.f32 %v289, %v290
    %v292 = vand.u32 %v291, 4294901760
    %293 = vmatpush1.msra.mxu0 %v292
    %294 = vmatprep.subr.mxu0 0.0
    %v295 = vand.u32 %v119, 4294901760
    %v296 = vsub.f32 %v119, %v295
    %v297 = vand.u32 %v296, 4294901760
    %v298 = vsub.f32 %v296, %v297
    %v299 = vand.u32 %v298, 4294901760
    %300 = vmatpush1.msra.mxu0 %v299
    %301 = vmatprep.subr.mxu0 0.0
    %v302 = vand.u32 %v120, 4294901760
    %v303 = vsub.f32 %v120, %v302
    %v304 = vand.u32 %v303, 4294901760
    %v305 = vsub.f32 %v303, %v304
    %v306 = vand.u32 %v305, 4294901760
    %307 = vmatpush1.msra.mxu0 %v306
    %308 = vmatprep.subr.mxu0 0.0
    %v309 = vand.u32 %v121, 4294901760
    %v310 = vsub.f32 %v121, %v309
    %v311 = vand.u32 %v310, 4294901760
    %v312 = vsub.f32 %v310, %v311
    %v313 = vand.u32 %v312, 4294901760
    %314 = vmatpush1.msra.mxu0 %v313
    %315 = vmatprep.subr.mxu0 0.0
    %v316 = vand.u32 %v122, 4294901760
    %v317 = vsub.f32 %v122, %v316
    %v318 = vand.u32 %v317, 4294901760
    %v319 = vsub.f32 %v317, %v318
    %v320 = vand.u32 %v319, 4294901760
    %321 = vmatpush1.msra.mxu0 %v320
    %322 = vmatprep.subr.mxu0 0.0
    %v323 = vand.u32 %v123, 4294901760
    %v324 = vsub.f32 %v123, %v323
    %v325 = vand.u32 %v324, 4294901760
    %v326 = vsub.f32 %v324, %v325
    %v327 = vand.u32 %v326, 4294901760
    %328 = vmatpush1.msra.mxu0 %v327
    %329 = vmatprep.subr.mxu0 0.0
    %v330 = vand.u32 %v124, 4294901760
    %v331 = vsub.f32 %v124, %v330
    %v332 = vand.u32 %v331, 4294901760
    %v333 = vsub.f32 %v331, %v332
    %v334 = vand.u32 %v333, 4294901760
    %335 = vmatpush1.msra.mxu0 %v334
    %336 = vmatprep.subr.mxu0 0.0
    %337 = vmatpush1.msra.mxu0 0.0
    %338 = vmatprep.subr.mxu0 0.0
    %339 = vmatpush1.msra.mxu0 0.0
    %340 = vmatprep.subr.mxu0 0.0
    %341 = vmatpush1.msra.mxu0 0.0
    %342 = vmatprep.subr.mxu0 0.0
    %343 = vmatpush1.msra.mxu0 0.0
    %344 = vmatprep.subr.mxu0 0.0
    %345 = vmatpush1.msra.mxu0 0.0
    %346 = vmatprep.subr.mxu0 0.0
    %347 = vmatpush1.msra.mxu0 0.0
    %348 = vmatprep.subr.mxu0 0.0
    %349 = vmatpush1.msra.mxu0 0.0
    %350 = vmatprep.subr.mxu0 0.0
    %351 = vmatpush1.msra.mxu0 0.0
    %352 = vmatprep.subr.mxu0 0.0
    %353 = vmatpush1.msra.mxu0 0.0
    %354 = vmatprep.subr.mxu0 0.0
    %355 = vmatpush1.msra.mxu0 0.0
    %356 = vmatprep.subr.mxu0 0.0
    %357 = vmatpush1.msra.mxu0 0.0
    %358 = vmatprep.subr.mxu0 0.0
    %359 = vmatpush1.msra.mxu0 0.0
    %360 = vmatprep.subr.mxu0 0.0
    %361 = vmatpush1.msra.mxu0 0.0
    %362 = vmatprep.subr.mxu0 0.0
    %363 = vmatpush1.msra.mxu0 0.0
    %364 = vmatprep.subr.mxu0 0.0
    %365 = vmatpush1.msra.mxu0 0.0
    %366 = vmatprep.subr.mxu0 0.0
    %367 = vmatpush1.msra.mxu0 0.0
    %368 = vmatprep.subr.mxu0 0.0
    %369 = vmatpush1.msra.mxu0 0.0
    %370 = vmatprep.subr.mxu0 0.0
    %371 = vmatpush1.msra.mxu0 0.0
    %372 = vmatprep.subr.mxu0 0.0
    %373 = vmatpush1.msra.mxu0 0.0
    %374 = vmatprep.subr.mxu0 0.0
    %375 = vmatpush1.msra.mxu0 0.0
    %376 = vmatprep.subr.mxu0 0.0
    %377 = vmatpush1.msra.mxu0 0.0
    %378 = vmatprep.subr.mxu0 0.0
    %379 = vmatpush1.msra.mxu0 0.0
    %380 = vmatprep.subr.mxu0 0.0
    %381 = vmatpush1.msra.mxu0 0.0
    %382 = vmatprep.subr.mxu0 0.0
    %383 = vmatpush1.msra.mxu0 0.0
    %384 = vmatprep.mubr.f32.mxu0 0.0
    %v385 = vand.u32 %v156, 4294901760
    %386 = vmatmul.mubr.f32.gmra.mrb[0].mxu0 %v385
    %v387 = vpop.f32.mrb[0].mxu0
    %v388 = vadd.f32 %v247, %v387
    %v389 = vpop.f32.mrb[0].mxu0
    %390 = vmatprep.mubr.f32.mxu0 0.0
    %v391 = vand.u32 %v159, 4294901760
    %392 = vmatmul.mubr.f32.gmra.mrb[0].mxu0 %v391
    %v393 = vpop.f32.mrb[0].mxu0
    %v394 = vadd.f32 %v257, %v393
    %v395 = vpop.f32.mrb[0].mxu0
    %396 = vmatprep.mubr.f32.mxu0 0.0
    %v397 = vand.u32 %v162, 4294901760
    %398 = vmatmul.mubr.f32.gmra.mrb[0].mxu0 %v397
    %v399 = vpop.f32.mrb[0].mxu0
    %v400 = vadd.f32 %v267, %v399
    %v401 = vpop.f32.mrb[0].mxu0
    %402 = vmatprep.mubr.f32.mxu0 0.0
    %v403 = vand.u32 %v165, 4294901760
    %404 = vmatmul.mubr.f32.gmra.mrb[0].mxu0 %v403
    %v405 = vpop.f32.mrb[0].mxu0
    %v406 = vadd.f32 %v277, %v405
    %v407 = vpop.f32.mrb[0].mxu0
    %408 = vdwg.mxu0
    %409 = vmatprep.subr.mxu0 0.0
    %v410 = vand.u32 %v117, 4294901760
    %v411 = vsub.f32 %v117, %v410
    %412 = vmatpush1.msra.mxu0 %v411
    %413 = vmatprep.subr.mxu0 0.0
    %v414 = vand.u32 %v118, 4294901760
    %v415 = vsub.f32 %v118, %v414
    %416 = vmatpush1.msra.mxu0 %v415
    %417 = vmatprep.subr.mxu0 0.0
    %v418 = vand.u32 %v119, 4294901760
    %v419 = vsub.f32 %v119, %v418
    %420 = vmatpush1.msra.mxu0 %v419
    %421 = vmatprep.subr.mxu0 0.0
    %v422 = vand.u32 %v120, 4294901760
    %v423 = vsub.f32 %v120, %v422
    %424 = vmatpush1.msra.mxu0 %v423
    %425 = vmatprep.subr.mxu0 0.0
    %v426 = vand.u32 %v121, 4294901760
    %v427 = vsub.f32 %v121, %v426
    %428 = vmatpush1.msra.mxu0 %v427
    %429 = vmatprep.subr.mxu0 0.0
    %v430 = vand.u32 %v122, 4294901760
    %v431 = vsub.f32 %v122, %v430
    %432 = vmatpush1.msra.mxu0 %v431
    %433 = vmatprep.subr.mxu0 0.0
    %v434 = vand.u32 %v123, 4294901760
    %v435 = vsub.f32 %v123, %v434
    %436 = vmatpush1.msra.mxu0 %v435
    %437 = vmatprep.subr.mxu0 0.0
    %v438 = vand.u32 %v124, 4294901760
    %v439 = vsub.f32 %v124, %v438
    %440 = vmatpush1.msra.mxu0 %v439
    %441 = vmatprep.subr.mxu0 0.0
    %442 = vmatpush1.msra.mxu0 0.0
    %443 = vmatprep.subr.mxu0 0.0
    %444 = vmatpush1.msra.mxu0 0.0
    %445 = vmatprep.subr.mxu0 0.0
    %446 = vmatpush1.msra.mxu0 0.0
    %447 = vmatprep.subr.mxu0 0.0
    %448 = vmatpush1.msra.mxu0 0.0
    %449 = vmatprep.subr.mxu0 0.0
    %450 = vmatpush1.msra.mxu0 0.0
    %451 = vmatprep.subr.mxu0 0.0
    %452 = vmatpush1.msra.mxu0 0.0
    %453 = vmatprep.subr.mxu0 0.0
    %454 = vmatpush1.msra.mxu0 0.0
    %455 = vmatprep.subr.mxu0 0.0
    %456 = vmatpush1.msra.mxu0 0.0
    %457 = vmatprep.subr.mxu0 0.0
    %458 = vmatpush1.msra.mxu0 0.0
    %459 = vmatprep.subr.mxu0 0.0
    %460 = vmatpush1.msra.mxu0 0.0
    %461 = vmatprep.subr.mxu0 0.0
    %462 = vmatpush1.msra.mxu0 0.0
    %463 = vmatprep.subr.mxu0 0.0
    %464 = vmatpush1.msra.mxu0 0.0
    %465 = vmatprep.subr.mxu0 0.0
    %466 = vmatpush1.msra.mxu0 0.0
    %467 = vmatprep.subr.mxu0 0.0
    %468 = vmatpush1.msra.mxu0 0.0
    %469 = vmatprep.subr.mxu0 0.0
    %470 = vmatpush1.msra.mxu0 0.0
    %471 = vmatprep.subr.mxu0 0.0
    %472 = vmatpush1.msra.mxu0 0.0
    %473 = vmatprep.subr.mxu0 0.0
    %474 = vmatpush1.msra.mxu0 0.0
    %475 = vmatprep.subr.mxu0 0.0
    %476 = vmatpush1.msra.mxu0 0.0
    %477 = vmatprep.subr.mxu0 0.0
    %478 = vmatpush1.msra.mxu0 0.0
    %479 = vmatprep.subr.mxu0 0.0
    %480 = vmatpush1.msra.mxu0 0.0
    %481 = vmatprep.subr.mxu0 0.0
    %482 = vmatpush1.msra.mxu0 0.0
    %483 = vmatprep.subr.mxu0 0.0
    %484 = vmatpush1.msra.mxu0 0.0
    %485 = vmatprep.subr.mxu0 0.0
    %486 = vmatpush1.msra.mxu0 0.0
    %487 = vmatprep.subr.mxu0 0.0
    %488 = vmatpush1.msra.mxu0 0.0
    %489 = vmatprep.mubr.f32.mxu0 0.0
    %v490 = vand.u32 %v156, 4294901760
    %v491 = vsub.f32 %v156, %v490
    %492 = vmatmul.mubr.f32.gmra.mrb[0].mxu0 %v491
    %v493 = vpop.f32.mrb[0].mxu0
    %v494 = vadd.f32 %v388, %v493
    %v495 = vpop.f32.mrb[0].mxu0
    %496 = vmatprep.mubr.f32.mxu0 0.0
    %v497 = vand.u32 %v159, 4294901760
    %v498 = vsub.f32 %v159, %v497
    %499 = vmatmul.mubr.f32.gmra.mrb[0].mxu0 %v498
    %v500 = vpop.f32.mrb[0].mxu0
    %v501 = vadd.f32 %v394, %v500
    %v502 = vpop.f32.mrb[0].mxu0
    %503 = vmatprep.mubr.f32.mxu0 0.0
    %v504 = vand.u32 %v162, 4294901760
    %v505 = vsub.f32 %v162, %v504
    %506 = vmatmul.mubr.f32.gmra.mrb[0].mxu0 %v505
    %v507 = vpop.f32.mrb[0].mxu0
    %v508 = vadd.f32 %v400, %v507
    %v509 = vpop.f32.mrb[0].mxu0
    %510 = vmatprep.mubr.f32.mxu0 0.0
    %v511 = vand.u32 %v165, 4294901760
    %v512 = vsub.f32 %v165, %v511
    %513 = vmatmul.mubr.f32.gmra.mrb[0].mxu0 %v512
    %v514 = vpop.f32.mrb[0].mxu0
    %v515 = vadd.f32 %v406, %v514
    %v516 = vpop.f32.mrb[0].mxu0
    %517 = vdwg.mxu0
    %518 = vmatprep.subr.mxu0 0.0
    %v519 = vand.u32 %v117, 4294901760
    %520 = vmatpush1.msra.mxu0 %v519
    %521 = vmatprep.subr.mxu0 0.0
    %v522 = vand.u32 %v118, 4294901760
    %523 = vmatpush1.msra.mxu0 %v522
    %524 = vmatprep.subr.mxu0 0.0
    %v525 = vand.u32 %v119, 4294901760
    %526 = vmatpush1.msra.mxu0 %v525
    %527 = vmatprep.subr.mxu0 0.0
    %v528 = vand.u32 %v120, 4294901760
    %529 = vmatpush1.msra.mxu0 %v528
    %530 = vmatprep.subr.mxu0 0.0
    %v531 = vand.u32 %v121, 4294901760
    %532 = vmatpush1.msra.mxu0 %v531
    %533 = vmatprep.subr.mxu0 0.0
    %v534 = vand.u32 %v122, 4294901760
    %535 = vmatpush1.msra.mxu0 %v534
    %536 = vmatprep.subr.mxu0 0.0
    %v537 = vand.u32 %v123, 4294901760
    %538 = vmatpush1.msra.mxu0 %v537
    %539 = vmatprep.subr.mxu0 0.0
    %v540 = vand.u32 %v124, 4294901760
    %541 = vmatpush1.msra.mxu0 %v540
    %542 = vmatprep.subr.mxu0 0.0
    %543 = vmatpush1.msra.mxu0 0.0
    %544 = vmatprep.subr.mxu0 0.0
    %545 = vmatpush1.msra.mxu0 0.0
    %546 = vmatprep.subr.mxu0 0.0
    %547 = vmatpush1.msra.mxu0 0.0
    %548 = vmatprep.subr.mxu0 0.0
    %549 = vmatpush1.msra.mxu0 0.0
    %550 = vmatprep.subr.mxu0 0.0
    %551 = vmatpush1.msra.mxu0 0.0
    %552 = vmatprep.subr.mxu0 0.0
    %553 = vmatpush1.msra.mxu0 0.0
    %554 = vmatprep.subr.mxu0 0.0
    %555 = vmatpush1.msra.mxu0 0.0
    %556 = vmatprep.subr.mxu0 0.0
    %557 = vmatpush1.msra.mxu0 0.0
    %558 = vmatprep.subr.mxu0 0.0
    %559 = vmatpush1.msra.mxu0 0.0
    %560 = vmatprep.subr.mxu0 0.0
    %561 = vmatpush1.msra.mxu0 0.0
    %562 = vmatprep.subr.mxu0 0.0
    %563 = vmatpush1.msra.mxu0 0.0
    %564 = vmatprep.subr.mxu0 0.0
    %565 = vmatpush1.msra.mxu0 0.0
    %566 = vmatprep.subr.mxu0 0.0
    %567 = vmatpush1.msra.mxu0 0.0
    %568 = vmatprep.subr.mxu0 0.0
    %569 = vmatpush1.msra.mxu0 0.0
    %570 = vmatprep.subr.mxu0 0.0
    %571 = vmatpush1.msra.mxu0 0.0
    %572 = vmatprep.subr.mxu0 0.0
    %573 = vmatpush1.msra.mxu0 0.0
    %574 = vmatprep.subr.mxu0 0.0
    %575 = vmatpush1.msra.mxu0 0.0
    %576 = vmatprep.subr.mxu0 0.0
    %577 = vmatpush1.msra.mxu0 0.0
    %578 = vmatprep.subr.mxu0 0.0
    %579 = vmatpush1.msra.mxu0 0.0
    %580 = vmatprep.subr.mxu0 0.0
    %581 = vmatpush1.msra.mxu0 0.0
    %582 = vmatprep.subr.mxu0 0.0
    %583 = vmatpush1.msra.mxu0 0.0
    %584 = vmatprep.subr.mxu0 0.0
    %585 = vmatpush1.msra.mxu0 0.0
    %586 = vmatprep.subr.mxu0 0.0
    %587 = vmatpush1.msra.mxu0 0.0
    %588 = vmatprep.subr.mxu0 0.0
    %589 = vmatpush1.msra.mxu0 0.0
    %590 = vmatprep.mubr.f32.mxu0 0.0
    %v591 = vand.u32 %v156, 4294901760
    %v592 = vsub.f32 %v156, %v591
    %v593 = vand.u32 %v592, 4294901760
    %594 = vmatmul.mubr.f32.gmra.mrb[0].mxu0 %v593
    %v595 = vpop.f32.mrb[0].mxu0
    %v596 = vadd.f32 %v494, %v595
    %v597 = vpop.f32.mrb[0].mxu0
    %598 = vmatprep.mubr.f32.mxu0 0.0
    %v599 = vand.u32 %v159, 4294901760
    %v600 = vsub.f32 %v159, %v599
    %v601 = vand.u32 %v600, 4294901760
    %602 = vmatmul.mubr.f32.gmra.mrb[0].mxu0 %v601
    %v603 = vpop.f32.mrb[0].mxu0
    %v604 = vadd.f32 %v501, %v603
    %v605 = vpop.f32.mrb[0].mxu0
    %606 = vmatprep.mubr.f32.mxu0 0.0
    %v607 = vand.u32 %v162, 4294901760
    %v608 = vsub.f32 %v162, %v607
    %v609 = vand.u32 %v608, 4294901760
    %610 = vmatmul.mubr.f32.gmra.mrb[0].mxu0 %v609
    %v611 = vpop.f32.mrb[0].mxu0
    %v612 = vadd.f32 %v508, %v611
    %v613 = vpop.f32.mrb[0].mxu0
    %614 = vmatprep.mubr.f32.mxu0 0.0
    %v615 = vand.u32 %v165, 4294901760
    %v616 = vsub.f32 %v165, %v615
    %v617 = vand.u32 %v616, 4294901760
    %618 = vmatmul.mubr.f32.gmra.mrb[0].mxu0 %v617
    %v619 = vpop.f32.mrb[0].mxu0
    %v620 = vadd.f32 %v515, %v619
    %v621 = vpop.f32.mrb[0].mxu0
    %622 = vdwg.mxu0
    %623 = vmatprep.subr.mxu0 0.0
    %v624 = vand.u32 %v117, 4294901760
    %v625 = vsub.f32 %v117, %v624
    %v626 = vand.u32 %v625, 4294901760
    %627 = vmatpush1.msra.mxu0 %v626
    %628 = vmatprep.subr.mxu0 0.0
    %v629 = vand.u32 %v118, 4294901760
    %v630 = vsub.f32 %v118, %v629
    %v631 = vand.u32 %v630, 4294901760
    %632 = vmatpush1.msra.mxu0 %v631
    %633 = vmatprep.subr.mxu0 0.0
    %v634 = vand.u32 %v119, 4294901760
    %v635 = vsub.f32 %v119, %v634
    %v636 = vand.u32 %v635, 4294901760
    %637 = vmatpush1.msra.mxu0 %v636
    %638 = vmatprep.subr.mxu0 0.0
    %v639 = vand.u32 %v120, 4294901760
    %v640 = vsub.f32 %v120, %v639
    %v641 = vand.u32 %v640, 4294901760
    %642 = vmatpush1.msra.mxu0 %v641
    %643 = vmatprep.subr.mxu0 0.0
    %v644 = vand.u32 %v121, 4294901760
    %v645 = vsub.f32 %v121, %v644
    %v646 = vand.u32 %v645, 4294901760
    %647 = vmatpush1.msra.mxu0 %v646
    %648 = vmatprep.subr.mxu0 0.0
    %v649 = vand.u32 %v122, 4294901760
    %v650 = vsub.f32 %v122, %v649
    %v651 = vand.u32 %v650, 4294901760
    %652 = vmatpush1.msra.mxu0 %v651
    %653 = vmatprep.subr.mxu0 0.0
    %v654 = vand.u32 %v123, 4294901760
    %v655 = vsub.f32 %v123, %v654
    %v656 = vand.u32 %v655, 4294901760
    %657 = vmatpush1.msra.mxu0 %v656
    %658 = vmatprep.subr.mxu0 0.0
    %v659 = vand.u32 %v124, 4294901760
    %v660 = vsub.f32 %v124, %v659
    %v661 = vand.u32 %v660, 4294901760
    %662 = vmatpush1.msra.mxu0 %v661
    %663 = vmatprep.subr.mxu0 0.0
    %664 = vmatpush1.msra.mxu0 0.0
    %665 = vmatprep.subr.mxu0 0.0
    %666 = vmatpush1.msra.mxu0 0.0
    %667 = vmatprep.subr.mxu0 0.0
    %668 = vmatpush1.msra.mxu0 0.0
    %669 = vmatprep.subr.mxu0 0.0
    %670 = vmatpush1.msra.mxu0 0.0
    %671 = vmatprep.subr.mxu0 0.0
    %672 = vmatpush1.msra.mxu0 0.0
    %673 = vmatprep.subr.mxu0 0.0
    %674 = vmatpush1.msra.mxu0 0.0
    %675 = vmatprep.subr.mxu0 0.0
    %676 = vmatpush1.msra.mxu0 0.0
    %677 = vmatprep.subr.mxu0 0.0
    %678 = vmatpush1.msra.mxu0 0.0
    %679 = vmatprep.subr.mxu0 0.0
    %680 = vmatpush1.msra.mxu0 0.0
    %681 = vmatprep.subr.mxu0 0.0
    %682 = vmatpush1.msra.mxu0 0.0
    %683 = vmatprep.subr.mxu0 0.0
    %684 = vmatpush1.msra.mxu0 0.0
    %685 = vmatprep.subr.mxu0 0.0
    %686 = vmatpush1.msra.mxu0 0.0
    %687 = vmatprep.subr.mxu0 0.0
    %688 = vmatpush1.msra.mxu0 0.0
    %689 = vmatprep.subr.mxu0 0.0
    %690 = vmatpush1.msra.mxu0 0.0
    %691 = vmatprep.subr.mxu0 0.0
    %692 = vmatpush1.msra.mxu0 0.0
    %693 = vmatprep.subr.mxu0 0.0
    %694 = vmatpush1.msra.mxu0 0.0
    %695 = vmatprep.subr.mxu0 0.0
    %696 = vmatpush1.msra.mxu0 0.0
    %697 = vmatprep.subr.mxu0 0.0
    %698 = vmatpush1.msra.mxu0 0.0
    %699 = vmatprep.subr.mxu0 0.0
    %700 = vmatpush1.msra.mxu0 0.0
    %701 = vmatprep.subr.mxu0 0.0
    %702 = vmatpush1.msra.mxu0 0.0
    %703 = vmatprep.subr.mxu0 0.0
    %704 = vmatpush1.msra.mxu0 0.0
    %705 = vmatprep.subr.mxu0 0.0
    %706 = vmatpush1.msra.mxu0 0.0
    %707 = vmatprep.subr.mxu0 0.0
    %708 = vmatpush1.msra.mxu0 0.0
    %709 = vmatprep.subr.mxu0 0.0
    %710 = vmatpush1.msra.mxu0 0.0
    %711 = vmatprep.mubr.f32.mxu0 0.0
    %v712 = vand.u32 %v156, 4294901760
    %713 = vmatmul.mubr.f32.gmra.mrb[0].mxu0 %v712
    %v714 = vpop.f32.mrb[0].mxu0
    %v715 = vadd.f32 %v596, %v714
    %v716 = vpop.f32.mrb[0].mxu0
    %717 = vmatprep.mubr.f32.mxu0 0.0
    %v718 = vand.u32 %v159, 4294901760
    %719 = vmatmul.mubr.f32.gmra.mrb[0].mxu0 %v718
    %v720 = vpop.f32.mrb[0].mxu0
    %v721 = vadd.f32 %v604, %v720
    %v722 = vpop.f32.mrb[0].mxu0
    %723 = vmatprep.mubr.f32.mxu0 0.0
    %v724 = vand.u32 %v162, 4294901760
    %725 = vmatmul.mubr.f32.gmra.mrb[0].mxu0 %v724
    %v726 = vpop.f32.mrb[0].mxu0
    %v727 = vadd.f32 %v612, %v726
    %v728 = vpop.f32.mrb[0].mxu0
    %729 = vmatprep.mubr.f32.mxu0 0.0
    %v730 = vand.u32 %v165, 4294901760
    %731 = vmatmul.mubr.f32.gmra.mrb[0].mxu0 %v730
    %v732 = vpop.f32.mrb[0].mxu0
    %v733 = vadd.f32 %v620, %v732
    %v734 = vpop.f32.mrb[0].mxu0
    %735 = vdwg.mxu0
    %736 = vmatprep.subr.mxu0 0.0
    %v737 = vand.u32 %v117, 4294901760
    %738 = vmatpush1.msra.mxu0 %v737
    %739 = vmatprep.subr.mxu0 0.0
    %v740 = vand.u32 %v118, 4294901760
    %741 = vmatpush1.msra.mxu0 %v740
    %742 = vmatprep.subr.mxu0 0.0
    %v743 = vand.u32 %v119, 4294901760
    %744 = vmatpush1.msra.mxu0 %v743
    %745 = vmatprep.subr.mxu0 0.0
    %v746 = vand.u32 %v120, 4294901760
    %747 = vmatpush1.msra.mxu0 %v746
    %748 = vmatprep.subr.mxu0 0.0
    %v749 = vand.u32 %v121, 4294901760
    %750 = vmatpush1.msra.mxu0 %v749
    %751 = vmatprep.subr.mxu0 0.0
    %v752 = vand.u32 %v122, 4294901760
    %753 = vmatpush1.msra.mxu0 %v752
    %754 = vmatprep.subr.mxu0 0.0
    %v755 = vand.u32 %v123, 4294901760
    %756 = vmatpush1.msra.mxu0 %v755
    %757 = vmatprep.subr.mxu0 0.0
    %v758 = vand.u32 %v124, 4294901760
    %759 = vmatpush1.msra.mxu0 %v758
    %760 = vmatprep.subr.mxu0 0.0
    %761 = vmatpush1.msra.mxu0 0.0
    %762 = vmatprep.subr.mxu0 0.0
    %763 = vmatpush1.msra.mxu0 0.0
    %764 = vmatprep.subr.mxu0 0.0
    %765 = vmatpush1.msra.mxu0 0.0
    %766 = vmatprep.subr.mxu0 0.0
    %767 = vmatpush1.msra.mxu0 0.0
    %768 = vmatprep.subr.mxu0 0.0
    %769 = vmatpush1.msra.mxu0 0.0
    %770 = vmatprep.subr.mxu0 0.0
    %771 = vmatpush1.msra.mxu0 0.0
    %772 = vmatprep.subr.mxu0 0.0
    %773 = vmatpush1.msra.mxu0 0.0
    %774 = vmatprep.subr.mxu0 0.0
    %775 = vmatpush1.msra.mxu0 0.0
    %776 = vmatprep.subr.mxu0 0.0
    %777 = vmatpush1.msra.mxu0 0.0
    %778 = vmatprep.subr.mxu0 0.0
    %779 = vmatpush1.msra.mxu0 0.0
    %780 = vmatprep.subr.mxu0 0.0
    %781 = vmatpush1.msra.mxu0 0.0
    %782 = vmatprep.subr.mxu0 0.0
    %783 = vmatpush1.msra.mxu0 0.0
    %784 = vmatprep.subr.mxu0 0.0
    %785 = vmatpush1.msra.mxu0 0.0
    %786 = vmatprep.subr.mxu0 0.0
    %787 = vmatpush1.msra.mxu0 0.0
    %788 = vmatprep.subr.mxu0 0.0
    %789 = vmatpush1.msra.mxu0 0.0
    %790 = vmatprep.subr.mxu0 0.0
    %791 = vmatpush1.msra.mxu0 0.0
    %792 = vmatprep.subr.mxu0 0.0
    %793 = vmatpush1.msra.mxu0 0.0
    %794 = vmatprep.subr.mxu0 0.0
    %795 = vmatpush1.msra.mxu0 0.0
    %796 = vmatprep.subr.mxu0 0.0
    %797 = vmatpush1.msra.mxu0 0.0
    %798 = vmatprep.subr.mxu0 0.0
    %799 = vmatpush1.msra.mxu0 0.0
    %800 = vmatprep.subr.mxu0 0.0
    %801 = vmatpush1.msra.mxu0 0.0
    %802 = vmatprep.subr.mxu0 0.0
    %803 = vmatpush1.msra.mxu0 0.0
    %804 = vmatprep.subr.mxu0 0.0
    %805 = vmatpush1.msra.mxu0 0.0
    %806 = vmatprep.subr.mxu0 0.0
    %807 = vmatpush1.msra.mxu0 0.0
    %808 = vmatprep.mubr.f32.mxu0 0.0
    %v809 = vand.u32 %v156, 4294901760
    %810 = vmatmul.mubr.f32.gmra.mrb[0].mxu0 %v809
    %v811 = vpop.f32.mrb[0].mxu0
    %v812 = vadd.f32 %v715, %v811
    %v813 = vpop.f32.mrb[0].mxu0
    %814 = vmatprep.mubr.f32.mxu0 0.0
    %v815 = vand.u32 %v159, 4294901760
    %816 = vmatmul.mubr.f32.gmra.mrb[0].mxu0 %v815
    %v817 = vpop.f32.mrb[0].mxu0
    %v818 = vadd.f32 %v721, %v817
    %v819 = vpop.f32.mrb[0].mxu0
    %820 = vmatprep.mubr.f32.mxu0 0.0
    %v821 = vand.u32 %v162, 4294901760
    %822 = vmatmul.mubr.f32.gmra.mrb[0].mxu0 %v821
    %v823 = vpop.f32.mrb[0].mxu0
    %v824 = vadd.f32 %v727, %v823
    %v825 = vpop.f32.mrb[0].mxu0
    %826 = vmatprep.mubr.f32.mxu0 0.0
    %v827 = vand.u32 %v165, 4294901760
    %828 = vmatmul.mubr.f32.gmra.mrb[0].mxu0 %v827
    %v829 = vpop.f32.mrb[0].mxu0
    %v830 = vadd.f32 %v733, %v829
    %v831 = vpop.f32.mrb[0].mxu0
    %832 = vdwg.mxu0
    %v834 = vsel %vm154, %v150, 0
    %v837 = vsel %vm154, %v151, 0
    %v840 = vsel %vm154, %v152, 0
    %v843 = vsel %vm154, %v153, 0
    %845 = vmatprep.subr.mxu0 0.0
    %v846 = vand.u32 %v109, 4294901760
    %847 = vmatpush1.msra.mxu0 %v846
    %848 = vmatprep.subr.mxu0 0.0
    %v849 = vand.u32 %v110, 4294901760
    %850 = vmatpush1.msra.mxu0 %v849
    %851 = vmatprep.subr.mxu0 0.0
    %v852 = vand.u32 %v111, 4294901760
    %853 = vmatpush1.msra.mxu0 %v852
    %854 = vmatprep.subr.mxu0 0.0
    %v855 = vand.u32 %v112, 4294901760
    %856 = vmatpush1.msra.mxu0 %v855
    %857 = vmatprep.subr.mxu0 0.0
    %v858 = vand.u32 %v113, 4294901760
    %859 = vmatpush1.msra.mxu0 %v858
    %860 = vmatprep.subr.mxu0 0.0
    %v861 = vand.u32 %v114, 4294901760
    %862 = vmatpush1.msra.mxu0 %v861
    %863 = vmatprep.subr.mxu0 0.0
    %v864 = vand.u32 %v115, 4294901760
    %865 = vmatpush1.msra.mxu0 %v864
    %866 = vmatprep.subr.mxu0 0.0
    %v867 = vand.u32 %v116, 4294901760
    %868 = vmatpush1.msra.mxu0 %v867
    %869 = vmatprep.subr.mxu0 0.0
    %870 = vmatpush1.msra.mxu0 0.0
    %871 = vmatprep.subr.mxu0 0.0
    %872 = vmatpush1.msra.mxu0 0.0
    %873 = vmatprep.subr.mxu0 0.0
    %874 = vmatpush1.msra.mxu0 0.0
    %875 = vmatprep.subr.mxu0 0.0
    %876 = vmatpush1.msra.mxu0 0.0
    %877 = vmatprep.subr.mxu0 0.0
    %878 = vmatpush1.msra.mxu0 0.0
    %879 = vmatprep.subr.mxu0 0.0
    %880 = vmatpush1.msra.mxu0 0.0
    %881 = vmatprep.subr.mxu0 0.0
    %882 = vmatpush1.msra.mxu0 0.0
    %883 = vmatprep.subr.mxu0 0.0
    %884 = vmatpush1.msra.mxu0 0.0
    %885 = vmatprep.subr.mxu0 0.0
    %886 = vmatpush1.msra.mxu0 0.0
    %887 = vmatprep.subr.mxu0 0.0
    %888 = vmatpush1.msra.mxu0 0.0
    %889 = vmatprep.subr.mxu0 0.0
    %890 = vmatpush1.msra.mxu0 0.0
    %891 = vmatprep.subr.mxu0 0.0
    %892 = vmatpush1.msra.mxu0 0.0
    %893 = vmatprep.subr.mxu0 0.0
    %894 = vmatpush1.msra.mxu0 0.0
    %895 = vmatprep.subr.mxu0 0.0
    %896 = vmatpush1.msra.mxu0 0.0
    %897 = vmatprep.subr.mxu0 0.0
    %898 = vmatpush1.msra.mxu0 0.0
    %899 = vmatprep.subr.mxu0 0.0
    %900 = vmatpush1.msra.mxu0 0.0
    %901 = vmatprep.subr.mxu0 0.0
    %902 = vmatpush1.msra.mxu0 0.0
    %903 = vmatprep.subr.mxu0 0.0
    %904 = vmatpush1.msra.mxu0 0.0
    %905 = vmatprep.subr.mxu0 0.0
    %906 = vmatpush1.msra.mxu0 0.0
    %907 = vmatprep.subr.mxu0 0.0
    %908 = vmatpush1.msra.mxu0 0.0
    %909 = vmatprep.subr.mxu0 0.0
    %910 = vmatpush1.msra.mxu0 0.0
    %911 = vmatprep.subr.mxu0 0.0
    %912 = vmatpush1.msra.mxu0 0.0
    %913 = vmatprep.subr.mxu0 0.0
    %914 = vmatpush1.msra.mxu0 0.0
    %915 = vmatprep.subr.mxu0 0.0
    %916 = vmatpush1.msra.mxu0 0.0
    %917 = vmatprep.mubr.f32.mxu0 0.0
    %v918 = vand.u32 %v834, 4294901760
    %v919 = vsub.f32 %v834, %v918
    %v920 = vand.u32 %v919, 4294901760
    %v921 = vsub.f32 %v919, %v920
    %v922 = vand.u32 %v921, 4294901760
    %923 = vmatmul.mubr.f32.gmra.mrb[0].mxu0 %v922
    %v924 = vpop.f32.mrb[0].mxu0
    %v925 = vadd.f32 %v812, %v924
    %v926 = vpop.f32.mrb[0].mxu0
    %927 = vmatprep.mubr.f32.mxu0 0.0
    %v928 = vand.u32 %v837, 4294901760
    %v929 = vsub.f32 %v837, %v928
    %v930 = vand.u32 %v929, 4294901760
    %v931 = vsub.f32 %v929, %v930
    %v932 = vand.u32 %v931, 4294901760
    %933 = vmatmul.mubr.f32.gmra.mrb[0].mxu0 %v932
    %v934 = vpop.f32.mrb[0].mxu0
    %v935 = vadd.f32 %v818, %v934
    %v936 = vpop.f32.mrb[0].mxu0
    %937 = vmatprep.mubr.f32.mxu0 0.0
    %v938 = vand.u32 %v840, 4294901760
    %v939 = vsub.f32 %v840, %v938
    %v940 = vand.u32 %v939, 4294901760
    %v941 = vsub.f32 %v939, %v940
    %v942 = vand.u32 %v941, 4294901760
    %943 = vmatmul.mubr.f32.gmra.mrb[0].mxu0 %v942
    %v944 = vpop.f32.mrb[0].mxu0
    %v945 = vadd.f32 %v824, %v944
    %v946 = vpop.f32.mrb[0].mxu0
    %947 = vmatprep.mubr.f32.mxu0 0.0
    %v948 = vand.u32 %v843, 4294901760
    %v949 = vsub.f32 %v843, %v948
    %v950 = vand.u32 %v949, 4294901760
    %v951 = vsub.f32 %v949, %v950
    %v952 = vand.u32 %v951, 4294901760
    %953 = vmatmul.mubr.f32.gmra.mrb[0].mxu0 %v952
    %v954 = vpop.f32.mrb[0].mxu0
    %v955 = vadd.f32 %v830, %v954
    %v956 = vpop.f32.mrb[0].mxu0
    %957 = vdwg.mxu0
    %958 = vmatprep.subr.mxu0 0.0
    %v959 = vand.u32 %v109, 4294901760
    %v960 = vsub.f32 %v109, %v959
    %v961 = vand.u32 %v960, 4294901760
    %v962 = vsub.f32 %v960, %v961
    %v963 = vand.u32 %v962, 4294901760
    %964 = vmatpush1.msra.mxu0 %v963
    %965 = vmatprep.subr.mxu0 0.0
    %v966 = vand.u32 %v110, 4294901760
    %v967 = vsub.f32 %v110, %v966
    %v968 = vand.u32 %v967, 4294901760
    %v969 = vsub.f32 %v967, %v968
    %v970 = vand.u32 %v969, 4294901760
    %971 = vmatpush1.msra.mxu0 %v970
    %972 = vmatprep.subr.mxu0 0.0
    %v973 = vand.u32 %v111, 4294901760
    %v974 = vsub.f32 %v111, %v973
    %v975 = vand.u32 %v974, 4294901760
    %v976 = vsub.f32 %v974, %v975
    %v977 = vand.u32 %v976, 4294901760
    %978 = vmatpush1.msra.mxu0 %v977
    %979 = vmatprep.subr.mxu0 0.0
    %v980 = vand.u32 %v112, 4294901760
    %v981 = vsub.f32 %v112, %v980
    %v982 = vand.u32 %v981, 4294901760
    %v983 = vsub.f32 %v981, %v982
    %v984 = vand.u32 %v983, 4294901760
    %985 = vmatpush1.msra.mxu0 %v984
    %986 = vmatprep.subr.mxu0 0.0
    %v987 = vand.u32 %v113, 4294901760
    %v988 = vsub.f32 %v113, %v987
    %v989 = vand.u32 %v988, 4294901760
    %v990 = vsub.f32 %v988, %v989
    %v991 = vand.u32 %v990, 4294901760
    %992 = vmatpush1.msra.mxu0 %v991
    %993 = vmatprep.subr.mxu0 0.0
    %v994 = vand.u32 %v114, 4294901760
    %v995 = vsub.f32 %v114, %v994
    %v996 = vand.u32 %v995, 4294901760
    %v997 = vsub.f32 %v995, %v996
    %v998 = vand.u32 %v997, 4294901760
    %999 = vmatpush1.msra.mxu0 %v998
    %1000 = vmatprep.subr.mxu0 0.0
    %v1001 = vand.u32 %v115, 4294901760
    %v1002 = vsub.f32 %v115, %v1001
    %v1003 = vand.u32 %v1002, 4294901760
    %v1004 = vsub.f32 %v1002, %v1003
    %v1005 = vand.u32 %v1004, 4294901760
    %1006 = vmatpush1.msra.mxu0 %v1005
    %1007 = vmatprep.subr.mxu0 0.0
    %v1008 = vand.u32 %v116, 4294901760
    %v1009 = vsub.f32 %v116, %v1008
    %v1010 = vand.u32 %v1009, 4294901760
    %v1011 = vsub.f32 %v1009, %v1010
    %v1012 = vand.u32 %v1011, 4294901760
    %1013 = vmatpush1.msra.mxu0 %v1012
    %1014 = vmatprep.subr.mxu0 0.0
    %1015 = vmatpush1.msra.mxu0 0.0
    %1016 = vmatprep.subr.mxu0 0.0
    %1017 = vmatpush1.msra.mxu0 0.0
    %1018 = vmatprep.subr.mxu0 0.0
    %1019 = vmatpush1.msra.mxu0 0.0
    %1020 = vmatprep.subr.mxu0 0.0
    %1021 = vmatpush1.msra.mxu0 0.0
    %1022 = vmatprep.subr.mxu0 0.0
    %1023 = vmatpush1.msra.mxu0 0.0
    %1024 = vmatprep.subr.mxu0 0.0
    %1025 = vmatpush1.msra.mxu0 0.0
    %1026 = vmatprep.subr.mxu0 0.0
    %1027 = vmatpush1.msra.mxu0 0.0
    %1028 = vmatprep.subr.mxu0 0.0
    %1029 = vmatpush1.msra.mxu0 0.0
    %1030 = vmatprep.subr.mxu0 0.0
    %1031 = vmatpush1.msra.mxu0 0.0
    %1032 = vmatprep.subr.mxu0 0.0
    %1033 = vmatpush1.msra.mxu0 0.0
    %1034 = vmatprep.subr.mxu0 0.0
    %1035 = vmatpush1.msra.mxu0 0.0
    %1036 = vmatprep.subr.mxu0 0.0
    %1037 = vmatpush1.msra.mxu0 0.0
    %1038 = vmatprep.subr.mxu0 0.0
    %1039 = vmatpush1.msra.mxu0 0.0
    %1040 = vmatprep.subr.mxu0 0.0
    %1041 = vmatpush1.msra.mxu0 0.0
    %1042 = vmatprep.subr.mxu0 0.0
    %1043 = vmatpush1.msra.mxu0 0.0
    %1044 = vmatprep.subr.mxu0 0.0
    %1045 = vmatpush1.msra.mxu0 0.0
    %1046 = vmatprep.subr.mxu0 0.0
    %1047 = vmatpush1.msra.mxu0 0.0
    %1048 = vmatprep.subr.mxu0 0.0
    %1049 = vmatpush1.msra.mxu0 0.0
    %1050 = vmatprep.subr.mxu0 0.0
    %1051 = vmatpush1.msra.mxu0 0.0
    %1052 = vmatprep.subr.mxu0 0.0
    %1053 = vmatpush1.msra.mxu0 0.0
    %1054 = vmatprep.subr.mxu0 0.0
    %1055 = vmatpush1.msra.mxu0 0.0
    %1056 = vmatprep.subr.mxu0 0.0
    %1057 = vmatpush1.msra.mxu0 0.0
    %1058 = vmatprep.subr.mxu0 0.0
    %1059 = vmatpush1.msra.mxu0 0.0
    %1060 = vmatprep.subr.mxu0 0.0
    %1061 = vmatpush1.msra.mxu0 0.0
    %1062 = vmatprep.mubr.f32.mxu0 0.0
    %v1063 = vand.u32 %v834, 4294901760
    %1064 = vmatmul.mubr.f32.gmra.mrb[0].mxu0 %v1063
    %v1065 = vpop.f32.mrb[0].mxu0
    %v1066 = vadd.f32 %v925, %v1065
    %v1067 = vpop.f32.mrb[0].mxu0
    %1068 = vmatprep.mubr.f32.mxu0 0.0
    %v1069 = vand.u32 %v837, 4294901760
    %1070 = vmatmul.mubr.f32.gmra.mrb[0].mxu0 %v1069
    %v1071 = vpop.f32.mrb[0].mxu0
    %v1072 = vadd.f32 %v935, %v1071
    %v1073 = vpop.f32.mrb[0].mxu0
    %1074 = vmatprep.mubr.f32.mxu0 0.0
    %v1075 = vand.u32 %v840, 4294901760
    %1076 = vmatmul.mubr.f32.gmra.mrb[0].mxu0 %v1075
    %v1077 = vpop.f32.mrb[0].mxu0
    %v1078 = vadd.f32 %v945, %v1077
    %v1079 = vpop.f32.mrb[0].mxu0
    %1080 = vmatprep.mubr.f32.mxu0 0.0
    %v1081 = vand.u32 %v843, 4294901760
    %1082 = vmatmul.mubr.f32.gmra.mrb[0].mxu0 %v1081
    %v1083 = vpop.f32.mrb[0].mxu0
    %v1084 = vadd.f32 %v955, %v1083
    %v1085 = vpop.f32.mrb[0].mxu0
    %1086 = vdwg.mxu0
    %1087 = vmatprep.subr.mxu0 0.0
    %v1088 = vand.u32 %v109, 4294901760
    %v1089 = vsub.f32 %v109, %v1088
    %1090 = vmatpush1.msra.mxu0 %v1089
    %1091 = vmatprep.subr.mxu0 0.0
    %v1092 = vand.u32 %v110, 4294901760
    %v1093 = vsub.f32 %v110, %v1092
    %1094 = vmatpush1.msra.mxu0 %v1093
    %1095 = vmatprep.subr.mxu0 0.0
    %v1096 = vand.u32 %v111, 4294901760
    %v1097 = vsub.f32 %v111, %v1096
    %1098 = vmatpush1.msra.mxu0 %v1097
    %1099 = vmatprep.subr.mxu0 0.0
    %v1100 = vand.u32 %v112, 4294901760
    %v1101 = vsub.f32 %v112, %v1100
    %1102 = vmatpush1.msra.mxu0 %v1101
    %1103 = vmatprep.subr.mxu0 0.0
    %v1104 = vand.u32 %v113, 4294901760
    %v1105 = vsub.f32 %v113, %v1104
    %1106 = vmatpush1.msra.mxu0 %v1105
    %1107 = vmatprep.subr.mxu0 0.0
    %v1108 = vand.u32 %v114, 4294901760
    %v1109 = vsub.f32 %v114, %v1108
    %1110 = vmatpush1.msra.mxu0 %v1109
    %1111 = vmatprep.subr.mxu0 0.0
    %v1112 = vand.u32 %v115, 4294901760
    %v1113 = vsub.f32 %v115, %v1112
    %1114 = vmatpush1.msra.mxu0 %v1113
    %1115 = vmatprep.subr.mxu0 0.0
    %v1116 = vand.u32 %v116, 4294901760
    %v1117 = vsub.f32 %v116, %v1116
    %1118 = vmatpush1.msra.mxu0 %v1117
    %1119 = vmatprep.subr.mxu0 0.0
    %1120 = vmatpush1.msra.mxu0 0.0
    %1121 = vmatprep.subr.mxu0 0.0
    %1122 = vmatpush1.msra.mxu0 0.0
    %1123 = vmatprep.subr.mxu0 0.0
    %1124 = vmatpush1.msra.mxu0 0.0
    %1125 = vmatprep.subr.mxu0 0.0
    %1126 = vmatpush1.msra.mxu0 0.0
    %1127 = vmatprep.subr.mxu0 0.0
    %1128 = vmatpush1.msra.mxu0 0.0
    %1129 = vmatprep.subr.mxu0 0.0
    %1130 = vmatpush1.msra.mxu0 0.0
    %1131 = vmatprep.subr.mxu0 0.0
    %1132 = vmatpush1.msra.mxu0 0.0
    %1133 = vmatprep.subr.mxu0 0.0
    %1134 = vmatpush1.msra.mxu0 0.0
    %1135 = vmatprep.subr.mxu0 0.0
    %1136 = vmatpush1.msra.mxu0 0.0
    %1137 = vmatprep.subr.mxu0 0.0
    %1138 = vmatpush1.msra.mxu0 0.0
    %1139 = vmatprep.subr.mxu0 0.0
    %1140 = vmatpush1.msra.mxu0 0.0
    %1141 = vmatprep.subr.mxu0 0.0
    %1142 = vmatpush1.msra.mxu0 0.0
    %1143 = vmatprep.subr.mxu0 0.0
    %1144 = vmatpush1.msra.mxu0 0.0
    %1145 = vmatprep.subr.mxu0 0.0
    %1146 = vmatpush1.msra.mxu0 0.0
    %1147 = vmatprep.subr.mxu0 0.0
    %1148 = vmatpush1.msra.mxu0 0.0
    %1149 = vmatprep.subr.mxu0 0.0
    %1150 = vmatpush1.msra.mxu0 0.0
    %1151 = vmatprep.subr.mxu0 0.0
    %1152 = vmatpush1.msra.mxu0 0.0
    %1153 = vmatprep.subr.mxu0 0.0
    %1154 = vmatpush1.msra.mxu0 0.0
    %1155 = vmatprep.subr.mxu0 0.0
    %1156 = vmatpush1.msra.mxu0 0.0
    %1157 = vmatprep.subr.mxu0 0.0
    %1158 = vmatpush1.msra.mxu0 0.0
    %1159 = vmatprep.subr.mxu0 0.0
    %1160 = vmatpush1.msra.mxu0 0.0
    %1161 = vmatprep.subr.mxu0 0.0
    %1162 = vmatpush1.msra.mxu0 0.0
    %1163 = vmatprep.subr.mxu0 0.0
    %1164 = vmatpush1.msra.mxu0 0.0
    %1165 = vmatprep.subr.mxu0 0.0
    %1166 = vmatpush1.msra.mxu0 0.0
    %1167 = vmatprep.mubr.f32.mxu0 0.0
    %v1168 = vand.u32 %v834, 4294901760
    %v1169 = vsub.f32 %v834, %v1168
    %1170 = vmatmul.mubr.f32.gmra.mrb[0].mxu0 %v1169
    %v1171 = vpop.f32.mrb[0].mxu0
    %v1172 = vadd.f32 %v1066, %v1171
    %v1173 = vpop.f32.mrb[0].mxu0
    %1174 = vmatprep.mubr.f32.mxu0 0.0
    %v1175 = vand.u32 %v837, 4294901760
    %v1176 = vsub.f32 %v837, %v1175
    %1177 = vmatmul.mubr.f32.gmra.mrb[0].mxu0 %v1176
    %v1178 = vpop.f32.mrb[0].mxu0
    %v1179 = vadd.f32 %v1072, %v1178
    %v1180 = vpop.f32.mrb[0].mxu0
    %1181 = vmatprep.mubr.f32.mxu0 0.0
    %v1182 = vand.u32 %v840, 4294901760
    %v1183 = vsub.f32 %v840, %v1182
    %1184 = vmatmul.mubr.f32.gmra.mrb[0].mxu0 %v1183
    %v1185 = vpop.f32.mrb[0].mxu0
    %v1186 = vadd.f32 %v1078, %v1185
    %v1187 = vpop.f32.mrb[0].mxu0
    %1188 = vmatprep.mubr.f32.mxu0 0.0
    %v1189 = vand.u32 %v843, 4294901760
    %v1190 = vsub.f32 %v843, %v1189
    %1191 = vmatmul.mubr.f32.gmra.mrb[0].mxu0 %v1190
    %v1192 = vpop.f32.mrb[0].mxu0
    %v1193 = vadd.f32 %v1084, %v1192
    %v1194 = vpop.f32.mrb[0].mxu0
    %1195 = vdwg.mxu0
    %1196 = vmatprep.subr.mxu0 0.0
    %v1197 = vand.u32 %v109, 4294901760
    %1198 = vmatpush1.msra.mxu0 %v1197
    %1199 = vmatprep.subr.mxu0 0.0
    %v1200 = vand.u32 %v110, 4294901760
    %1201 = vmatpush1.msra.mxu0 %v1200
    %1202 = vmatprep.subr.mxu0 0.0
    %v1203 = vand.u32 %v111, 4294901760
    %1204 = vmatpush1.msra.mxu0 %v1203
    %1205 = vmatprep.subr.mxu0 0.0
    %v1206 = vand.u32 %v112, 4294901760
    %1207 = vmatpush1.msra.mxu0 %v1206
    %1208 = vmatprep.subr.mxu0 0.0
    %v1209 = vand.u32 %v113, 4294901760
    %1210 = vmatpush1.msra.mxu0 %v1209
    %1211 = vmatprep.subr.mxu0 0.0
    %v1212 = vand.u32 %v114, 4294901760
    %1213 = vmatpush1.msra.mxu0 %v1212
    %1214 = vmatprep.subr.mxu0 0.0
    %v1215 = vand.u32 %v115, 4294901760
    %1216 = vmatpush1.msra.mxu0 %v1215
    %1217 = vmatprep.subr.mxu0 0.0
    %v1218 = vand.u32 %v116, 4294901760
    %1219 = vmatpush1.msra.mxu0 %v1218
    %1220 = vmatprep.subr.mxu0 0.0
    %1221 = vmatpush1.msra.mxu0 0.0
    %1222 = vmatprep.subr.mxu0 0.0
    %1223 = vmatpush1.msra.mxu0 0.0
    %1224 = vmatprep.subr.mxu0 0.0
    %1225 = vmatpush1.msra.mxu0 0.0
    %1226 = vmatprep.subr.mxu0 0.0
    %1227 = vmatpush1.msra.mxu0 0.0
    %1228 = vmatprep.subr.mxu0 0.0
    %1229 = vmatpush1.msra.mxu0 0.0
    %1230 = vmatprep.subr.mxu0 0.0
    %1231 = vmatpush1.msra.mxu0 0.0
    %1232 = vmatprep.subr.mxu0 0.0
    %1233 = vmatpush1.msra.mxu0 0.0
    %1234 = vmatprep.subr.mxu0 0.0
    %1235 = vmatpush1.msra.mxu0 0.0
    %1236 = vmatprep.subr.mxu0 0.0
    %1237 = vmatpush1.msra.mxu0 0.0
    %1238 = vmatprep.subr.mxu0 0.0
    %1239 = vmatpush1.msra.mxu0 0.0
    %1240 = vmatprep.subr.mxu0 0.0
    %1241 = vmatpush1.msra.mxu0 0.0
    %1242 = vmatprep.subr.mxu0 0.0
    %1243 = vmatpush1.msra.mxu0 0.0
    %1244 = vmatprep.subr.mxu0 0.0
    %1245 = vmatpush1.msra.mxu0 0.0
    %1246 = vmatprep.subr.mxu0 0.0
    %1247 = vmatpush1.msra.mxu0 0.0
    %1248 = vmatprep.subr.mxu0 0.0
    %1249 = vmatpush1.msra.mxu0 0.0
    %1250 = vmatprep.subr.mxu0 0.0
    %1251 = vmatpush1.msra.mxu0 0.0
    %1252 = vmatprep.subr.mxu0 0.0
    %1253 = vmatpush1.msra.mxu0 0.0
    %1254 = vmatprep.subr.mxu0 0.0
    %1255 = vmatpush1.msra.mxu0 0.0
    %1256 = vmatprep.subr.mxu0 0.0
    %1257 = vmatpush1.msra.mxu0 0.0
    %1258 = vmatprep.subr.mxu0 0.0
    %1259 = vmatpush1.msra.mxu0 0.0
    %1260 = vmatprep.subr.mxu0 0.0
    %1261 = vmatpush1.msra.mxu0 0.0
    %1262 = vmatprep.subr.mxu0 0.0
    %1263 = vmatpush1.msra.mxu0 0.0
    %1264 = vmatprep.subr.mxu0 0.0
    %1265 = vmatpush1.msra.mxu0 0.0
    %1266 = vmatprep.subr.mxu0 0.0
    %1267 = vmatpush1.msra.mxu0 0.0
    %1268 = vmatprep.mubr.f32.mxu0 0.0
    %v1269 = vand.u32 %v834, 4294901760
    %v1270 = vsub.f32 %v834, %v1269
    %v1271 = vand.u32 %v1270, 4294901760
    %1272 = vmatmul.mubr.f32.gmra.mrb[0].mxu0 %v1271
    %v1273 = vpop.f32.mrb[0].mxu0
    %v1274 = vadd.f32 %v1172, %v1273
    %v1275 = vpop.f32.mrb[0].mxu0
    %1276 = vmatprep.mubr.f32.mxu0 0.0
    %v1277 = vand.u32 %v837, 4294901760
    %v1278 = vsub.f32 %v837, %v1277
    %v1279 = vand.u32 %v1278, 4294901760
    %1280 = vmatmul.mubr.f32.gmra.mrb[0].mxu0 %v1279
    %v1281 = vpop.f32.mrb[0].mxu0
    %v1282 = vadd.f32 %v1179, %v1281
    %v1283 = vpop.f32.mrb[0].mxu0
    %1284 = vmatprep.mubr.f32.mxu0 0.0
    %v1285 = vand.u32 %v840, 4294901760
    %v1286 = vsub.f32 %v840, %v1285
    %v1287 = vand.u32 %v1286, 4294901760
    %1288 = vmatmul.mubr.f32.gmra.mrb[0].mxu0 %v1287
    %v1289 = vpop.f32.mrb[0].mxu0
    %v1290 = vadd.f32 %v1186, %v1289
    %v1291 = vpop.f32.mrb[0].mxu0
    %1292 = vmatprep.mubr.f32.mxu0 0.0
    %v1293 = vand.u32 %v843, 4294901760
    %v1294 = vsub.f32 %v843, %v1293
    %v1295 = vand.u32 %v1294, 4294901760
    %1296 = vmatmul.mubr.f32.gmra.mrb[0].mxu0 %v1295
    %v1297 = vpop.f32.mrb[0].mxu0
    %v1298 = vadd.f32 %v1193, %v1297
    %v1299 = vpop.f32.mrb[0].mxu0
    %1300 = vdwg.mxu0
    %1301 = vmatprep.subr.mxu0 0.0
    %v1302 = vand.u32 %v109, 4294901760
    %v1303 = vsub.f32 %v109, %v1302
    %v1304 = vand.u32 %v1303, 4294901760
    %1305 = vmatpush1.msra.mxu0 %v1304
    %1306 = vmatprep.subr.mxu0 0.0
    %v1307 = vand.u32 %v110, 4294901760
    %v1308 = vsub.f32 %v110, %v1307
    %v1309 = vand.u32 %v1308, 4294901760
    %1310 = vmatpush1.msra.mxu0 %v1309
    %1311 = vmatprep.subr.mxu0 0.0
    %v1312 = vand.u32 %v111, 4294901760
    %v1313 = vsub.f32 %v111, %v1312
    %v1314 = vand.u32 %v1313, 4294901760
    %1315 = vmatpush1.msra.mxu0 %v1314
    %1316 = vmatprep.subr.mxu0 0.0
    %v1317 = vand.u32 %v112, 4294901760
    %v1318 = vsub.f32 %v112, %v1317
    %v1319 = vand.u32 %v1318, 4294901760
    %1320 = vmatpush1.msra.mxu0 %v1319
    %1321 = vmatprep.subr.mxu0 0.0
    %v1322 = vand.u32 %v113, 4294901760
    %v1323 = vsub.f32 %v113, %v1322
    %v1324 = vand.u32 %v1323, 4294901760
    %1325 = vmatpush1.msra.mxu0 %v1324
    %1326 = vmatprep.subr.mxu0 0.0
    %v1327 = vand.u32 %v114, 4294901760
    %v1328 = vsub.f32 %v114, %v1327
    %v1329 = vand.u32 %v1328, 4294901760
    %1330 = vmatpush1.msra.mxu0 %v1329
    %1331 = vmatprep.subr.mxu0 0.0
    %v1332 = vand.u32 %v115, 4294901760
    %v1333 = vsub.f32 %v115, %v1332
    %v1334 = vand.u32 %v1333, 4294901760
    %1335 = vmatpush1.msra.mxu0 %v1334
    %1336 = vmatprep.subr.mxu0 0.0
    %v1337 = vand.u32 %v116, 4294901760
    %v1338 = vsub.f32 %v116, %v1337
    %v1339 = vand.u32 %v1338, 4294901760
    %1340 = vmatpush1.msra.mxu0 %v1339
    %1341 = vmatprep.subr.mxu0 0.0
    %1342 = vmatpush1.msra.mxu0 0.0
    %1343 = vmatprep.subr.mxu0 0.0
    %1344 = vmatpush1.msra.mxu0 0.0
    %1345 = vmatprep.subr.mxu0 0.0
    %1346 = vmatpush1.msra.mxu0 0.0
    %1347 = vmatprep.subr.mxu0 0.0
    %1348 = vmatpush1.msra.mxu0 0.0
    %1349 = vmatprep.subr.mxu0 0.0
    %1350 = vmatpush1.msra.mxu0 0.0
    %1351 = vmatprep.subr.mxu0 0.0
    %1352 = vmatpush1.msra.mxu0 0.0
    %1353 = vmatprep.subr.mxu0 0.0
    %1354 = vmatpush1.msra.mxu0 0.0
    %1355 = vmatprep.subr.mxu0 0.0
    %1356 = vmatpush1.msra.mxu0 0.0
    %1357 = vmatprep.subr.mxu0 0.0
    %1358 = vmatpush1.msra.mxu0 0.0
    %1359 = vmatprep.subr.mxu0 0.0
    %1360 = vmatpush1.msra.mxu0 0.0
    %1361 = vmatprep.subr.mxu0 0.0
    %1362 = vmatpush1.msra.mxu0 0.0
    %1363 = vmatprep.subr.mxu0 0.0
    %1364 = vmatpush1.msra.mxu0 0.0
    %1365 = vmatprep.subr.mxu0 0.0
    %1366 = vmatpush1.msra.mxu0 0.0
    %1367 = vmatprep.subr.mxu0 0.0
    %1368 = vmatpush1.msra.mxu0 0.0
    %1369 = vmatprep.subr.mxu0 0.0
    %1370 = vmatpush1.msra.mxu0 0.0
    %1371 = vmatprep.subr.mxu0 0.0
    %1372 = vmatpush1.msra.mxu0 0.0
    %1373 = vmatprep.subr.mxu0 0.0
    %1374 = vmatpush1.msra.mxu0 0.0
    %1375 = vmatprep.subr.mxu0 0.0
    %1376 = vmatpush1.msra.mxu0 0.0
    %1377 = vmatprep.subr.mxu0 0.0
    %1378 = vmatpush1.msra.mxu0 0.0
    %1379 = vmatprep.subr.mxu0 0.0
    %1380 = vmatpush1.msra.mxu0 0.0
    %1381 = vmatprep.subr.mxu0 0.0
    %1382 = vmatpush1.msra.mxu0 0.0
    %1383 = vmatprep.subr.mxu0 0.0
    %1384 = vmatpush1.msra.mxu0 0.0
    %1385 = vmatprep.subr.mxu0 0.0
    %1386 = vmatpush1.msra.mxu0 0.0
    %1387 = vmatprep.subr.mxu0 0.0
    %1388 = vmatpush1.msra.mxu0 0.0
    %1389 = vmatprep.mubr.f32.mxu0 0.0
    %v1390 = vand.u32 %v834, 4294901760
    %1391 = vmatmul.mubr.f32.gmra.mrb[0].mxu0 %v1390
    %v1392 = vpop.f32.mrb[0].mxu0
    %v1393 = vadd.f32 %v1274, %v1392
    %v1394 = vpop.f32.mrb[0].mxu0
    %1395 = vmatprep.mubr.f32.mxu0 0.0
    %v1396 = vand.u32 %v837, 4294901760
    %1397 = vmatmul.mubr.f32.gmra.mrb[0].mxu0 %v1396
    %v1398 = vpop.f32.mrb[0].mxu0
    %v1399 = vadd.f32 %v1282, %v1398
    %v1400 = vpop.f32.mrb[0].mxu0
    %1401 = vmatprep.mubr.f32.mxu0 0.0
    %v1402 = vand.u32 %v840, 4294901760
    %1403 = vmatmul.mubr.f32.gmra.mrb[0].mxu0 %v1402
    %v1404 = vpop.f32.mrb[0].mxu0
    %v1405 = vadd.f32 %v1290, %v1404
    %v1406 = vpop.f32.mrb[0].mxu0
    %1407 = vmatprep.mubr.f32.mxu0 0.0
    %v1408 = vand.u32 %v843, 4294901760
    %1409 = vmatmul.mubr.f32.gmra.mrb[0].mxu0 %v1408
    %v1410 = vpop.f32.mrb[0].mxu0
    %v1411 = vadd.f32 %v1298, %v1410
    %v1412 = vpop.f32.mrb[0].mxu0
    %1413 = vdwg.mxu0
    %1414 = vmatprep.subr.mxu0 0.0
    %v1415 = vand.u32 %v109, 4294901760
    %1416 = vmatpush1.msra.mxu0 %v1415
    %1417 = vmatprep.subr.mxu0 0.0
    %v1418 = vand.u32 %v110, 4294901760
    %1419 = vmatpush1.msra.mxu0 %v1418
    %1420 = vmatprep.subr.mxu0 0.0
    %v1421 = vand.u32 %v111, 4294901760
    %1422 = vmatpush1.msra.mxu0 %v1421
    %1423 = vmatprep.subr.mxu0 0.0
    %v1424 = vand.u32 %v112, 4294901760
    %1425 = vmatpush1.msra.mxu0 %v1424
    %1426 = vmatprep.subr.mxu0 0.0
    %v1427 = vand.u32 %v113, 4294901760
    %1428 = vmatpush1.msra.mxu0 %v1427
    %1429 = vmatprep.subr.mxu0 0.0
    %v1430 = vand.u32 %v114, 4294901760
    %1431 = vmatpush1.msra.mxu0 %v1430
    %1432 = vmatprep.subr.mxu0 0.0
    %v1433 = vand.u32 %v115, 4294901760
    %1434 = vmatpush1.msra.mxu0 %v1433
    %1435 = vmatprep.subr.mxu0 0.0
    %v1436 = vand.u32 %v116, 4294901760
    %1437 = vmatpush1.msra.mxu0 %v1436
    %1438 = vmatprep.subr.mxu0 0.0
    %1439 = vmatpush1.msra.mxu0 0.0
    %1440 = vmatprep.subr.mxu0 0.0
    %1441 = vmatpush1.msra.mxu0 0.0
    %1442 = vmatprep.subr.mxu0 0.0
    %1443 = vmatpush1.msra.mxu0 0.0
    %1444 = vmatprep.subr.mxu0 0.0
    %1445 = vmatpush1.msra.mxu0 0.0
    %1446 = vmatprep.subr.mxu0 0.0
    %1447 = vmatpush1.msra.mxu0 0.0
    %1448 = vmatprep.subr.mxu0 0.0
    %1449 = vmatpush1.msra.mxu0 0.0
    %1450 = vmatprep.subr.mxu0 0.0
    %1451 = vmatpush1.msra.mxu0 0.0
    %1452 = vmatprep.subr.mxu0 0.0
    %1453 = vmatpush1.msra.mxu0 0.0
    %1454 = vmatprep.subr.mxu0 0.0
    %1455 = vmatpush1.msra.mxu0 0.0
    %1456 = vmatprep.subr.mxu0 0.0
    %1457 = vmatpush1.msra.mxu0 0.0
    %1458 = vmatprep.subr.mxu0 0.0
    %1459 = vmatpush1.msra.mxu0 0.0
    %1460 = vmatprep.subr.mxu0 0.0
    %1461 = vmatpush1.msra.mxu0 0.0
    %1462 = vmatprep.subr.mxu0 0.0
    %1463 = vmatpush1.msra.mxu0 0.0
    %1464 = vmatprep.subr.mxu0 0.0
    %1465 = vmatpush1.msra.mxu0 0.0
    %1466 = vmatprep.subr.mxu0 0.0
    %1467 = vmatpush1.msra.mxu0 0.0
    %1468 = vmatprep.subr.mxu0 0.0
    %1469 = vmatpush1.msra.mxu0 0.0
    %1470 = vmatprep.subr.mxu0 0.0
    %1471 = vmatpush1.msra.mxu0 0.0
    %1472 = vmatprep.subr.mxu0 0.0
    %1473 = vmatpush1.msra.mxu0 0.0
    %1474 = vmatprep.subr.mxu0 0.0
    %1475 = vmatpush1.msra.mxu0 0.0
    %1476 = vmatprep.subr.mxu0 0.0
    %1477 = vmatpush1.msra.mxu0 0.0
    %1478 = vmatprep.subr.mxu0 0.0
    %1479 = vmatpush1.msra.mxu0 0.0
    %1480 = vmatprep.subr.mxu0 0.0
    %1481 = vmatpush1.msra.mxu0 0.0
    %1482 = vmatprep.subr.mxu0 0.0
    %1483 = vmatpush1.msra.mxu0 0.0
    %1484 = vmatprep.subr.mxu0 0.0
    %1485 = vmatpush1.msra.mxu0 0.0
    %1486 = vmatprep.mubr.f32.mxu0 0.0
    %v1487 = vand.u32 %v834, 4294901760
    %1488 = vmatmul.mubr.f32.gmra.mrb[0].mxu0 %v1487
    %v1489 = vpop.f32.mrb[0].mxu0
    %v1490 = vadd.f32 %v1393, %v1489
    %v1491 = vpop.f32.mrb[0].mxu0
    %1492 = vmatprep.mubr.f32.mxu0 0.0
    %v1493 = vand.u32 %v837, 4294901760
    %1494 = vmatmul.mubr.f32.gmra.mrb[0].mxu0 %v1493
    %v1495 = vpop.f32.mrb[0].mxu0
    %v1496 = vadd.f32 %v1399, %v1495
    %v1497 = vpop.f32.mrb[0].mxu0
    %1498 = vmatprep.mubr.f32.mxu0 0.0
    %v1499 = vand.u32 %v840, 4294901760
    %1500 = vmatmul.mubr.f32.gmra.mrb[0].mxu0 %v1499
    %v1501 = vpop.f32.mrb[0].mxu0
    %v1502 = vadd.f32 %v1405, %v1501
    %v1503 = vpop.f32.mrb[0].mxu0
    %1504 = vmatprep.mubr.f32.mxu0 0.0
    %v1505 = vand.u32 %v843, 4294901760
    %1506 = vmatmul.mubr.f32.gmra.mrb[0].mxu0 %v1505
    %v1507 = vpop.f32.mrb[0].mxu0
    %v1508 = vadd.f32 %v1411, %v1507
    %v1509 = vpop.f32.mrb[0].mxu0
    %1510 = vdwg.mxu0
    %v1511 = vrot.slane %v105, 1
    %v1512 = vrot.slane %v106, 1
    %v1513 = vrot.slane %v107, 1
    %v1514 = vrot.slane %v108, 1
    %vm1515 = vcmp.lt.s32.totalorder %v45, 7
    %v1516 = vsel %vm1515, %v1513, %v1514
    %v1517 = vsel %vm1515, %v1512, %v1513
    %v1518 = vsel %vm1515, %v1511, %v1512
    %v1519 = vsel %vm1515, %v1514, %v1511
    %v1520 = vsel %vm101, 1, 0
    %v1521 = vsel %vm102, 1, 0
    %v1522 = vsel %vm103, 1, 0
    %v1523 = vsel %vm104, 1, 0
    %vm1524 = vcmp.eq.s32.totalorder %v1520, 1
    %vm1525 = vcmp.eq.s32.totalorder %v1521, 1
    %vm1526 = vcmp.eq.s32.totalorder %v1522, 1
    %vm1527 = vcmp.eq.s32.totalorder %v1523, 1
    %v1528 = vsel %vm1524, %v1518, 0.0
    %v1529 = vsel %vm1525, %v1517, 0.0
    %v1530 = vsel %vm1526, %v1516, 0.0
    %v1531 = vsel %vm1527, %v1519, 0.0
    %v1533 = vsel %vm154, %v1528, 0
    %v1536 = vsel %vm154, %v1529, 0
    %v1539 = vsel %vm154, %v1530, 0
    %v1542 = vsel %vm154, %v1531, 0
    %1544 = vmatprep.subr.mxu0 0.0
    %v1545 = vand.u32 %v125, 4294901760
    %1546 = vmatpush1.msra.mxu0 %v1545
    %1547 = vmatprep.subr.mxu0 0.0
    %v1548 = vand.u32 %v126, 4294901760
    %1549 = vmatpush1.msra.mxu0 %v1548
    %1550 = vmatprep.subr.mxu0 0.0
    %v1551 = vand.u32 %v127, 4294901760
    %1552 = vmatpush1.msra.mxu0 %v1551
    %1553 = vmatprep.subr.mxu0 0.0
    %v1554 = vand.u32 %v128, 4294901760
    %1555 = vmatpush1.msra.mxu0 %v1554
    %1556 = vmatprep.subr.mxu0 0.0
    %v1557 = vand.u32 %v129, 4294901760
    %1558 = vmatpush1.msra.mxu0 %v1557
    %1559 = vmatprep.subr.mxu0 0.0
    %v1560 = vand.u32 %v130, 4294901760
    %1561 = vmatpush1.msra.mxu0 %v1560
    %1562 = vmatprep.subr.mxu0 0.0
    %v1563 = vand.u32 %v131, 4294901760
    %1564 = vmatpush1.msra.mxu0 %v1563
    %1565 = vmatprep.subr.mxu0 0.0
    %v1566 = vand.u32 %v132, 4294901760
    %1567 = vmatpush1.msra.mxu0 %v1566
    %1568 = vmatprep.subr.mxu0 0.0
    %1569 = vmatpush1.msra.mxu0 0.0
    %1570 = vmatprep.subr.mxu0 0.0
    %1571 = vmatpush1.msra.mxu0 0.0
    %1572 = vmatprep.subr.mxu0 0.0
    %1573 = vmatpush1.msra.mxu0 0.0
    %1574 = vmatprep.subr.mxu0 0.0
    %1575 = vmatpush1.msra.mxu0 0.0
    %1576 = vmatprep.subr.mxu0 0.0
    %1577 = vmatpush1.msra.mxu0 0.0
    %1578 = vmatprep.subr.mxu0 0.0
    %1579 = vmatpush1.msra.mxu0 0.0
    %1580 = vmatprep.subr.mxu0 0.0
    %1581 = vmatpush1.msra.mxu0 0.0
    %1582 = vmatprep.subr.mxu0 0.0
    %1583 = vmatpush1.msra.mxu0 0.0
    %1584 = vmatprep.subr.mxu0 0.0
    %1585 = vmatpush1.msra.mxu0 0.0
    %1586 = vmatprep.subr.mxu0 0.0
    %1587 = vmatpush1.msra.mxu0 0.0
    %1588 = vmatprep.subr.mxu0 0.0
    %1589 = vmatpush1.msra.mxu0 0.0
    %1590 = vmatprep.subr.mxu0 0.0
    %1591 = vmatpush1.msra.mxu0 0.0
    %1592 = vmatprep.subr.mxu0 0.0
    %1593 = vmatpush1.msra.mxu0 0.0
    %1594 = vmatprep.subr.mxu0 0.0
    %1595 = vmatpush1.msra.mxu0 0.0
    %1596 = vmatprep.subr.mxu0 0.0
    %1597 = vmatpush1.msra.mxu0 0.0
    %1598 = vmatprep.subr.mxu0 0.0
    %1599 = vmatpush1.msra.mxu0 0.0
    %1600 = vmatprep.subr.mxu0 0.0
    %1601 = vmatpush1.msra.mxu0 0.0
    %1602 = vmatprep.subr.mxu0 0.0
    %1603 = vmatpush1.msra.mxu0 0.0
    %1604 = vmatprep.subr.mxu0 0.0
    %1605 = vmatpush1.msra.mxu0 0.0
    %1606 = vmatprep.subr.mxu0 0.0
    %1607 = vmatpush1.msra.mxu0 0.0
    %1608 = vmatprep.subr.mxu0 0.0
    %1609 = vmatpush1.msra.mxu0 0.0
    %1610 = vmatprep.subr.mxu0 0.0
    %1611 = vmatpush1.msra.mxu0 0.0
    %1612 = vmatprep.subr.mxu0 0.0
    %1613 = vmatpush1.msra.mxu0 0.0
    %1614 = vmatprep.subr.mxu0 0.0
    %1615 = vmatpush1.msra.mxu0 0.0
    %1616 = vmatprep.mubr.f32.mxu0 0.0
    %v1617 = vand.u32 %v1533, 4294901760
    %v1618 = vsub.f32 %v1533, %v1617
    %v1619 = vand.u32 %v1618, 4294901760
    %v1620 = vsub.f32 %v1618, %v1619
    %v1621 = vand.u32 %v1620, 4294901760
    %1622 = vmatmul.mubr.f32.gmra.mrb[0].mxu0 %v1621
    %v1623 = vpop.f32.mrb[0].mxu0
    %v1624 = vadd.f32 0.0, %v1623
    %v1625 = vpop.f32.mrb[0].mxu0
    %1626 = vmatprep.mubr.f32.mxu0 0.0
    %v1627 = vand.u32 %v1536, 4294901760
    %v1628 = vsub.f32 %v1536, %v1627
    %v1629 = vand.u32 %v1628, 4294901760
    %v1630 = vsub.f32 %v1628, %v1629
    %v1631 = vand.u32 %v1630, 4294901760
    %1632 = vmatmul.mubr.f32.gmra.mrb[0].mxu0 %v1631
    %v1633 = vpop.f32.mrb[0].mxu0
    %v1634 = vadd.f32 0.0, %v1633
    %v1635 = vpop.f32.mrb[0].mxu0
    %1636 = vmatprep.mubr.f32.mxu0 0.0
    %v1637 = vand.u32 %v1539, 4294901760
    %v1638 = vsub.f32 %v1539, %v1637
    %v1639 = vand.u32 %v1638, 4294901760
    %v1640 = vsub.f32 %v1638, %v1639
    %v1641 = vand.u32 %v1640, 4294901760
    %1642 = vmatmul.mubr.f32.gmra.mrb[0].mxu0 %v1641
    %v1643 = vpop.f32.mrb[0].mxu0
    %v1644 = vadd.f32 0.0, %v1643
    %v1645 = vpop.f32.mrb[0].mxu0
    %1646 = vmatprep.mubr.f32.mxu0 0.0
    %v1647 = vand.u32 %v1542, 4294901760
    %v1648 = vsub.f32 %v1542, %v1647
    %v1649 = vand.u32 %v1648, 4294901760
    %v1650 = vsub.f32 %v1648, %v1649
    %v1651 = vand.u32 %v1650, 4294901760
    %1652 = vmatmul.mubr.f32.gmra.mrb[0].mxu0 %v1651
    %v1653 = vpop.f32.mrb[0].mxu0
    %v1654 = vadd.f32 0.0, %v1653
    %v1655 = vpop.f32.mrb[0].mxu0
    %1656 = vdwg.mxu0
    %1657 = vmatprep.subr.mxu0 0.0
    %v1658 = vand.u32 %v125, 4294901760
    %v1659 = vsub.f32 %v125, %v1658
    %v1660 = vand.u32 %v1659, 4294901760
    %v1661 = vsub.f32 %v1659, %v1660
    %v1662 = vand.u32 %v1661, 4294901760
    %1663 = vmatpush1.msra.mxu0 %v1662
    %1664 = vmatprep.subr.mxu0 0.0
    %v1665 = vand.u32 %v126, 4294901760
    %v1666 = vsub.f32 %v126, %v1665
    %v1667 = vand.u32 %v1666, 4294901760
    %v1668 = vsub.f32 %v1666, %v1667
    %v1669 = vand.u32 %v1668, 4294901760
    %1670 = vmatpush1.msra.mxu0 %v1669
    %1671 = vmatprep.subr.mxu0 0.0
    %v1672 = vand.u32 %v127, 4294901760
    %v1673 = vsub.f32 %v127, %v1672
    %v1674 = vand.u32 %v1673, 4294901760
    %v1675 = vsub.f32 %v1673, %v1674
    %v1676 = vand.u32 %v1675, 4294901760
    %1677 = vmatpush1.msra.mxu0 %v1676
    %1678 = vmatprep.subr.mxu0 0.0
    %v1679 = vand.u32 %v128, 4294901760
    %v1680 = vsub.f32 %v128, %v1679
    %v1681 = vand.u32 %v1680, 4294901760
    %v1682 = vsub.f32 %v1680, %v1681
    %v1683 = vand.u32 %v1682, 4294901760
    %1684 = vmatpush1.msra.mxu0 %v1683
    %1685 = vmatprep.subr.mxu0 0.0
    %v1686 = vand.u32 %v129, 4294901760
    %v1687 = vsub.f32 %v129, %v1686
    %v1688 = vand.u32 %v1687, 4294901760
    %v1689 = vsub.f32 %v1687, %v1688
    %v1690 = vand.u32 %v1689, 4294901760
    %1691 = vmatpush1.msra.mxu0 %v1690
    %1692 = vmatprep.subr.mxu0 0.0
    %v1693 = vand.u32 %v130, 4294901760
    %v1694 = vsub.f32 %v130, %v1693
    %v1695 = vand.u32 %v1694, 4294901760
    %v1696 = vsub.f32 %v1694, %v1695
    %v1697 = vand.u32 %v1696, 4294901760
    %1698 = vmatpush1.msra.mxu0 %v1697
    %1699 = vmatprep.subr.mxu0 0.0
    %v1700 = vand.u32 %v131, 4294901760
    %v1701 = vsub.f32 %v131, %v1700
    %v1702 = vand.u32 %v1701, 4294901760
    %v1703 = vsub.f32 %v1701, %v1702
    %v1704 = vand.u32 %v1703, 4294901760
    %1705 = vmatpush1.msra.mxu0 %v1704
    %1706 = vmatprep.subr.mxu0 0.0
    %v1707 = vand.u32 %v132, 4294901760
    %v1708 = vsub.f32 %v132, %v1707
    %v1709 = vand.u32 %v1708, 4294901760
    %v1710 = vsub.f32 %v1708, %v1709
    %v1711 = vand.u32 %v1710, 4294901760
    %1712 = vmatpush1.msra.mxu0 %v1711
    %1713 = vmatprep.subr.mxu0 0.0
    %1714 = vmatpush1.msra.mxu0 0.0
    %1715 = vmatprep.subr.mxu0 0.0
    %1716 = vmatpush1.msra.mxu0 0.0
    %1717 = vmatprep.subr.mxu0 0.0
    %1718 = vmatpush1.msra.mxu0 0.0
    %1719 = vmatprep.subr.mxu0 0.0
    %1720 = vmatpush1.msra.mxu0 0.0
    %1721 = vmatprep.subr.mxu0 0.0
    %1722 = vmatpush1.msra.mxu0 0.0
    %1723 = vmatprep.subr.mxu0 0.0
    %1724 = vmatpush1.msra.mxu0 0.0
    %1725 = vmatprep.subr.mxu0 0.0
    %1726 = vmatpush1.msra.mxu0 0.0
    %1727 = vmatprep.subr.mxu0 0.0
    %1728 = vmatpush1.msra.mxu0 0.0
    %1729 = vmatprep.subr.mxu0 0.0
    %1730 = vmatpush1.msra.mxu0 0.0
    %1731 = vmatprep.subr.mxu0 0.0
    %1732 = vmatpush1.msra.mxu0 0.0
    %1733 = vmatprep.subr.mxu0 0.0
    %1734 = vmatpush1.msra.mxu0 0.0
    %1735 = vmatprep.subr.mxu0 0.0
    %1736 = vmatpush1.msra.mxu0 0.0
    %1737 = vmatprep.subr.mxu0 0.0
    %1738 = vmatpush1.msra.mxu0 0.0
    %1739 = vmatprep.subr.mxu0 0.0
    %1740 = vmatpush1.msra.mxu0 0.0
    %1741 = vmatprep.subr.mxu0 0.0
    %1742 = vmatpush1.msra.mxu0 0.0
    %1743 = vmatprep.subr.mxu0 0.0
    %1744 = vmatpush1.msra.mxu0 0.0
    %1745 = vmatprep.subr.mxu0 0.0
    %1746 = vmatpush1.msra.mxu0 0.0
    %1747 = vmatprep.subr.mxu0 0.0
    %1748 = vmatpush1.msra.mxu0 0.0
    %1749 = vmatprep.subr.mxu0 0.0
    %1750 = vmatpush1.msra.mxu0 0.0
    %1751 = vmatprep.subr.mxu0 0.0
    %1752 = vmatpush1.msra.mxu0 0.0
    %1753 = vmatprep.subr.mxu0 0.0
    %1754 = vmatpush1.msra.mxu0 0.0
    %1755 = vmatprep.subr.mxu0 0.0
    %1756 = vmatpush1.msra.mxu0 0.0
    %1757 = vmatprep.subr.mxu0 0.0
    %1758 = vmatpush1.msra.mxu0 0.0
    %1759 = vmatprep.subr.mxu0 0.0
    %1760 = vmatpush1.msra.mxu0 0.0
    %1761 = vmatprep.mubr.f32.mxu0 0.0
    %v1762 = vand.u32 %v1533, 4294901760
    %1763 = vmatmul.mubr.f32.gmra.mrb[0].mxu0 %v1762
    %v1764 = vpop.f32.mrb[0].mxu0
    %v1765 = vadd.f32 %v1624, %v1764
    %v1766 = vpop.f32.mrb[0].mxu0
    %1767 = vmatprep.mubr.f32.mxu0 0.0
    %v1768 = vand.u32 %v1536, 4294901760
    %1769 = vmatmul.mubr.f32.gmra.mrb[0].mxu0 %v1768
    %v1770 = vpop.f32.mrb[0].mxu0
    %v1771 = vadd.f32 %v1634, %v1770
    %v1772 = vpop.f32.mrb[0].mxu0
    %1773 = vmatprep.mubr.f32.mxu0 0.0
    %v1774 = vand.u32 %v1539, 4294901760
    %1775 = vmatmul.mubr.f32.gmra.mrb[0].mxu0 %v1774
    %v1776 = vpop.f32.mrb[0].mxu0
    %v1777 = vadd.f32 %v1644, %v1776
    %v1778 = vpop.f32.mrb[0].mxu0
    %1779 = vmatprep.mubr.f32.mxu0 0.0
    %v1780 = vand.u32 %v1542, 4294901760
    %1781 = vmatmul.mubr.f32.gmra.mrb[0].mxu0 %v1780
    %v1782 = vpop.f32.mrb[0].mxu0
    %v1783 = vadd.f32 %v1654, %v1782
    %v1784 = vpop.f32.mrb[0].mxu0
    %1785 = vdwg.mxu0
    %1786 = vmatprep.subr.mxu0 0.0
    %v1787 = vand.u32 %v125, 4294901760
    %v1788 = vsub.f32 %v125, %v1787
    %1789 = vmatpush1.msra.mxu0 %v1788
    %1790 = vmatprep.subr.mxu0 0.0
    %v1791 = vand.u32 %v126, 4294901760
    %v1792 = vsub.f32 %v126, %v1791
    %1793 = vmatpush1.msra.mxu0 %v1792
    %1794 = vmatprep.subr.mxu0 0.0
    %v1795 = vand.u32 %v127, 4294901760
    %v1796 = vsub.f32 %v127, %v1795
    %1797 = vmatpush1.msra.mxu0 %v1796
    %1798 = vmatprep.subr.mxu0 0.0
    %v1799 = vand.u32 %v128, 4294901760
    %v1800 = vsub.f32 %v128, %v1799
    %1801 = vmatpush1.msra.mxu0 %v1800
    %1802 = vmatprep.subr.mxu0 0.0
    %v1803 = vand.u32 %v129, 4294901760
    %v1804 = vsub.f32 %v129, %v1803
    %1805 = vmatpush1.msra.mxu0 %v1804
    %1806 = vmatprep.subr.mxu0 0.0
    %v1807 = vand.u32 %v130, 4294901760
    %v1808 = vsub.f32 %v130, %v1807
    %1809 = vmatpush1.msra.mxu0 %v1808
    %1810 = vmatprep.subr.mxu0 0.0
    %v1811 = vand.u32 %v131, 4294901760
    %v1812 = vsub.f32 %v131, %v1811
    %1813 = vmatpush1.msra.mxu0 %v1812
    %1814 = vmatprep.subr.mxu0 0.0
    %v1815 = vand.u32 %v132, 4294901760
    %v1816 = vsub.f32 %v132, %v1815
    %1817 = vmatpush1.msra.mxu0 %v1816
    %1818 = vmatprep.subr.mxu0 0.0
    %1819 = vmatpush1.msra.mxu0 0.0
    %1820 = vmatprep.subr.mxu0 0.0
    %1821 = vmatpush1.msra.mxu0 0.0
    %1822 = vmatprep.subr.mxu0 0.0
    %1823 = vmatpush1.msra.mxu0 0.0
    %1824 = vmatprep.subr.mxu0 0.0
    %1825 = vmatpush1.msra.mxu0 0.0
    %1826 = vmatprep.subr.mxu0 0.0
    %1827 = vmatpush1.msra.mxu0 0.0
    %1828 = vmatprep.subr.mxu0 0.0
    %1829 = vmatpush1.msra.mxu0 0.0
    %1830 = vmatprep.subr.mxu0 0.0
    %1831 = vmatpush1.msra.mxu0 0.0
    %1832 = vmatprep.subr.mxu0 0.0
    %1833 = vmatpush1.msra.mxu0 0.0
    %1834 = vmatprep.subr.mxu0 0.0
    %1835 = vmatpush1.msra.mxu0 0.0
    %1836 = vmatprep.subr.mxu0 0.0
    %1837 = vmatpush1.msra.mxu0 0.0
    %1838 = vmatprep.subr.mxu0 0.0
    %1839 = vmatpush1.msra.mxu0 0.0
    %1840 = vmatprep.subr.mxu0 0.0
    %1841 = vmatpush1.msra.mxu0 0.0
    %1842 = vmatprep.subr.mxu0 0.0
    %1843 = vmatpush1.msra.mxu0 0.0
    %1844 = vmatprep.subr.mxu0 0.0
    %1845 = vmatpush1.msra.mxu0 0.0
    %1846 = vmatprep.subr.mxu0 0.0
    %1847 = vmatpush1.msra.mxu0 0.0
    %1848 = vmatprep.subr.mxu0 0.0
    %1849 = vmatpush1.msra.mxu0 0.0
    %1850 = vmatprep.subr.mxu0 0.0
    %1851 = vmatpush1.msra.mxu0 0.0
    %1852 = vmatprep.subr.mxu0 0.0
    %1853 = vmatpush1.msra.mxu0 0.0
    %1854 = vmatprep.subr.mxu0 0.0
    %1855 = vmatpush1.msra.mxu0 0.0
    %1856 = vmatprep.subr.mxu0 0.0
    %1857 = vmatpush1.msra.mxu0 0.0
    %1858 = vmatprep.subr.mxu0 0.0
    %1859 = vmatpush1.msra.mxu0 0.0
    %1860 = vmatprep.subr.mxu0 0.0
    %1861 = vmatpush1.msra.mxu0 0.0
    %1862 = vmatprep.subr.mxu0 0.0
    %1863 = vmatpush1.msra.mxu0 0.0
    %1864 = vmatprep.subr.mxu0 0.0
    %1865 = vmatpush1.msra.mxu0 0.0
    %1866 = vmatprep.mubr.f32.mxu0 0.0
    %v1867 = vand.u32 %v1533, 4294901760
    %v1868 = vsub.f32 %v1533, %v1867
    %1869 = vmatmul.mubr.f32.gmra.mrb[0].mxu0 %v1868
    %v1870 = vpop.f32.mrb[0].mxu0
    %v1871 = vadd.f32 %v1765, %v1870
    %v1872 = vpop.f32.mrb[0].mxu0
    %1873 = vmatprep.mubr.f32.mxu0 0.0
    %v1874 = vand.u32 %v1536, 4294901760
    %v1875 = vsub.f32 %v1536, %v1874
    %1876 = vmatmul.mubr.f32.gmra.mrb[0].mxu0 %v1875
    %v1877 = vpop.f32.mrb[0].mxu0
    %v1878 = vadd.f32 %v1771, %v1877
    %v1879 = vpop.f32.mrb[0].mxu0
    %1880 = vmatprep.mubr.f32.mxu0 0.0
    %v1881 = vand.u32 %v1539, 4294901760
    %v1882 = vsub.f32 %v1539, %v1881
    %1883 = vmatmul.mubr.f32.gmra.mrb[0].mxu0 %v1882
    %v1884 = vpop.f32.mrb[0].mxu0
    %v1885 = vadd.f32 %v1777, %v1884
    %v1886 = vpop.f32.mrb[0].mxu0
    %1887 = vmatprep.mubr.f32.mxu0 0.0
    %v1888 = vand.u32 %v1542, 4294901760
    %v1889 = vsub.f32 %v1542, %v1888
    %1890 = vmatmul.mubr.f32.gmra.mrb[0].mxu0 %v1889
    %v1891 = vpop.f32.mrb[0].mxu0
    %v1892 = vadd.f32 %v1783, %v1891
    %v1893 = vpop.f32.mrb[0].mxu0
    %1894 = vdwg.mxu0
    %1895 = vmatprep.subr.mxu0 0.0
    %v1896 = vand.u32 %v125, 4294901760
    %1897 = vmatpush1.msra.mxu0 %v1896
    %1898 = vmatprep.subr.mxu0 0.0
    %v1899 = vand.u32 %v126, 4294901760
    %1900 = vmatpush1.msra.mxu0 %v1899
    %1901 = vmatprep.subr.mxu0 0.0
    %v1902 = vand.u32 %v127, 4294901760
    %1903 = vmatpush1.msra.mxu0 %v1902
    %1904 = vmatprep.subr.mxu0 0.0
    %v1905 = vand.u32 %v128, 4294901760
    %1906 = vmatpush1.msra.mxu0 %v1905
    %1907 = vmatprep.subr.mxu0 0.0
    %v1908 = vand.u32 %v129, 4294901760
    %1909 = vmatpush1.msra.mxu0 %v1908
    %1910 = vmatprep.subr.mxu0 0.0
    %v1911 = vand.u32 %v130, 4294901760
    %1912 = vmatpush1.msra.mxu0 %v1911
    %1913 = vmatprep.subr.mxu0 0.0
    %v1914 = vand.u32 %v131, 4294901760
    %1915 = vmatpush1.msra.mxu0 %v1914
    %1916 = vmatprep.subr.mxu0 0.0
    %v1917 = vand.u32 %v132, 4294901760
    %1918 = vmatpush1.msra.mxu0 %v1917
    %1919 = vmatprep.subr.mxu0 0.0
    %1920 = vmatpush1.msra.mxu0 0.0
    %1921 = vmatprep.subr.mxu0 0.0
    %1922 = vmatpush1.msra.mxu0 0.0
    %1923 = vmatprep.subr.mxu0 0.0
    %1924 = vmatpush1.msra.mxu0 0.0
    %1925 = vmatprep.subr.mxu0 0.0
    %1926 = vmatpush1.msra.mxu0 0.0
    %1927 = vmatprep.subr.mxu0 0.0
    %1928 = vmatpush1.msra.mxu0 0.0
    %1929 = vmatprep.subr.mxu0 0.0
    %1930 = vmatpush1.msra.mxu0 0.0
    %1931 = vmatprep.subr.mxu0 0.0
    %1932 = vmatpush1.msra.mxu0 0.0
    %1933 = vmatprep.subr.mxu0 0.0
    %1934 = vmatpush1.msra.mxu0 0.0
    %1935 = vmatprep.subr.mxu0 0.0
    %1936 = vmatpush1.msra.mxu0 0.0
    %1937 = vmatprep.subr.mxu0 0.0
    %1938 = vmatpush1.msra.mxu0 0.0
    %1939 = vmatprep.subr.mxu0 0.0
    %1940 = vmatpush1.msra.mxu0 0.0
    %1941 = vmatprep.subr.mxu0 0.0
    %1942 = vmatpush1.msra.mxu0 0.0
    %1943 = vmatprep.subr.mxu0 0.0
    %1944 = vmatpush1.msra.mxu0 0.0
    %1945 = vmatprep.subr.mxu0 0.0
    %1946 = vmatpush1.msra.mxu0 0.0
    %1947 = vmatprep.subr.mxu0 0.0
    %1948 = vmatpush1.msra.mxu0 0.0
    %1949 = vmatprep.subr.mxu0 0.0
    %1950 = vmatpush1.msra.mxu0 0.0
    %1951 = vmatprep.subr.mxu0 0.0
    %1952 = vmatpush1.msra.mxu0 0.0
    %1953 = vmatprep.subr.mxu0 0.0
    %1954 = vmatpush1.msra.mxu0 0.0
    %1955 = vmatprep.subr.mxu0 0.0
    %1956 = vmatpush1.msra.mxu0 0.0
    %1957 = vmatprep.subr.mxu0 0.0
    %1958 = vmatpush1.msra.mxu0 0.0
    %1959 = vmatprep.subr.mxu0 0.0
    %1960 = vmatpush1.msra.mxu0 0.0
    %1961 = vmatprep.subr.mxu0 0.0
    %1962 = vmatpush1.msra.mxu0 0.0
    %1963 = vmatprep.subr.mxu0 0.0
    %1964 = vmatpush1.msra.mxu0 0.0
    %1965 = vmatprep.subr.mxu0 0.0
    %1966 = vmatpush1.msra.mxu0 0.0
    %1967 = vmatprep.mubr.f32.mxu0 0.0
    %v1968 = vand.u32 %v1533, 4294901760
    %v1969 = vsub.f32 %v1533, %v1968
    %v1970 = vand.u32 %v1969, 4294901760
    %1971 = vmatmul.mubr.f32.gmra.mrb[0].mxu0 %v1970
    %v1972 = vpop.f32.mrb[0].mxu0
    %v1973 = vadd.f32 %v1871, %v1972
    %v1974 = vpop.f32.mrb[0].mxu0
    %1975 = vmatprep.mubr.f32.mxu0 0.0
    %v1976 = vand.u32 %v1536, 4294901760
    %v1977 = vsub.f32 %v1536, %v1976
    %v1978 = vand.u32 %v1977, 4294901760
    %1979 = vmatmul.mubr.f32.gmra.mrb[0].mxu0 %v1978
    %v1980 = vpop.f32.mrb[0].mxu0
    %v1981 = vadd.f32 %v1878, %v1980
    %v1982 = vpop.f32.mrb[0].mxu0
    %1983 = vmatprep.mubr.f32.mxu0 0.0
    %v1984 = vand.u32 %v1539, 4294901760
    %v1985 = vsub.f32 %v1539, %v1984
    %v1986 = vand.u32 %v1985, 4294901760
    %1987 = vmatmul.mubr.f32.gmra.mrb[0].mxu0 %v1986
    %v1988 = vpop.f32.mrb[0].mxu0
    %v1989 = vadd.f32 %v1885, %v1988
    %v1990 = vpop.f32.mrb[0].mxu0
    %1991 = vmatprep.mubr.f32.mxu0 0.0
    %v1992 = vand.u32 %v1542, 4294901760
    %v1993 = vsub.f32 %v1542, %v1992
    %v1994 = vand.u32 %v1993, 4294901760
    %1995 = vmatmul.mubr.f32.gmra.mrb[0].mxu0 %v1994
    %v1996 = vpop.f32.mrb[0].mxu0
    %v1997 = vadd.f32 %v1892, %v1996
    %v1998 = vpop.f32.mrb[0].mxu0
    %1999 = vdwg.mxu0
    %2000 = vmatprep.subr.mxu0 0.0
    %v2001 = vand.u32 %v125, 4294901760
    %v2002 = vsub.f32 %v125, %v2001
    %v2003 = vand.u32 %v2002, 4294901760
    %2004 = vmatpush1.msra.mxu0 %v2003
    %2005 = vmatprep.subr.mxu0 0.0
    %v2006 = vand.u32 %v126, 4294901760
    %v2007 = vsub.f32 %v126, %v2006
    %v2008 = vand.u32 %v2007, 4294901760
    %2009 = vmatpush1.msra.mxu0 %v2008
    %2010 = vmatprep.subr.mxu0 0.0
    %v2011 = vand.u32 %v127, 4294901760
    %v2012 = vsub.f32 %v127, %v2011
    %v2013 = vand.u32 %v2012, 4294901760
    %2014 = vmatpush1.msra.mxu0 %v2013
    %2015 = vmatprep.subr.mxu0 0.0
    %v2016 = vand.u32 %v128, 4294901760
    %v2017 = vsub.f32 %v128, %v2016
    %v2018 = vand.u32 %v2017, 4294901760
    %2019 = vmatpush1.msra.mxu0 %v2018
    %2020 = vmatprep.subr.mxu0 0.0
    %v2021 = vand.u32 %v129, 4294901760
    %v2022 = vsub.f32 %v129, %v2021
    %v2023 = vand.u32 %v2022, 4294901760
    %2024 = vmatpush1.msra.mxu0 %v2023
    %2025 = vmatprep.subr.mxu0 0.0
    %v2026 = vand.u32 %v130, 4294901760
    %v2027 = vsub.f32 %v130, %v2026
    %v2028 = vand.u32 %v2027, 4294901760
    %2029 = vmatpush1.msra.mxu0 %v2028
    %2030 = vmatprep.subr.mxu0 0.0
    %v2031 = vand.u32 %v131, 4294901760
    %v2032 = vsub.f32 %v131, %v2031
    %v2033 = vand.u32 %v2032, 4294901760
    %2034 = vmatpush1.msra.mxu0 %v2033
    %2035 = vmatprep.subr.mxu0 0.0
    %v2036 = vand.u32 %v132, 4294901760
    %v2037 = vsub.f32 %v132, %v2036
    %v2038 = vand.u32 %v2037, 4294901760
    %2039 = vmatpush1.msra.mxu0 %v2038
    %2040 = vmatprep.subr.mxu0 0.0
    %2041 = vmatpush1.msra.mxu0 0.0
    %2042 = vmatprep.subr.mxu0 0.0
    %2043 = vmatpush1.msra.mxu0 0.0
    %2044 = vmatprep.subr.mxu0 0.0
    %2045 = vmatpush1.msra.mxu0 0.0
    %2046 = vmatprep.subr.mxu0 0.0
    %2047 = vmatpush1.msra.mxu0 0.0
    %2048 = vmatprep.subr.mxu0 0.0
    %2049 = vmatpush1.msra.mxu0 0.0
    %2050 = vmatprep.subr.mxu0 0.0
    %2051 = vmatpush1.msra.mxu0 0.0
    %2052 = vmatprep.subr.mxu0 0.0
    %2053 = vmatpush1.msra.mxu0 0.0
    %2054 = vmatprep.subr.mxu0 0.0
    %2055 = vmatpush1.msra.mxu0 0.0
    %2056 = vmatprep.subr.mxu0 0.0
    %2057 = vmatpush1.msra.mxu0 0.0
    %2058 = vmatprep.subr.mxu0 0.0
    %2059 = vmatpush1.msra.mxu0 0.0
    %2060 = vmatprep.subr.mxu0 0.0
    %2061 = vmatpush1.msra.mxu0 0.0
    %2062 = vmatprep.subr.mxu0 0.0
    %2063 = vmatpush1.msra.mxu0 0.0
    %2064 = vmatprep.subr.mxu0 0.0
    %2065 = vmatpush1.msra.mxu0 0.0
    %2066 = vmatprep.subr.mxu0 0.0
    %2067 = vmatpush1.msra.mxu0 0.0
    %2068 = vmatprep.subr.mxu0 0.0
    %2069 = vmatpush1.msra.mxu0 0.0
    %2070 = vmatprep.subr.mxu0 0.0
    %2071 = vmatpush1.msra.mxu0 0.0
    %2072 = vmatprep.subr.mxu0 0.0
    %2073 = vmatpush1.msra.mxu0 0.0
    %2074 = vmatprep.subr.mxu0 0.0
    %2075 = vmatpush1.msra.mxu0 0.0
    %2076 = vmatprep.subr.mxu0 0.0
    %2077 = vmatpush1.msra.mxu0 0.0
    %2078 = vmatprep.subr.mxu0 0.0
    %2079 = vmatpush1.msra.mxu0 0.0
    %2080 = vmatprep.subr.mxu0 0.0
    %2081 = vmatpush1.msra.mxu0 0.0
    %2082 = vmatprep.subr.mxu0 0.0
    %2083 = vmatpush1.msra.mxu0 0.0
    %2084 = vmatprep.subr.mxu0 0.0
    %2085 = vmatpush1.msra.mxu0 0.0
    %2086 = vmatprep.subr.mxu0 0.0
    %2087 = vmatpush1.msra.mxu0 0.0
    %2088 = vmatprep.mubr.f32.mxu0 0.0
    %v2089 = vand.u32 %v1533, 4294901760
    %2090 = vmatmul.mubr.f32.gmra.mrb[0].mxu0 %v2089
    %v2091 = vpop.f32.mrb[0].mxu0
    %v2092 = vadd.f32 %v1973, %v2091
    %v2093 = vpop.f32.mrb[0].mxu0
    %2094 = vmatprep.mubr.f32.mxu0 0.0
    %v2095 = vand.u32 %v1536, 4294901760
    %2096 = vmatmul.mubr.f32.gmra.mrb[0].mxu0 %v2095
    %v2097 = vpop.f32.mrb[0].mxu0
    %v2098 = vadd.f32 %v1981, %v2097
    %v2099 = vpop.f32.mrb[0].mxu0
    %2100 = vmatprep.mubr.f32.mxu0 0.0
    %v2101 = vand.u32 %v1539, 4294901760
    %2102 = vmatmul.mubr.f32.gmra.mrb[0].mxu0 %v2101
    %v2103 = vpop.f32.mrb[0].mxu0
    %v2104 = vadd.f32 %v1989, %v2103
    %v2105 = vpop.f32.mrb[0].mxu0
    %2106 = vmatprep.mubr.f32.mxu0 0.0
    %v2107 = vand.u32 %v1542, 4294901760
    %2108 = vmatmul.mubr.f32.gmra.mrb[0].mxu0 %v2107
    %v2109 = vpop.f32.mrb[0].mxu0
    %v2110 = vadd.f32 %v1997, %v2109
    %v2111 = vpop.f32.mrb[0].mxu0
    %2112 = vdwg.mxu0
    %2113 = vmatprep.subr.mxu0 0.0
    %v2114 = vand.u32 %v125, 4294901760
    %2115 = vmatpush1.msra.mxu0 %v2114
    %2116 = vmatprep.subr.mxu0 0.0
    %v2117 = vand.u32 %v126, 4294901760
    %2118 = vmatpush1.msra.mxu0 %v2117
    %2119 = vmatprep.subr.mxu0 0.0
    %v2120 = vand.u32 %v127, 4294901760
    %2121 = vmatpush1.msra.mxu0 %v2120
    %2122 = vmatprep.subr.mxu0 0.0
    %v2123 = vand.u32 %v128, 4294901760
    %2124 = vmatpush1.msra.mxu0 %v2123
    %2125 = vmatprep.subr.mxu0 0.0
    %v2126 = vand.u32 %v129, 4294901760
    %2127 = vmatpush1.msra.mxu0 %v2126
    %2128 = vmatprep.subr.mxu0 0.0
    %v2129 = vand.u32 %v130, 4294901760
    %2130 = vmatpush1.msra.mxu0 %v2129
    %2131 = vmatprep.subr.mxu0 0.0
    %v2132 = vand.u32 %v131, 4294901760
    %2133 = vmatpush1.msra.mxu0 %v2132
    %2134 = vmatprep.subr.mxu0 0.0
    %v2135 = vand.u32 %v132, 4294901760
    %2136 = vmatpush1.msra.mxu0 %v2135
    %2137 = vmatprep.subr.mxu0 0.0
    %2138 = vmatpush1.msra.mxu0 0.0
    %2139 = vmatprep.subr.mxu0 0.0
    %2140 = vmatpush1.msra.mxu0 0.0
    %2141 = vmatprep.subr.mxu0 0.0
    %2142 = vmatpush1.msra.mxu0 0.0
    %2143 = vmatprep.subr.mxu0 0.0
    %2144 = vmatpush1.msra.mxu0 0.0
    %2145 = vmatprep.subr.mxu0 0.0
    %2146 = vmatpush1.msra.mxu0 0.0
    %2147 = vmatprep.subr.mxu0 0.0
    %2148 = vmatpush1.msra.mxu0 0.0
    %2149 = vmatprep.subr.mxu0 0.0
    %2150 = vmatpush1.msra.mxu0 0.0
    %2151 = vmatprep.subr.mxu0 0.0
    %2152 = vmatpush1.msra.mxu0 0.0
    %2153 = vmatprep.subr.mxu0 0.0
    %2154 = vmatpush1.msra.mxu0 0.0
    %2155 = vmatprep.subr.mxu0 0.0
    %2156 = vmatpush1.msra.mxu0 0.0
    %2157 = vmatprep.subr.mxu0 0.0
    %2158 = vmatpush1.msra.mxu0 0.0
    %2159 = vmatprep.subr.mxu0 0.0
    %2160 = vmatpush1.msra.mxu0 0.0
    %2161 = vmatprep.subr.mxu0 0.0
    %2162 = vmatpush1.msra.mxu0 0.0
    %2163 = vmatprep.subr.mxu0 0.0
    %2164 = vmatpush1.msra.mxu0 0.0
    %2165 = vmatprep.subr.mxu0 0.0
    %2166 = vmatpush1.msra.mxu0 0.0
    %2167 = vmatprep.subr.mxu0 0.0
    %2168 = vmatpush1.msra.mxu0 0.0
    %2169 = vmatprep.subr.mxu0 0.0
    %2170 = vmatpush1.msra.mxu0 0.0
    %2171 = vmatprep.subr.mxu0 0.0
    %2172 = vmatpush1.msra.mxu0 0.0
    %2173 = vmatprep.subr.mxu0 0.0
    %2174 = vmatpush1.msra.mxu0 0.0
    %2175 = vmatprep.subr.mxu0 0.0
    %2176 = vmatpush1.msra.mxu0 0.0
    %2177 = vmatprep.subr.mxu0 0.0
    %2178 = vmatpush1.msra.mxu0 0.0
    %2179 = vmatprep.subr.mxu0 0.0
    %2180 = vmatpush1.msra.mxu0 0.0
    %2181 = vmatprep.subr.mxu0 0.0
    %2182 = vmatpush1.msra.mxu0 0.0
    %2183 = vmatprep.subr.mxu0 0.0
    %2184 = vmatpush1.msra.mxu0 0.0
    %2185 = vmatprep.mubr.f32.mxu0 0.0
    %v2186 = vand.u32 %v1533, 4294901760
    %2187 = vmatmul.mubr.f32.gmra.mrb[0].mxu0 %v2186
    %v2188 = vpop.f32.mrb[0].mxu0
    %v2189 = vadd.f32 %v2092, %v2188
    %v2190 = vpop.f32.mrb[0].mxu0
    %2191 = vmatprep.mubr.f32.mxu0 0.0
    %v2192 = vand.u32 %v1536, 4294901760
    %2193 = vmatmul.mubr.f32.gmra.mrb[0].mxu0 %v2192
    %v2194 = vpop.f32.mrb[0].mxu0
    %v2195 = vadd.f32 %v2098, %v2194
    %v2196 = vpop.f32.mrb[0].mxu0
    %2197 = vmatprep.mubr.f32.mxu0 0.0
    %v2198 = vand.u32 %v1539, 4294901760
    %2199 = vmatmul.mubr.f32.gmra.mrb[0].mxu0 %v2198
    %v2200 = vpop.f32.mrb[0].mxu0
    %v2201 = vadd.f32 %v2104, %v2200
    %v2202 = vpop.f32.mrb[0].mxu0
    %2203 = vmatprep.mubr.f32.mxu0 0.0
    %v2204 = vand.u32 %v1542, 4294901760
    %2205 = vmatmul.mubr.f32.gmra.mrb[0].mxu0 %v2204
    %v2206 = vpop.f32.mrb[0].mxu0
    %v2207 = vadd.f32 %v2110, %v2206
    %v2208 = vpop.f32.mrb[0].mxu0
    %2209 = vdwg.mxu0
    %v2210 = vadd.f32 %v1490, %v2189
    %v2211 = vadd.f32 %v1496, %v2195
    %v2212 = vadd.f32 %v1502, %v2201
    %v2213 = vadd.f32 %v1508, %v2207
    %v2214 = vadd.f32 %v2210, %v2211
    %v2215 = vadd.f32 %v2214, %v2212
    %v2216 = vadd.f32 %v2215, %v2213
    %v2217 = vrot.slane %v2216, 4
    %v2218 = vadd.f32 %v2216, %v2217
    %v2219 = vrot.slane %v2218, 2
    %v2220 = vadd.f32 %v2218, %v2219
    %v2221 = vrot.slane %v2220, 1
    %v2222 = vadd.f32 %v2220, %v2221
    %v2223 = vmul.f32 %v2210, %v2210
    %v2224 = vmul.f32 %v2211, %v2211
    %v2225 = vmul.f32 %v2212, %v2212
    %v2226 = vmul.f32 %v2213, %v2213
    %v2227 = vadd.f32 %v2223, %v2224
    %v2228 = vadd.f32 %v2227, %v2225
    %v2229 = vadd.f32 %v2228, %v2226
    %v2230 = vrot.slane %v2229, 4
    %v2231 = vadd.f32 %v2229, %v2230
    %v2232 = vrot.slane %v2231, 2
    %v2233 = vadd.f32 %v2231, %v2232
    %v2234 = vrot.slane %v2233, 1
    %v2235 = vadd.f32 %v2233, %v2234
    %vm2236 = vcmask 1040384
    %v2237 = vsel %vm2236, %v2222, %v2235
    %2238 = vrot.lane.b32.xlu0 %v2237, 8
    %v2239 = vpop.permute.xlu0 %2238
    %v2240 = vadd.f32 %v2237, %v2239
    %2241 = vrot.lane.b32.xlu0 %v2240, 16
    %v2242 = vpop.permute.xlu0 %2241
    %v2243 = vadd.f32 %v2240, %v2242
    %2244 = vrot.lane.b32.xlu0 %v2243, 32
    %v2245 = vpop.permute.xlu0 %2244
    %v2246 = vadd.f32 %v2243, %v2245
    %2247 = vrot.lane.b32.xlu0 %v2246, 64
    %v2248 = vpop.permute.xlu0 %2247
    %v2249 = vadd.f32 %v2246, %v2248
    %v2250 = vmul.f32 %v2249, 0.001953125
    %v2251 = vmul.f32 %v2250, %v2250
    %v2253 = vrot.slane %v2251, 7
    %v2255 = vsub.f32 %v2250, %v2253
    %v2256 = vmax.f32 %v2255, 0.0
    %v2257 = vadd.f32 %v2256, 1e-05
    %v2258 = vrsqrt.pop %v2257
    %v2260 = vrot.slane %v2258, 1
    %v2262 = vmul.f32 %v43, %v2260
    %v2263 = vmul.f32 %v2262, %v2250
    %v2265 = vrot.slane %v2263, 7
    %v2267 = vsub.f32 %v43, %v2265
    %v2268 = vlaneseq
    %v2269 = vshrl.u32 %v2268, 7
    %v2270 = vsub.s32 0, %v2269
    %v2271 = vrot.slane %v2262, %v2270
    %v2272 = vmul.f32 %v2210, %v2271
    %v2273 = vmul.f32 %v2211, %v2271
    %v2274 = vmul.f32 %v2212, %v2271
    %v2275 = vmul.f32 %v2213, %v2271
    %v2276 = vlaneseq
    %v2277 = vshrl.u32 %v2276, 7
    %v2278 = vsub.s32 1, %v2277
    %v2279 = vrot.slane %v2267, %v2278
    %v2280 = vadd.f32 %v2272, %v2279
    %v2281 = vadd.f32 %v2273, %v2279
    %v2282 = vadd.f32 %v2274, %v2279
    %v2283 = vadd.f32 %v2275, %v2279
    %v2284 = vmax.f32 %v2280, 0.0
    %v2285 = vmax.f32 %v2281, 0.0
    %v2286 = vmax.f32 %v2282, 0.0
    %v2287 = vmax.f32 %v2283, 0.0
    %v2288 = vld [vmem:[#allocation5 + $0xc0] sm:$0xff]
    %v2289 = vld [vmem:[#allocation5 + $0xc8] sm:$0xff]
    %v2290 = vld [vmem:[#allocation5 + $0xd0] sm:$0xff]
    %v2291 = vld [vmem:[#allocation5 + $0xd8] sm:$0xff]
    %v2292 = vld [vmem:[#allocation5 + $0xe0] sm:$0xff]
    %v2293 = vld [vmem:[#allocation5 + $0xe8] sm:$0xff]
    %v2294 = vld [vmem:[#allocation5 + $0xf0] sm:$0xff]
    %v2295 = vld [vmem:[#allocation5 + $0xf8] sm:$0xff]
    %v2296 = vld [vmem:[#allocation5 + $0x100] sm:$0xff]
    %v2297 = vld [vmem:[#allocation5 + $0x108] sm:$0xff]
    %v2298 = vld [vmem:[#allocation5 + $0x110] sm:$0xff]
    %v2299 = vld [vmem:[#allocation5 + $0x118] sm:$0xff]
    %v2300 = vld [vmem:[#allocation5 + $0x120] sm:$0xff]
    %v2301 = vld [vmem:[#allocation5 + $0x128] sm:$0xff]
    %v2302 = vld [vmem:[#allocation5 + $0x130] sm:$0xff]
    %v2303 = vld [vmem:[#allocation5 + $0x138] sm:$0xff]
    %v2304 = vld [vmem:[#allocation5 + $0x140] sm:$0xff]
    %v2305 = vld [vmem:[#allocation5 + $0x148] sm:$0xff]
    %v2306 = vld [vmem:[#allocation5 + $0x150] sm:$0xff]
    %v2307 = vld [vmem:[#allocation5 + $0x158] sm:$0xff]
    %v2308 = vld [vmem:[#allocation5 + $0x160] sm:$0xff]
    %v2309 = vld [vmem:[#allocation5 + $0x168] sm:$0xff]
    %v2310 = vld [vmem:[#allocation5 + $0x170] sm:$0xff]
    %v2311 = vld [vmem:[#allocation5 + $0x178] sm:$0xff]
    %v2312 = vld [vmem:[#allocation5 + $0x180] sm:$0xff]
    %v2313 = vld [vmem:[#allocation5 + $0x188] sm:$0xff]
    %v2314 = vld [vmem:[#allocation5 + $0x190] sm:$0xff]
    %v2315 = vld [vmem:[#allocation5 + $0x198] sm:$0xff]
    %v2316 = vld [vmem:[#allocation5 + $0x1a0] sm:$0xff]
    %v2317 = vld [vmem:[#allocation5 + $0x1a8] sm:$0xff]
    %v2318 = vld [vmem:[#allocation5 + $0x1b0] sm:$0xff]
    %v2319 = vld [vmem:[#allocation5 + $0x1b8] sm:$0xff]
    %v2320 = vld [vmem:[#allocation5 + $0x1c0] sm:$0xff]
    %v2321 = vld [vmem:[#allocation5 + $0x1c8] sm:$0xff]
    %v2322 = vld [vmem:[#allocation5 + $0x1d0] sm:$0xff]
    %v2323 = vld [vmem:[#allocation5 + $0x1d8] sm:$0xff]
    %v2324 = vld [vmem:[#allocation5 + $0x1e0] sm:$0xff]
    %v2325 = vld [vmem:[#allocation5 + $0x1e8] sm:$0xff]
    %v2326 = vld [vmem:[#allocation5 + $0x1f0] sm:$0xff]
    %v2327 = vld [vmem:[#allocation5 + $0x1f8] sm:$0xff]
    %v2328 = vld [vmem:[#allocation5 + $0x200] sm:$0xff]
    %v2329 = vld [vmem:[#allocation5 + $0x208] sm:$0xff]
    %v2330 = vld [vmem:[#allocation5 + $0x210] sm:$0xff]
    %v2331 = vld [vmem:[#allocation5 + $0x218] sm:$0xff]
    %v2332 = vld [vmem:[#allocation5 + $0x220] sm:$0xff]
    %v2333 = vld [vmem:[#allocation5 + $0x228] sm:$0xff]
    %v2334 = vld [vmem:[#allocation5 + $0x230] sm:$0xff]
    %v2335 = vld [vmem:[#allocation5 + $0x238] sm:$0xff]
    %v2336 = vrot.slane %v2284, 7
    %v2337 = vrot.slane %v2285, 7
    %v2338 = vrot.slane %v2286, 7
    %v2339 = vrot.slane %v2287, 7
    %v2340 = vsel %vm137, %v2338, %v2339
    %v2341 = vsel %vm137, %v2337, %v2338
    %v2342 = vsel %vm137, %v2336, %v2337
    %v2343 = vsel %vm137, %v2339, %v2336
    %v2344 = vsel %vm146, %v2343, 0.0
    %v2345 = vsel %vm147, %v2342, 0.0
    %v2346 = vsel %vm148, %v2341, 0.0
    %v2347 = vsel %vm149, %v2340, 0.0
    %2348 = vmatprep.subr.mxu0 0.0
    %v2349 = vand.u32 %v2304, 4294901760
    %2350 = vmatpush1.msra.mxu0 %v2349
    %2351 = vmatprep.subr.mxu0 0.0
    %v2352 = vand.u32 %v2305, 4294901760
    %2353 = vmatpush1.msra.mxu0 %v2352
    %2354 = vmatprep.subr.mxu0 0.0
    %v2355 = vand.u32 %v2306, 4294901760
    %2356 = vmatpush1.msra.mxu0 %v2355
    %2357 = vmatprep.subr.mxu0 0.0
    %v2358 = vand.u32 %v2307, 4294901760
    %2359 = vmatpush1.msra.mxu0 %v2358
    %2360 = vmatprep.subr.mxu0 0.0
    %v2361 = vand.u32 %v2308, 4294901760
    %2362 = vmatpush1.msra.mxu0 %v2361
    %2363 = vmatprep.subr.mxu0 0.0
    %v2364 = vand.u32 %v2309, 4294901760
    %2365 = vmatpush1.msra.mxu0 %v2364
    %2366 = vmatprep.subr.mxu0 0.0
    %v2367 = vand.u32 %v2310, 4294901760
    %2368 = vmatpush1.msra.mxu0 %v2367
    %2369 = vmatprep.subr.mxu0 0.0
    %v2370 = vand.u32 %v2311, 4294901760
    %2371 = vmatpush1.msra.mxu0 %v2370
    %2372 = vmatprep.subr.mxu0 0.0
    %v2373 = vand.u32 %v2312, 4294901760
    %2374 = vmatpush1.msra.mxu0 %v2373
    %2375 = vmatprep.subr.mxu0 0.0
    %v2376 = vand.u32 %v2313, 4294901760
    %2377 = vmatpush1.msra.mxu0 %v2376
    %2378 = vmatprep.subr.mxu0 0.0
    %v2379 = vand.u32 %v2314, 4294901760
    %2380 = vmatpush1.msra.mxu0 %v2379
    %2381 = vmatprep.subr.mxu0 0.0
    %v2382 = vand.u32 %v2315, 4294901760
    %2383 = vmatpush1.msra.mxu0 %v2382
    %2384 = vmatprep.subr.mxu0 0.0
    %v2385 = vand.u32 %v2316, 4294901760
    %2386 = vmatpush1.msra.mxu0 %v2385
    %2387 = vmatprep.subr.mxu0 0.0
    %v2388 = vand.u32 %v2317, 4294901760
    %2389 = vmatpush1.msra.mxu0 %v2388
    %2390 = vmatprep.subr.mxu0 0.0
    %v2391 = vand.u32 %v2318, 4294901760
    %2392 = vmatpush1.msra.mxu0 %v2391
    %2393 = vmatprep.subr.mxu0 0.0
    %v2394 = vand.u32 %v2319, 4294901760
    %2395 = vmatpush1.msra.mxu0 %v2394
    %2396 = vmatprep.subr.mxu0 0.0
    %2397 = vmatpush1.msra.mxu0 0.0
    %2398 = vmatprep.subr.mxu0 0.0
    %2399 = vmatpush1.msra.mxu0 0.0
    %2400 = vmatprep.subr.mxu0 0.0
    %2401 = vmatpush1.msra.mxu0 0.0
    %2402 = vmatprep.subr.mxu0 0.0
    %2403 = vmatpush1.msra.mxu0 0.0
    %2404 = vmatprep.subr.mxu0 0.0
    %2405 = vmatpush1.msra.mxu0 0.0
    %2406 = vmatprep.subr.mxu0 0.0
    %2407 = vmatpush1.msra.mxu0 0.0
    %2408 = vmatprep.subr.mxu0 0.0
    %2409 = vmatpush1.msra.mxu0 0.0
    %2410 = vmatprep.subr.mxu0 0.0
    %2411 = vmatpush1.msra.mxu0 0.0
    %2412 = vmatprep.subr.mxu0 0.0
    %2413 = vmatpush1.msra.mxu0 0.0
    %2414 = vmatprep.subr.mxu0 0.0
    %2415 = vmatpush1.msra.mxu0 0.0
    %2416 = vmatprep.subr.mxu0 0.0
    %2417 = vmatpush1.msra.mxu0 0.0
    %2418 = vmatprep.subr.mxu0 0.0
    %2419 = vmatpush1.msra.mxu0 0.0
    %2420 = vmatprep.subr.mxu0 0.0
    %2421 = vmatpush1.msra.mxu0 0.0
    %2422 = vmatprep.subr.mxu0 0.0
    %2423 = vmatpush1.msra.mxu0 0.0
    %2424 = vmatprep.subr.mxu0 0.0
    %2425 = vmatpush1.msra.mxu0 0.0
    %2426 = vmatprep.subr.mxu0 0.0
    %2427 = vmatpush1.msra.mxu0 0.0
    %2428 = vmatprep.mubr.f32.mxu0 0.0
    %v2429 = vand.u32 %v2284, 4294901760
    %v2430 = vsub.f32 %v2284, %v2429
    %v2431 = vand.u32 %v2430, 4294901760
    %v2432 = vsub.f32 %v2430, %v2431
    %v2433 = vand.u32 %v2432, 4294901760
    %2434 = vmatmul.mubr.f32.gmra.mrb[0].mxu0 %v2433
    %v2435 = vpop.f32.mrb[0].mxu0
    %v2436 = vadd.f32 0.0, %v2435
    %v2437 = vpop.f32.mrb[0].mxu0
    %2438 = vmatprep.mubr.f32.mxu0 0.0
    %v2439 = vand.u32 %v2285, 4294901760
    %v2440 = vsub.f32 %v2285, %v2439
    %v2441 = vand.u32 %v2440, 4294901760
    %v2442 = vsub.f32 %v2440, %v2441
    %v2443 = vand.u32 %v2442, 4294901760
    %2444 = vmatmul.mubr.f32.gmra.mrb[0].mxu0 %v2443
    %v2445 = vpop.f32.mrb[0].mxu0
    %v2446 = vadd.f32 0.0, %v2445
    %v2447 = vpop.f32.mrb[0].mxu0
    %2448 = vmatprep.mubr.f32.mxu0 0.0
    %v2449 = vand.u32 %v2286, 4294901760
    %v2450 = vsub.f32 %v2286, %v2449
    %v2451 = vand.u32 %v2450, 4294901760
    %v2452 = vsub.f32 %v2450, %v2451
    %v2453 = vand.u32 %v2452, 4294901760
    %2454 = vmatmul.mubr.f32.gmra.mrb[0].mxu0 %v2453
    %v2455 = vpop.f32.mrb[0].mxu0
    %v2456 = vadd.f32 0.0, %v2455
    %v2457 = vpop.f32.mrb[0].mxu0
    %2458 = vmatprep.mubr.f32.mxu0 0.0
    %v2459 = vand.u32 %v2287, 4294901760
    %v2460 = vsub.f32 %v2287, %v2459
    %v2461 = vand.u32 %v2460, 4294901760
    %v2462 = vsub.f32 %v2460, %v2461
    %v2463 = vand.u32 %v2462, 4294901760
    %2464 = vmatmul.mubr.f32.gmra.mrb[0].mxu0 %v2463
    %v2465 = vpop.f32.mrb[0].mxu0
    %v2466 = vadd.f32 0.0, %v2465
    %v2467 = vpop.f32.mrb[0].mxu0
    %2468 = vdwg.mxu0
    %2469 = vmatprep.subr.mxu0 0.0
    %v2470 = vand.u32 %v2304, 4294901760
    %v2471 = vsub.f32 %v2304, %v2470
    %v2472 = vand.u32 %v2471, 4294901760
    %v2473 = vsub.f32 %v2471, %v2472
    %v2474 = vand.u32 %v2473, 4294901760
    %2475 = vmatpush1.msra.mxu0 %v2474
    %2476 = vmatprep.subr.mxu0 0.0
    %v2477 = vand.u32 %v2305, 4294901760
    %v2478 = vsub.f32 %v2305, %v2477
    %v2479 = vand.u32 %v2478, 4294901760
    %v2480 = vsub.f32 %v2478, %v2479
    %v2481 = vand.u32 %v2480, 4294901760
    %2482 = vmatpush1.msra.mxu0 %v2481
    %2483 = vmatprep.subr.mxu0 0.0
    %v2484 = vand.u32 %v2306, 4294901760
    %v2485 = vsub.f32 %v2306, %v2484
    %v2486 = vand.u32 %v2485, 4294901760
    %v2487 = vsub.f32 %v2485, %v2486
    %v2488 = vand.u32 %v2487, 4294901760
    %2489 = vmatpush1.msra.mxu0 %v2488
    %2490 = vmatprep.subr.mxu0 0.0
    %v2491 = vand.u32 %v2307, 4294901760
    %v2492 = vsub.f32 %v2307, %v2491
    %v2493 = vand.u32 %v2492, 4294901760
    %v2494 = vsub.f32 %v2492, %v2493
    %v2495 = vand.u32 %v2494, 4294901760
    %2496 = vmatpush1.msra.mxu0 %v2495
    %2497 = vmatprep.subr.mxu0 0.0
    %v2498 = vand.u32 %v2308, 4294901760
    %v2499 = vsub.f32 %v2308, %v2498
    %v2500 = vand.u32 %v2499, 4294901760
    %v2501 = vsub.f32 %v2499, %v2500
    %v2502 = vand.u32 %v2501, 4294901760
    %2503 = vmatpush1.msra.mxu0 %v2502
    %2504 = vmatprep.subr.mxu0 0.0
    %v2505 = vand.u32 %v2309, 4294901760
    %v2506 = vsub.f32 %v2309, %v2505
    %v2507 = vand.u32 %v2506, 4294901760
    %v2508 = vsub.f32 %v2506, %v2507
    %v2509 = vand.u32 %v2508, 4294901760
    %2510 = vmatpush1.msra.mxu0 %v2509
    %2511 = vmatprep.subr.mxu0 0.0
    %v2512 = vand.u32 %v2310, 4294901760
    %v2513 = vsub.f32 %v2310, %v2512
    %v2514 = vand.u32 %v2513, 4294901760
    %v2515 = vsub.f32 %v2513, %v2514
    %v2516 = vand.u32 %v2515, 4294901760
    %2517 = vmatpush1.msra.mxu0 %v2516
    %2518 = vmatprep.subr.mxu0 0.0
    %v2519 = vand.u32 %v2311, 4294901760
    %v2520 = vsub.f32 %v2311, %v2519
    %v2521 = vand.u32 %v2520, 4294901760
    %v2522 = vsub.f32 %v2520, %v2521
    %v2523 = vand.u32 %v2522, 4294901760
    %2524 = vmatpush1.msra.mxu0 %v2523
    %2525 = vmatprep.subr.mxu0 0.0
    %v2526 = vand.u32 %v2312, 4294901760
    %v2527 = vsub.f32 %v2312, %v2526
    %v2528 = vand.u32 %v2527, 4294901760
    %v2529 = vsub.f32 %v2527, %v2528
    %v2530 = vand.u32 %v2529, 4294901760
    %2531 = vmatpush1.msra.mxu0 %v2530
    %2532 = vmatprep.subr.mxu0 0.0
    %v2533 = vand.u32 %v2313, 4294901760
    %v2534 = vsub.f32 %v2313, %v2533
    %v2535 = vand.u32 %v2534, 4294901760
    %v2536 = vsub.f32 %v2534, %v2535
    %v2537 = vand.u32 %v2536, 4294901760
    %2538 = vmatpush1.msra.mxu0 %v2537
    %2539 = vmatprep.subr.mxu0 0.0
    %v2540 = vand.u32 %v2314, 4294901760
    %v2541 = vsub.f32 %v2314, %v2540
    %v2542 = vand.u32 %v2541, 4294901760
    %v2543 = vsub.f32 %v2541, %v2542
    %v2544 = vand.u32 %v2543, 4294901760
    %2545 = vmatpush1.msra.mxu0 %v2544
    %2546 = vmatprep.subr.mxu0 0.0
    %v2547 = vand.u32 %v2315, 4294901760
    %v2548 = vsub.f32 %v2315, %v2547
    %v2549 = vand.u32 %v2548, 4294901760
    %v2550 = vsub.f32 %v2548, %v2549
    %v2551 = vand.u32 %v2550, 4294901760
    %2552 = vmatpush1.msra.mxu0 %v2551
    %2553 = vmatprep.subr.mxu0 0.0
    %v2554 = vand.u32 %v2316, 4294901760
    %v2555 = vsub.f32 %v2316, %v2554
    %v2556 = vand.u32 %v2555, 4294901760
    %v2557 = vsub.f32 %v2555, %v2556
    %v2558 = vand.u32 %v2557, 4294901760
    %2559 = vmatpush1.msra.mxu0 %v2558
    %2560 = vmatprep.subr.mxu0 0.0
    %v2561 = vand.u32 %v2317, 4294901760
    %v2562 = vsub.f32 %v2317, %v2561
    %v2563 = vand.u32 %v2562, 4294901760
    %v2564 = vsub.f32 %v2562, %v2563
    %v2565 = vand.u32 %v2564, 4294901760
    %2566 = vmatpush1.msra.mxu0 %v2565
    %2567 = vmatprep.subr.mxu0 0.0
    %v2568 = vand.u32 %v2318, 4294901760
    %v2569 = vsub.f32 %v2318, %v2568
    %v2570 = vand.u32 %v2569, 4294901760
    %v2571 = vsub.f32 %v2569, %v2570
    %v2572 = vand.u32 %v2571, 4294901760
    %2573 = vmatpush1.msra.mxu0 %v2572
    %2574 = vmatprep.subr.mxu0 0.0
    %v2575 = vand.u32 %v2319, 4294901760
    %v2576 = vsub.f32 %v2319, %v2575
    %v2577 = vand.u32 %v2576, 4294901760
    %v2578 = vsub.f32 %v2576, %v2577
    %v2579 = vand.u32 %v2578, 4294901760
    %2580 = vmatpush1.msra.mxu0 %v2579
    %2581 = vmatprep.subr.mxu0 0.0
    %2582 = vmatpush1.msra.mxu0 0.0
    %2583 = vmatprep.subr.mxu0 0.0
    %2584 = vmatpush1.msra.mxu0 0.0
    %2585 = vmatprep.subr.mxu0 0.0
    %2586 = vmatpush1.msra.mxu0 0.0
    %2587 = vmatprep.subr.mxu0 0.0
    %2588 = vmatpush1.msra.mxu0 0.0
    %2589 = vmatprep.subr.mxu0 0.0
    %2590 = vmatpush1.msra.mxu0 0.0
    %2591 = vmatprep.subr.mxu0 0.0
    %2592 = vmatpush1.msra.mxu0 0.0
    %2593 = vmatprep.subr.mxu0 0.0
    %2594 = vmatpush1.msra.mxu0 0.0
    %2595 = vmatprep.subr.mxu0 0.0
    %2596 = vmatpush1.msra.mxu0 0.0
    %2597 = vmatprep.subr.mxu0 0.0
    %2598 = vmatpush1.msra.mxu0 0.0
    %2599 = vmatprep.subr.mxu0 0.0
    %2600 = vmatpush1.msra.mxu0 0.0
    %2601 = vmatprep.subr.mxu0 0.0
    %2602 = vmatpush1.msra.mxu0 0.0
    %2603 = vmatprep.subr.mxu0 0.0
    %2604 = vmatpush1.msra.mxu0 0.0
    %2605 = vmatprep.subr.mxu0 0.0
    %2606 = vmatpush1.msra.mxu0 0.0
    %2607 = vmatprep.subr.mxu0 0.0
    %2608 = vmatpush1.msra.mxu0 0.0
    %2609 = vmatprep.subr.mxu0 0.0
    %2610 = vmatpush1.msra.mxu0 0.0
    %2611 = vmatprep.subr.mxu0 0.0
    %2612 = vmatpush1.msra.mxu0 0.0
    %2613 = vmatprep.mubr.f32.mxu0 0.0
    %v2614 = vand.u32 %v2284, 4294901760
    %2615 = vmatmul.mubr.f32.gmra.mrb[0].mxu0 %v2614
    %v2616 = vpop.f32.mrb[0].mxu0
    %v2617 = vadd.f32 %v2436, %v2616
    %v2618 = vpop.f32.mrb[0].mxu0
    %2619 = vmatprep.mubr.f32.mxu0 0.0
    %v2620 = vand.u32 %v2285, 4294901760
    %2621 = vmatmul.mubr.f32.gmra.mrb[0].mxu0 %v2620
    %v2622 = vpop.f32.mrb[0].mxu0
    %v2623 = vadd.f32 %v2446, %v2622
    %v2624 = vpop.f32.mrb[0].mxu0
    %2625 = vmatprep.mubr.f32.mxu0 0.0
    %v2626 = vand.u32 %v2286, 4294901760
    %2627 = vmatmul.mubr.f32.gmra.mrb[0].mxu0 %v2626
    %v2628 = vpop.f32.mrb[0].mxu0
    %v2629 = vadd.f32 %v2456, %v2628
    %v2630 = vpop.f32.mrb[0].mxu0
    %2631 = vmatprep.mubr.f32.mxu0 0.0
    %v2632 = vand.u32 %v2287, 4294901760
    %2633 = vmatmul.mubr.f32.gmra.mrb[0].mxu0 %v2632
    %v2634 = vpop.f32.mrb[0].mxu0
    %v2635 = vadd.f32 %v2466, %v2634
    %v2636 = vpop.f32.mrb[0].mxu0
    %2637 = vdwg.mxu0
    %2638 = vmatprep.subr.mxu0 0.0
    %v2639 = vand.u32 %v2304, 4294901760
    %v2640 = vsub.f32 %v2304, %v2639
    %2641 = vmatpush1.msra.mxu0 %v2640
    %2642 = vmatprep.subr.mxu0 0.0
    %v2643 = vand.u32 %v2305, 4294901760
    %v2644 = vsub.f32 %v2305, %v2643
    %2645 = vmatpush1.msra.mxu0 %v2644
    %2646 = vmatprep.subr.mxu0 0.0
    %v2647 = vand.u32 %v2306, 4294901760
    %v2648 = vsub.f32 %v2306, %v2647
    %2649 = vmatpush1.msra.mxu0 %v2648
    %2650 = vmatprep.subr.mxu0 0.0
    %v2651 = vand.u32 %v2307, 4294901760
    %v2652 = vsub.f32 %v2307, %v2651
    %2653 = vmatpush1.msra.mxu0 %v2652
    %2654 = vmatprep.subr.mxu0 0.0
    %v2655 = vand.u32 %v2308, 4294901760
    %v2656 = vsub.f32 %v2308, %v2655
    %2657 = vmatpush1.msra.mxu0 %v2656
    %2658 = vmatprep.subr.mxu0 0.0
    %v2659 = vand.u32 %v2309, 4294901760
    %v2660 = vsub.f32 %v2309, %v2659
    %2661 = vmatpush1.msra.mxu0 %v2660
    %2662 = vmatprep.subr.mxu0 0.0
    %v2663 = vand.u32 %v2310, 4294901760
    %v2664 = vsub.f32 %v2310, %v2663
    %2665 = vmatpush1.msra.mxu0 %v2664
    %2666 = vmatprep.subr.mxu0 0.0
    %v2667 = vand.u32 %v2311, 4294901760
    %v2668 = vsub.f32 %v2311, %v2667
    %2669 = vmatpush1.msra.mxu0 %v2668
    %2670 = vmatprep.subr.mxu0 0.0
    %v2671 = vand.u32 %v2312, 4294901760
    %v2672 = vsub.f32 %v2312, %v2671
    %2673 = vmatpush1.msra.mxu0 %v2672
    %2674 = vmatprep.subr.mxu0 0.0
    %v2675 = vand.u32 %v2313, 4294901760
    %v2676 = vsub.f32 %v2313, %v2675
    %2677 = vmatpush1.msra.mxu0 %v2676
    %2678 = vmatprep.subr.mxu0 0.0
    %v2679 = vand.u32 %v2314, 4294901760
    %v2680 = vsub.f32 %v2314, %v2679
    %2681 = vmatpush1.msra.mxu0 %v2680
    %2682 = vmatprep.subr.mxu0 0.0
    %v2683 = vand.u32 %v2315, 4294901760
    %v2684 = vsub.f32 %v2315, %v2683
    %2685 = vmatpush1.msra.mxu0 %v2684
    %2686 = vmatprep.subr.mxu0 0.0
    %v2687 = vand.u32 %v2316, 4294901760
    %v2688 = vsub.f32 %v2316, %v2687
    %2689 = vmatpush1.msra.mxu0 %v2688
    %2690 = vmatprep.subr.mxu0 0.0
    %v2691 = vand.u32 %v2317, 4294901760
    %v2692 = vsub.f32 %v2317, %v2691
    %2693 = vmatpush1.msra.mxu0 %v2692
    %2694 = vmatprep.subr.mxu0 0.0
    %v2695 = vand.u32 %v2318, 4294901760
    %v2696 = vsub.f32 %v2318, %v2695
    %2697 = vmatpush1.msra.mxu0 %v2696
    %2698 = vmatprep.subr.mxu0 0.0
    %v2699 = vand.u32 %v2319, 4294901760
    %v2700 = vsub.f32 %v2319, %v2699
    %2701 = vmatpush1.msra.mxu0 %v2700
    %2702 = vmatprep.subr.mxu0 0.0
    %2703 = vmatpush1.msra.mxu0 0.0
    %2704 = vmatprep.subr.mxu0 0.0
    %2705 = vmatpush1.msra.mxu0 0.0
    %2706 = vmatprep.subr.mxu0 0.0
    %2707 = vmatpush1.msra.mxu0 0.0
    %2708 = vmatprep.subr.mxu0 0.0
    %2709 = vmatpush1.msra.mxu0 0.0
    %2710 = vmatprep.subr.mxu0 0.0
    %2711 = vmatpush1.msra.mxu0 0.0
    %2712 = vmatprep.subr.mxu0 0.0
    %2713 = vmatpush1.msra.mxu0 0.0
    %2714 = vmatprep.subr.mxu0 0.0
    %2715 = vmatpush1.msra.mxu0 0.0
    %2716 = vmatprep.subr.mxu0 0.0
    %2717 = vmatpush1.msra.mxu0 0.0
    %2718 = vmatprep.subr.mxu0 0.0
    %2719 = vmatpush1.msra.mxu0 0.0
    %2720 = vmatprep.subr.mxu0 0.0
    %2721 = vmatpush1.msra.mxu0 0.0
    %2722 = vmatprep.subr.mxu0 0.0
    %2723 = vmatpush1.msra.mxu0 0.0
    %2724 = vmatprep.subr.mxu0 0.0
    %2725 = vmatpush1.msra.mxu0 0.0
    %2726 = vmatprep.subr.mxu0 0.0
    %2727 = vmatpush1.msra.mxu0 0.0
    %2728 = vmatprep.subr.mxu0 0.0
    %2729 = vmatpush1.msra.mxu0 0.0
    %2730 = vmatprep.subr.mxu0 0.0
    %2731 = vmatpush1.msra.mxu0 0.0
    %2732 = vmatprep.subr.mxu0 0.0
    %2733 = vmatpush1.msra.mxu0 0.0
    %2734 = vmatprep.mubr.f32.mxu0 0.0
    %v2735 = vand.u32 %v2284, 4294901760
    %v2736 = vsub.f32 %v2284, %v2735
    %2737 = vmatmul.mubr.f32.gmra.mrb[0].mxu0 %v2736
    %v2738 = vpop.f32.mrb[0].mxu0
    %v2739 = vadd.f32 %v2617, %v2738
    %v2740 = vpop.f32.mrb[0].mxu0
    %2741 = vmatprep.mubr.f32.mxu0 0.0
    %v2742 = vand.u32 %v2285, 4294901760
    %v2743 = vsub.f32 %v2285, %v2742
    %2744 = vmatmul.mubr.f32.gmra.mrb[0].mxu0 %v2743
    %v2745 = vpop.f32.mrb[0].mxu0
    %v2746 = vadd.f32 %v2623, %v2745
    %v2747 = vpop.f32.mrb[0].mxu0
    %2748 = vmatprep.mubr.f32.mxu0 0.0
    %v2749 = vand.u32 %v2286, 4294901760
    %v2750 = vsub.f32 %v2286, %v2749
    %2751 = vmatmul.mubr.f32.gmra.mrb[0].mxu0 %v2750
    %v2752 = vpop.f32.mrb[0].mxu0
    %v2753 = vadd.f32 %v2629, %v2752
    %v2754 = vpop.f32.mrb[0].mxu0
    %2755 = vmatprep.mubr.f32.mxu0 0.0
    %v2756 = vand.u32 %v2287, 4294901760
    %v2757 = vsub.f32 %v2287, %v2756
    %2758 = vmatmul.mubr.f32.gmra.mrb[0].mxu0 %v2757
    %v2759 = vpop.f32.mrb[0].mxu0
    %v2760 = vadd.f32 %v2635, %v2759
    %v2761 = vpop.f32.mrb[0].mxu0
    %2762 = vdwg.mxu0
    %2763 = vmatprep.subr.mxu0 0.0
    %v2764 = vand.u32 %v2304, 4294901760
    %2765 = vmatpush1.msra.mxu0 %v2764
    %2766 = vmatprep.subr.mxu0 0.0
    %v2767 = vand.u32 %v2305, 4294901760
    %2768 = vmatpush1.msra.mxu0 %v2767
    %2769 = vmatprep.subr.mxu0 0.0
    %v2770 = vand.u32 %v2306, 4294901760
    %2771 = vmatpush1.msra.mxu0 %v2770
    %2772 = vmatprep.subr.mxu0 0.0
    %v2773 = vand.u32 %v2307, 4294901760
    %2774 = vmatpush1.msra.mxu0 %v2773
    %2775 = vmatprep.subr.mxu0 0.0
    %v2776 = vand.u32 %v2308, 4294901760
    %2777 = vmatpush1.msra.mxu0 %v2776
    %2778 = vmatprep.subr.mxu0 0.0
    %v2779 = vand.u32 %v2309, 4294901760
    %2780 = vmatpush1.msra.mxu0 %v2779
    %2781 = vmatprep.subr.mxu0 0.0
    %v2782 = vand.u32 %v2310, 4294901760
    %2783 = vmatpush1.msra.mxu0 %v2782
    %2784 = vmatprep.subr.mxu0 0.0
    %v2785 = vand.u32 %v2311, 4294901760
    %2786 = vmatpush1.msra.mxu0 %v2785
    %2787 = vmatprep.subr.mxu0 0.0
    %v2788 = vand.u32 %v2312, 4294901760
    %2789 = vmatpush1.msra.mxu0 %v2788
    %2790 = vmatprep.subr.mxu0 0.0
    %v2791 = vand.u32 %v2313, 4294901760
    %2792 = vmatpush1.msra.mxu0 %v2791
    %2793 = vmatprep.subr.mxu0 0.0
    %v2794 = vand.u32 %v2314, 4294901760
    %2795 = vmatpush1.msra.mxu0 %v2794
    %2796 = vmatprep.subr.mxu0 0.0
    %v2797 = vand.u32 %v2315, 4294901760
    %2798 = vmatpush1.msra.mxu0 %v2797
    %2799 = vmatprep.subr.mxu0 0.0
    %v2800 = vand.u32 %v2316, 4294901760
    %2801 = vmatpush1.msra.mxu0 %v2800
    %2802 = vmatprep.subr.mxu0 0.0
    %v2803 = vand.u32 %v2317, 4294901760
    %2804 = vmatpush1.msra.mxu0 %v2803
    %2805 = vmatprep.subr.mxu0 0.0
    %v2806 = vand.u32 %v2318, 4294901760
    %2807 = vmatpush1.msra.mxu0 %v2806
    %2808 = vmatprep.subr.mxu0 0.0
    %v2809 = vand.u32 %v2319, 4294901760
    %2810 = vmatpush1.msra.mxu0 %v2809
    %2811 = vmatprep.subr.mxu0 0.0
    %2812 = vmatpush1.msra.mxu0 0.0
    %2813 = vmatprep.subr.mxu0 0.0
    %2814 = vmatpush1.msra.mxu0 0.0
    %2815 = vmatprep.subr.mxu0 0.0
    %2816 = vmatpush1.msra.mxu0 0.0
    %2817 = vmatprep.subr.mxu0 0.0
    %2818 = vmatpush1.msra.mxu0 0.0
    %2819 = vmatprep.subr.mxu0 0.0
    %2820 = vmatpush1.msra.mxu0 0.0
    %2821 = vmatprep.subr.mxu0 0.0
    %2822 = vmatpush1.msra.mxu0 0.0
    %2823 = vmatprep.subr.mxu0 0.0
    %2824 = vmatpush1.msra.mxu0 0.0
    %2825 = vmatprep.subr.mxu0 0.0
    %2826 = vmatpush1.msra.mxu0 0.0
    %2827 = vmatprep.subr.mxu0 0.0
    %2828 = vmatpush1.msra.mxu0 0.0
    %2829 = vmatprep.subr.mxu0 0.0
    %2830 = vmatpush1.msra.mxu0 0.0
    %2831 = vmatprep.subr.mxu0 0.0
    %2832 = vmatpush1.msra.mxu0 0.0
    %2833 = vmatprep.subr.mxu0 0.0
    %2834 = vmatpush1.msra.mxu0 0.0
    %2835 = vmatprep.subr.mxu0 0.0
    %2836 = vmatpush1.msra.mxu0 0.0
    %2837 = vmatprep.subr.mxu0 0.0
    %2838 = vmatpush1.msra.mxu0 0.0
    %2839 = vmatprep.subr.mxu0 0.0
    %2840 = vmatpush1.msra.mxu0 0.0
    %2841 = vmatprep.subr.mxu0 0.0
    %2842 = vmatpush1.msra.mxu0 0.0
    %2843 = vmatprep.mubr.f32.mxu0 0.0
    %v2844 = vand.u32 %v2284, 4294901760
    %v2845 = vsub.f32 %v2284, %v2844
    %v2846 = vand.u32 %v2845, 4294901760
    %2847 = vmatmul.mubr.f32.gmra.mrb[0].mxu0 %v2846
    %v2848 = vpop.f32.mrb[0].mxu0
    %v2849 = vadd.f32 %v2739, %v2848
    %v2850 = vpop.f32.mrb[0].mxu0
    %2851 = vmatprep.mubr.f32.mxu0 0.0
    %v2852 = vand.u32 %v2285, 4294901760
    %v2853 = vsub.f32 %v2285, %v2852
    %v2854 = vand.u32 %v2853, 4294901760
    %2855 = vmatmul.mubr.f32.gmra.mrb[0].mxu0 %v2854
    %v2856 = vpop.f32.mrb[0].mxu0
    %v2857 = vadd.f32 %v2746, %v2856
    %v2858 = vpop.f32.mrb[0].mxu0
    %2859 = vmatprep.mubr.f32.mxu0 0.0
    %v2860 = vand.u32 %v2286, 4294901760
    %v2861 = vsub.f32 %v2286, %v2860
    %v2862 = vand.u32 %v2861, 4294901760
    %2863 = vmatmul.mubr.f32.gmra.mrb[0].mxu0 %v2862
    %v2864 = vpop.f32.mrb[0].mxu0
    %v2865 = vadd.f32 %v2753, %v2864
    %v2866 = vpop.f32.mrb[0].mxu0
    %2867 = vmatprep.mubr.f32.mxu0 0.0
    %v2868 = vand.u32 %v2287, 4294901760
    %v2869 = vsub.f32 %v2287, %v2868
    %v2870 = vand.u32 %v2869, 4294901760
    %2871 = vmatmul.mubr.f32.gmra.mrb[0].mxu0 %v2870
    %v2872 = vpop.f32.mrb[0].mxu0
    %v2873 = vadd.f32 %v2760, %v2872
    %v2874 = vpop.f32.mrb[0].mxu0
    %2875 = vdwg.mxu0
    %2876 = vmatprep.subr.mxu0 0.0
    %v2877 = vand.u32 %v2304, 4294901760
    %v2878 = vsub.f32 %v2304, %v2877
    %v2879 = vand.u32 %v2878, 4294901760
    %2880 = vmatpush1.msra.mxu0 %v2879
    %2881 = vmatprep.subr.mxu0 0.0
    %v2882 = vand.u32 %v2305, 4294901760
    %v2883 = vsub.f32 %v2305, %v2882
    %v2884 = vand.u32 %v2883, 4294901760
    %2885 = vmatpush1.msra.mxu0 %v2884
    %2886 = vmatprep.subr.mxu0 0.0
    %v2887 = vand.u32 %v2306, 4294901760
    %v2888 = vsub.f32 %v2306, %v2887
    %v2889 = vand.u32 %v2888, 4294901760
    %2890 = vmatpush1.msra.mxu0 %v2889
    %2891 = vmatprep.subr.mxu0 0.0
    %v2892 = vand.u32 %v2307, 4294901760
    %v2893 = vsub.f32 %v2307, %v2892
    %v2894 = vand.u32 %v2893, 4294901760
    %2895 = vmatpush1.msra.mxu0 %v2894
    %2896 = vmatprep.subr.mxu0 0.0
    %v2897 = vand.u32 %v2308, 4294901760
    %v2898 = vsub.f32 %v2308, %v2897
    %v2899 = vand.u32 %v2898, 4294901760
    %2900 = vmatpush1.msra.mxu0 %v2899
    %2901 = vmatprep.subr.mxu0 0.0
    %v2902 = vand.u32 %v2309, 4294901760
    %v2903 = vsub.f32 %v2309, %v2902
    %v2904 = vand.u32 %v2903, 4294901760
    %2905 = vmatpush1.msra.mxu0 %v2904
    %2906 = vmatprep.subr.mxu0 0.0
    %v2907 = vand.u32 %v2310, 4294901760
    %v2908 = vsub.f32 %v2310, %v2907
    %v2909 = vand.u32 %v2908, 4294901760
    %2910 = vmatpush1.msra.mxu0 %v2909
    %2911 = vmatprep.subr.mxu0 0.0
    %v2912 = vand.u32 %v2311, 4294901760
    %v2913 = vsub.f32 %v2311, %v2912
    %v2914 = vand.u32 %v2913, 4294901760
    %2915 = vmatpush1.msra.mxu0 %v2914
    %2916 = vmatprep.subr.mxu0 0.0
    %v2917 = vand.u32 %v2312, 4294901760
    %v2918 = vsub.f32 %v2312, %v2917
    %v2919 = vand.u32 %v2918, 4294901760
    %2920 = vmatpush1.msra.mxu0 %v2919
    %2921 = vmatprep.subr.mxu0 0.0
    %v2922 = vand.u32 %v2313, 4294901760
    %v2923 = vsub.f32 %v2313, %v2922
    %v2924 = vand.u32 %v2923, 4294901760
    %2925 = vmatpush1.msra.mxu0 %v2924
    %2926 = vmatprep.subr.mxu0 0.0
    %v2927 = vand.u32 %v2314, 4294901760
    %v2928 = vsub.f32 %v2314, %v2927
    %v2929 = vand.u32 %v2928, 4294901760
    %2930 = vmatpush1.msra.mxu0 %v2929
    %2931 = vmatprep.subr.mxu0 0.0
    %v2932 = vand.u32 %v2315, 4294901760
    %v2933 = vsub.f32 %v2315, %v2932
    %v2934 = vand.u32 %v2933, 4294901760
    %2935 = vmatpush1.msra.mxu0 %v2934
    %2936 = vmatprep.subr.mxu0 0.0
    %v2937 = vand.u32 %v2316, 4294901760
    %v2938 = vsub.f32 %v2316, %v2937
    %v2939 = vand.u32 %v2938, 4294901760
    %2940 = vmatpush1.msra.mxu0 %v2939
    %2941 = vmatprep.subr.mxu0 0.0
    %v2942 = vand.u32 %v2317, 4294901760
    %v2943 = vsub.f32 %v2317, %v2942
    %v2944 = vand.u32 %v2943, 4294901760
    %2945 = vmatpush1.msra.mxu0 %v2944
    %2946 = vmatprep.subr.mxu0 0.0
    %v2947 = vand.u32 %v2318, 4294901760
    %v2948 = vsub.f32 %v2318, %v2947
    %v2949 = vand.u32 %v2948, 4294901760
    %2950 = vmatpush1.msra.mxu0 %v2949
    %2951 = vmatprep.subr.mxu0 0.0
    %v2952 = vand.u32 %v2319, 4294901760
    %v2953 = vsub.f32 %v2319, %v2952
    %v2954 = vand.u32 %v2953, 4294901760
    %2955 = vmatpush1.msra.mxu0 %v2954
    %2956 = vmatprep.subr.mxu0 0.0
    %2957 = vmatpush1.msra.mxu0 0.0
    %2958 = vmatprep.subr.mxu0 0.0
    %2959 = vmatpush1.msra.mxu0 0.0
    %2960 = vmatprep.subr.mxu0 0.0
    %2961 = vmatpush1.msra.mxu0 0.0
    %2962 = vmatprep.subr.mxu0 0.0
    %2963 = vmatpush1.msra.mxu0 0.0
    %2964 = vmatprep.subr.mxu0 0.0
    %2965 = vmatpush1.msra.mxu0 0.0
    %2966 = vmatprep.subr.mxu0 0.0
    %2967 = vmatpush1.msra.mxu0 0.0
    %2968 = vmatprep.subr.mxu0 0.0
    %2969 = vmatpush1.msra.mxu0 0.0
    %2970 = vmatprep.subr.mxu0 0.0
    %2971 = vmatpush1.msra.mxu0 0.0
    %2972 = vmatprep.subr.mxu0 0.0
    %2973 = vmatpush1.msra.mxu0 0.0
    %2974 = vmatprep.subr.mxu0 0.0
    %2975 = vmatpush1.msra.mxu0 0.0
    %2976 = vmatprep.subr.mxu0 0.0
    %2977 = vmatpush1.msra.mxu0 0.0
    %2978 = vmatprep.subr.mxu0 0.0
    %2979 = vmatpush1.msra.mxu0 0.0
    %2980 = vmatprep.subr.mxu0 0.0
    %2981 = vmatpush1.msra.mxu0 0.0
    %2982 = vmatprep.subr.mxu0 0.0
    %2983 = vmatpush1.msra.mxu0 0.0
    %2984 = vmatprep.subr.mxu0 0.0
    %2985 = vmatpush1.msra.mxu0 0.0
    %2986 = vmatprep.subr.mxu0 0.0
    %2987 = vmatpush1.msra.mxu0 0.0
    %2988 = vmatprep.mubr.f32.mxu0 0.0
    %v2989 = vand.u32 %v2284, 4294901760
    %2990 = vmatmul.mubr.f32.gmra.mrb[0].mxu0 %v2989
    %v2991 = vpop.f32.mrb[0].mxu0
    %v2992 = vadd.f32 %v2849, %v2991
    %v2993 = vpop.f32.mrb[0].mxu0
    %2994 = vmatprep.mubr.f32.mxu0 0.0
    %v2995 = vand.u32 %v2285, 4294901760
    %2996 = vmatmul.mubr.f32.gmra.mrb[0].mxu0 %v2995
    %v2997 = vpop.f32.mrb[0].mxu0
    %v2998 = vadd.f32 %v2857, %v2997
    %v2999 = vpop.f32.mrb[0].mxu0
    %3000 = vmatprep.mubr.f32.mxu0 0.0
    %v3001 = vand.u32 %v2286, 4294901760
    %3002 = vmatmul.mubr.f32.gmra.mrb[0].mxu0 %v3001
    %v3003 = vpop.f32.mrb[0].mxu0
    %v3004 = vadd.f32 %v2865, %v3003
    %v3005 = vpop.f32.mrb[0].mxu0
    %3006 = vmatprep.mubr.f32.mxu0 0.0
    %v3007 = vand.u32 %v2287, 4294901760
    %3008 = vmatmul.mubr.f32.gmra.mrb[0].mxu0 %v3007
    %v3009 = vpop.f32.mrb[0].mxu0
    %v3010 = vadd.f32 %v2873, %v3009
    %v3011 = vpop.f32.mrb[0].mxu0
    %3012 = vdwg.mxu0
    %3013 = vmatprep.subr.mxu0 0.0
    %v3014 = vand.u32 %v2304, 4294901760
    %3015 = vmatpush1.msra.mxu0 %v3014
    %3016 = vmatprep.subr.mxu0 0.0
    %v3017 = vand.u32 %v2305, 4294901760
    %3018 = vmatpush1.msra.mxu0 %v3017
    %3019 = vmatprep.subr.mxu0 0.0
    %v3020 = vand.u32 %v2306, 4294901760
    %3021 = vmatpush1.msra.mxu0 %v3020
    %3022 = vmatprep.subr.mxu0 0.0
    %v3023 = vand.u32 %v2307, 4294901760
    %3024 = vmatpush1.msra.mxu0 %v3023
    %3025 = vmatprep.subr.mxu0 0.0
    %v3026 = vand.u32 %v2308, 4294901760
    %3027 = vmatpush1.msra.mxu0 %v3026
    %3028 = vmatprep.subr.mxu0 0.0
    %v3029 = vand.u32 %v2309, 4294901760
    %3030 = vmatpush1.msra.mxu0 %v3029
    %3031 = vmatprep.subr.mxu0 0.0
    %v3032 = vand.u32 %v2310, 4294901760
    %3033 = vmatpush1.msra.mxu0 %v3032
    %3034 = vmatprep.subr.mxu0 0.0
    %v3035 = vand.u32 %v2311, 4294901760
    %3036 = vmatpush1.msra.mxu0 %v3035
    %3037 = vmatprep.subr.mxu0 0.0
    %v3038 = vand.u32 %v2312, 4294901760
    %3039 = vmatpush1.msra.mxu0 %v3038
    %3040 = vmatprep.subr.mxu0 0.0
    %v3041 = vand.u32 %v2313, 4294901760
    %3042 = vmatpush1.msra.mxu0 %v3041
    %3043 = vmatprep.subr.mxu0 0.0
    %v3044 = vand.u32 %v2314, 4294901760
    %3045 = vmatpush1.msra.mxu0 %v3044
    %3046 = vmatprep.subr.mxu0 0.0
    %v3047 = vand.u32 %v2315, 4294901760
    %3048 = vmatpush1.msra.mxu0 %v3047
    %3049 = vmatprep.subr.mxu0 0.0
    %v3050 = vand.u32 %v2316, 4294901760
    %3051 = vmatpush1.msra.mxu0 %v3050
    %3052 = vmatprep.subr.mxu0 0.0
    %v3053 = vand.u32 %v2317, 4294901760
    %3054 = vmatpush1.msra.mxu0 %v3053
    %3055 = vmatprep.subr.mxu0 0.0
    %v3056 = vand.u32 %v2318, 4294901760
    %3057 = vmatpush1.msra.mxu0 %v3056
    %3058 = vmatprep.subr.mxu0 0.0
    %v3059 = vand.u32 %v2319, 4294901760
    %3060 = vmatpush1.msra.mxu0 %v3059
    %3061 = vmatprep.subr.mxu0 0.0
    %3062 = vmatpush1.msra.mxu0 0.0
    %3063 = vmatprep.subr.mxu0 0.0
    %3064 = vmatpush1.msra.mxu0 0.0
    %3065 = vmatprep.subr.mxu0 0.0
    %3066 = vmatpush1.msra.mxu0 0.0
    %3067 = vmatprep.subr.mxu0 0.0
    %3068 = vmatpush1.msra.mxu0 0.0
    %3069 = vmatprep.subr.mxu0 0.0
    %3070 = vmatpush1.msra.mxu0 0.0
    %3071 = vmatprep.subr.mxu0 0.0
    %3072 = vmatpush1.msra.mxu0 0.0
    %3073 = vmatprep.subr.mxu0 0.0
    %3074 = vmatpush1.msra.mxu0 0.0
    %3075 = vmatprep.subr.mxu0 0.0
    %3076 = vmatpush1.msra.mxu0 0.0
    %3077 = vmatprep.subr.mxu0 0.0
    %3078 = vmatpush1.msra.mxu0 0.0
    %3079 = vmatprep.subr.mxu0 0.0
    %3080 = vmatpush1.msra.mxu0 0.0
    %3081 = vmatprep.subr.mxu0 0.0
    %3082 = vmatpush1.msra.mxu0 0.0
    %3083 = vmatprep.subr.mxu0 0.0
    %3084 = vmatpush1.msra.mxu0 0.0
    %3085 = vmatprep.subr.mxu0 0.0
    %3086 = vmatpush1.msra.mxu0 0.0
    %3087 = vmatprep.subr.mxu0 0.0
    %3088 = vmatpush1.msra.mxu0 0.0
    %3089 = vmatprep.subr.mxu0 0.0
    %3090 = vmatpush1.msra.mxu0 0.0
    %3091 = vmatprep.subr.mxu0 0.0
    %3092 = vmatpush1.msra.mxu0 0.0
    %3093 = vmatprep.mubr.f32.mxu0 0.0
    %v3094 = vand.u32 %v2284, 4294901760
    %3095 = vmatmul.mubr.f32.gmra.mrb[0].mxu0 %v3094
    %v3096 = vpop.f32.mrb[0].mxu0
    %v3097 = vadd.f32 %v2992, %v3096
    %v3098 = vpop.f32.mrb[0].mxu0
    %3099 = vmatprep.mubr.f32.mxu0 0.0
    %v3100 = vand.u32 %v2285, 4294901760
    %3101 = vmatmul.mubr.f32.gmra.mrb[0].mxu0 %v3100
    %v3102 = vpop.f32.mrb[0].mxu0
    %v3103 = vadd.f32 %v2998, %v3102
    %v3104 = vpop.f32.mrb[0].mxu0
    %3105 = vmatprep.mubr.f32.mxu0 0.0
    %v3106 = vand.u32 %v2286, 4294901760
    %3107 = vmatmul.mubr.f32.gmra.mrb[0].mxu0 %v3106
    %v3108 = vpop.f32.mrb[0].mxu0
    %v3109 = vadd.f32 %v3004, %v3108
    %v3110 = vpop.f32.mrb[0].mxu0
    %3111 = vmatprep.mubr.f32.mxu0 0.0
    %v3112 = vand.u32 %v2287, 4294901760
    %3113 = vmatmul.mubr.f32.gmra.mrb[0].mxu0 %v3112
    %v3114 = vpop.f32.mrb[0].mxu0
    %v3115 = vadd.f32 %v3010, %v3114
    %v3116 = vpop.f32.mrb[0].mxu0
    %3117 = vdwg.mxu0
    %3118 = vmatprep.subr.mxu0 0.0
    %v3119 = vand.u32 %v2288, 4294901760
    %3120 = vmatpush1.msra.mxu0 %v3119
    %3121 = vmatprep.subr.mxu0 0.0
    %v3122 = vand.u32 %v2289, 4294901760
    %3123 = vmatpush1.msra.mxu0 %v3122
    %3124 = vmatprep.subr.mxu0 0.0
    %v3125 = vand.u32 %v2290, 4294901760
    %3126 = vmatpush1.msra.mxu0 %v3125
    %3127 = vmatprep.subr.mxu0 0.0
    %v3128 = vand.u32 %v2291, 4294901760
    %3129 = vmatpush1.msra.mxu0 %v3128
    %3130 = vmatprep.subr.mxu0 0.0
    %v3131 = vand.u32 %v2292, 4294901760
    %3132 = vmatpush1.msra.mxu0 %v3131
    %3133 = vmatprep.subr.mxu0 0.0
    %v3134 = vand.u32 %v2293, 4294901760
    %3135 = vmatpush1.msra.mxu0 %v3134
    %3136 = vmatprep.subr.mxu0 0.0
    %v3137 = vand.u32 %v2294, 4294901760
    %3138 = vmatpush1.msra.mxu0 %v3137
    %3139 = vmatprep.subr.mxu0 0.0
    %v3140 = vand.u32 %v2295, 4294901760
    %3141 = vmatpush1.msra.mxu0 %v3140
    %3142 = vmatprep.subr.mxu0 0.0
    %v3143 = vand.u32 %v2296, 4294901760
    %3144 = vmatpush1.msra.mxu0 %v3143
    %3145 = vmatprep.subr.mxu0 0.0
    %v3146 = vand.u32 %v2297, 4294901760
    %3147 = vmatpush1.msra.mxu0 %v3146
    %3148 = vmatprep.subr.mxu0 0.0
    %v3149 = vand.u32 %v2298, 4294901760
    %3150 = vmatpush1.msra.mxu0 %v3149
    %3151 = vmatprep.subr.mxu0 0.0
    %v3152 = vand.u32 %v2299, 4294901760
    %3153 = vmatpush1.msra.mxu0 %v3152
    %3154 = vmatprep.subr.mxu0 0.0
    %v3155 = vand.u32 %v2300, 4294901760
    %3156 = vmatpush1.msra.mxu0 %v3155
    %3157 = vmatprep.subr.mxu0 0.0
    %v3158 = vand.u32 %v2301, 4294901760
    %3159 = vmatpush1.msra.mxu0 %v3158
    %3160 = vmatprep.subr.mxu0 0.0
    %v3161 = vand.u32 %v2302, 4294901760
    %3162 = vmatpush1.msra.mxu0 %v3161
    %3163 = vmatprep.subr.mxu0 0.0
    %v3164 = vand.u32 %v2303, 4294901760
    %3165 = vmatpush1.msra.mxu0 %v3164
    %3166 = vmatprep.subr.mxu0 0.0
    %3167 = vmatpush1.msra.mxu0 0.0
    %3168 = vmatprep.subr.mxu0 0.0
    %3169 = vmatpush1.msra.mxu0 0.0
    %3170 = vmatprep.subr.mxu0 0.0
    %3171 = vmatpush1.msra.mxu0 0.0
    %3172 = vmatprep.subr.mxu0 0.0
    %3173 = vmatpush1.msra.mxu0 0.0
    %3174 = vmatprep.subr.mxu0 0.0
    %3175 = vmatpush1.msra.mxu0 0.0
    %3176 = vmatprep.subr.mxu0 0.0
    %3177 = vmatpush1.msra.mxu0 0.0
    %3178 = vmatprep.subr.mxu0 0.0
    %3179 = vmatpush1.msra.mxu0 0.0
    %3180 = vmatprep.subr.mxu0 0.0
    %3181 = vmatpush1.msra.mxu0 0.0
    %3182 = vmatprep.subr.mxu0 0.0
    %3183 = vmatpush1.msra.mxu0 0.0
    %3184 = vmatprep.subr.mxu0 0.0
    %3185 = vmatpush1.msra.mxu0 0.0
    %3186 = vmatprep.subr.mxu0 0.0
    %3187 = vmatpush1.msra.mxu0 0.0
    %3188 = vmatprep.subr.mxu0 0.0
    %3189 = vmatpush1.msra.mxu0 0.0
    %3190 = vmatprep.subr.mxu0 0.0
    %3191 = vmatpush1.msra.mxu0 0.0
    %3192 = vmatprep.subr.mxu0 0.0
    %3193 = vmatpush1.msra.mxu0 0.0
    %3194 = vmatprep.subr.mxu0 0.0
    %3195 = vmatpush1.msra.mxu0 0.0
    %3196 = vmatprep.subr.mxu0 0.0
    %3197 = vmatpush1.msra.mxu0 0.0
    %3198 = vmatprep.mubr.f32.mxu0 0.0
    %v3199 = vand.u32 %v2344, 4294901760
    %v3200 = vsub.f32 %v2344, %v3199
    %v3201 = vand.u32 %v3200, 4294901760
    %v3202 = vsub.f32 %v3200, %v3201
    %v3203 = vand.u32 %v3202, 4294901760
    %3204 = vmatmul.mubr.f32.gmra.mrb[0].mxu0 %v3203
    %v3205 = vpop.f32.mrb[0].mxu0
    %v3206 = vadd.f32 %v3097, %v3205
    %v3207 = vpop.f32.mrb[0].mxu0
    %3208 = vmatprep.mubr.f32.mxu0 0.0
    %v3209 = vand.u32 %v2345, 4294901760
    %v3210 = vsub.f32 %v2345, %v3209
    %v3211 = vand.u32 %v3210, 4294901760
    %v3212 = vsub.f32 %v3210, %v3211
    %v3213 = vand.u32 %v3212, 4294901760
    %3214 = vmatmul.mubr.f32.gmra.mrb[0].mxu0 %v3213
    %v3215 = vpop.f32.mrb[0].mxu0
    %v3216 = vadd.f32 %v3103, %v3215
    %v3217 = vpop.f32.mrb[0].mxu0
    %3218 = vmatprep.mubr.f32.mxu0 0.0
    %v3219 = vand.u32 %v2346, 4294901760
    %v3220 = vsub.f32 %v2346, %v3219
    %v3221 = vand.u32 %v3220, 4294901760
    %v3222 = vsub.f32 %v3220, %v3221
    %v3223 = vand.u32 %v3222, 4294901760
    %3224 = vmatmul.mubr.f32.gmra.mrb[0].mxu0 %v3223
    %v3225 = vpop.f32.mrb[0].mxu0
    %v3226 = vadd.f32 %v3109, %v3225
    %v3227 = vpop.f32.mrb[0].mxu0
    %3228 = vmatprep.mubr.f32.mxu0 0.0
    %v3229 = vand.u32 %v2347, 4294901760
    %v3230 = vsub.f32 %v2347, %v3229
    %v3231 = vand.u32 %v3230, 4294901760
    %v3232 = vsub.f32 %v3230, %v3231
    %v3233 = vand.u32 %v3232, 4294901760
    %3234 = vmatmul.mubr.f32.gmra.mrb[0].mxu0 %v3233
    %v3235 = vpop.f32.mrb[0].mxu0
    %v3236 = vadd.f32 %v3115, %v3235
    %v3237 = vpop.f32.mrb[0].mxu0
    %3238 = vdwg.mxu0
    %3239 = vmatprep.subr.mxu0 0.0
    %v3240 = vand.u32 %v2288, 4294901760
    %v3241 = vsub.f32 %v2288, %v3240
    %v3242 = vand.u32 %v3241, 4294901760
    %v3243 = vsub.f32 %v3241, %v3242
    %v3244 = vand.u32 %v3243, 4294901760
    %3245 = vmatpush1.msra.mxu0 %v3244
    %3246 = vmatprep.subr.mxu0 0.0
    %v3247 = vand.u32 %v2289, 4294901760
    %v3248 = vsub.f32 %v2289, %v3247
    %v3249 = vand.u32 %v3248, 4294901760
    %v3250 = vsub.f32 %v3248, %v3249
    %v3251 = vand.u32 %v3250, 4294901760
    %3252 = vmatpush1.msra.mxu0 %v3251
    %3253 = vmatprep.subr.mxu0 0.0
    %v3254 = vand.u32 %v2290, 4294901760
    %v3255 = vsub.f32 %v2290, %v3254
    %v3256 = vand.u32 %v3255, 4294901760
    %v3257 = vsub.f32 %v3255, %v3256
    %v3258 = vand.u32 %v3257, 4294901760
    %3259 = vmatpush1.msra.mxu0 %v3258
    %3260 = vmatprep.subr.mxu0 0.0
    %v3261 = vand.u32 %v2291, 4294901760
    %v3262 = vsub.f32 %v2291, %v3261
    %v3263 = vand.u32 %v3262, 4294901760
    %v3264 = vsub.f32 %v3262, %v3263
    %v3265 = vand.u32 %v3264, 4294901760
    %3266 = vmatpush1.msra.mxu0 %v3265
    %3267 = vmatprep.subr.mxu0 0.0
    %v3268 = vand.u32 %v2292, 4294901760
    %v3269 = vsub.f32 %v2292, %v3268
    %v3270 = vand.u32 %v3269, 4294901760
    %v3271 = vsub.f32 %v3269, %v3270
    %v3272 = vand.u32 %v3271, 4294901760
    %3273 = vmatpush1.msra.mxu0 %v3272
    %3274 = vmatprep.subr.mxu0 0.0
    %v3275 = vand.u32 %v2293, 4294901760
    %v3276 = vsub.f32 %v2293, %v3275
    %v3277 = vand.u32 %v3276, 4294901760
    %v3278 = vsub.f32 %v3276, %v3277
    %v3279 = vand.u32 %v3278, 4294901760
    %3280 = vmatpush1.msra.mxu0 %v3279
    %3281 = vmatprep.subr.mxu0 0.0
    %v3282 = vand.u32 %v2294, 4294901760
    %v3283 = vsub.f32 %v2294, %v3282
    %v3284 = vand.u32 %v3283, 4294901760
    %v3285 = vsub.f32 %v3283, %v3284
    %v3286 = vand.u32 %v3285, 4294901760
    %3287 = vmatpush1.msra.mxu0 %v3286
    %3288 = vmatprep.subr.mxu0 0.0
    %v3289 = vand.u32 %v2295, 4294901760
    %v3290 = vsub.f32 %v2295, %v3289
    %v3291 = vand.u32 %v3290, 4294901760
    %v3292 = vsub.f32 %v3290, %v3291
    %v3293 = vand.u32 %v3292, 4294901760
    %3294 = vmatpush1.msra.mxu0 %v3293
    %3295 = vmatprep.subr.mxu0 0.0
    %v3296 = vand.u32 %v2296, 4294901760
    %v3297 = vsub.f32 %v2296, %v3296
    %v3298 = vand.u32 %v3297, 4294901760
    %v3299 = vsub.f32 %v3297, %v3298
    %v3300 = vand.u32 %v3299, 4294901760
    %3301 = vmatpush1.msra.mxu0 %v3300
    %3302 = vmatprep.subr.mxu0 0.0
    %v3303 = vand.u32 %v2297, 4294901760
    %v3304 = vsub.f32 %v2297, %v3303
    %v3305 = vand.u32 %v3304, 4294901760
    %v3306 = vsub.f32 %v3304, %v3305
    %v3307 = vand.u32 %v3306, 4294901760
    %3308 = vmatpush1.msra.mxu0 %v3307
    %3309 = vmatprep.subr.mxu0 0.0
    %v3310 = vand.u32 %v2298, 4294901760
    %v3311 = vsub.f32 %v2298, %v3310
    %v3312 = vand.u32 %v3311, 4294901760
    %v3313 = vsub.f32 %v3311, %v3312
    %v3314 = vand.u32 %v3313, 4294901760
    %3315 = vmatpush1.msra.mxu0 %v3314
    %3316 = vmatprep.subr.mxu0 0.0
    %v3317 = vand.u32 %v2299, 4294901760
    %v3318 = vsub.f32 %v2299, %v3317
    %v3319 = vand.u32 %v3318, 4294901760
    %v3320 = vsub.f32 %v3318, %v3319
    %v3321 = vand.u32 %v3320, 4294901760
    %3322 = vmatpush1.msra.mxu0 %v3321
    %3323 = vmatprep.subr.mxu0 0.0
    %v3324 = vand.u32 %v2300, 4294901760
    %v3325 = vsub.f32 %v2300, %v3324
    %v3326 = vand.u32 %v3325, 4294901760
    %v3327 = vsub.f32 %v3325, %v3326
    %v3328 = vand.u32 %v3327, 4294901760
    %3329 = vmatpush1.msra.mxu0 %v3328
    %3330 = vmatprep.subr.mxu0 0.0
    %v3331 = vand.u32 %v2301, 4294901760
    %v3332 = vsub.f32 %v2301, %v3331
    %v3333 = vand.u32 %v3332, 4294901760
    %v3334 = vsub.f32 %v3332, %v3333
    %v3335 = vand.u32 %v3334, 4294901760
    %3336 = vmatpush1.msra.mxu0 %v3335
    %3337 = vmatprep.subr.mxu0 0.0
    %v3338 = vand.u32 %v2302, 4294901760
    %v3339 = vsub.f32 %v2302, %v3338
    %v3340 = vand.u32 %v3339, 4294901760
    %v3341 = vsub.f32 %v3339, %v3340
    %v3342 = vand.u32 %v3341, 4294901760
    %3343 = vmatpush1.msra.mxu0 %v3342
    %3344 = vmatprep.subr.mxu0 0.0
    %v3345 = vand.u32 %v2303, 4294901760
    %v3346 = vsub.f32 %v2303, %v3345
    %v3347 = vand.u32 %v3346, 4294901760
    %v3348 = vsub.f32 %v3346, %v3347
    %v3349 = vand.u32 %v3348, 4294901760
    %3350 = vmatpush1.msra.mxu0 %v3349
    %3351 = vmatprep.subr.mxu0 0.0
    %3352 = vmatpush1.msra.mxu0 0.0
    %3353 = vmatprep.subr.mxu0 0.0
    %3354 = vmatpush1.msra.mxu0 0.0
    %3355 = vmatprep.subr.mxu0 0.0
    %3356 = vmatpush1.msra.mxu0 0.0
    %3357 = vmatprep.subr.mxu0 0.0
    %3358 = vmatpush1.msra.mxu0 0.0
    %3359 = vmatprep.subr.mxu0 0.0
    %3360 = vmatpush1.msra.mxu0 0.0
    %3361 = vmatprep.subr.mxu0 0.0
    %3362 = vmatpush1.msra.mxu0 0.0
    %3363 = vmatprep.subr.mxu0 0.0
    %3364 = vmatpush1.msra.mxu0 0.0
    %3365 = vmatprep.subr.mxu0 0.0
    %3366 = vmatpush1.msra.mxu0 0.0
    %3367 = vmatprep.subr.mxu0 0.0
    %3368 = vmatpush1.msra.mxu0 0.0
    %3369 = vmatprep.subr.mxu0 0.0
    %3370 = vmatpush1.msra.mxu0 0.0
    %3371 = vmatprep.subr.mxu0 0.0
    %3372 = vmatpush1.msra.mxu0 0.0
    %3373 = vmatprep.subr.mxu0 0.0
    %3374 = vmatpush1.msra.mxu0 0.0
    %3375 = vmatprep.subr.mxu0 0.0
    %3376 = vmatpush1.msra.mxu0 0.0
    %3377 = vmatprep.subr.mxu0 0.0
    %3378 = vmatpush1.msra.mxu0 0.0
    %3379 = vmatprep.subr.mxu0 0.0
    %3380 = vmatpush1.msra.mxu0 0.0
    %3381 = vmatprep.subr.mxu0 0.0
    %3382 = vmatpush1.msra.mxu0 0.0
    %3383 = vmatprep.mubr.f32.mxu0 0.0
    %v3384 = vand.u32 %v2344, 4294901760
    %3385 = vmatmul.mubr.f32.gmra.mrb[0].mxu0 %v3384
    %v3386 = vpop.f32.mrb[0].mxu0
    %v3387 = vadd.f32 %v3206, %v3386
    %v3388 = vpop.f32.mrb[0].mxu0
    %3389 = vmatprep.mubr.f32.mxu0 0.0
    %v3390 = vand.u32 %v2345, 4294901760
    %3391 = vmatmul.mubr.f32.gmra.mrb[0].mxu0 %v3390
    %v3392 = vpop.f32.mrb[0].mxu0
    %v3393 = vadd.f32 %v3216, %v3392
    %v3394 = vpop.f32.mrb[0].mxu0
    %3395 = vmatprep.mubr.f32.mxu0 0.0
    %v3396 = vand.u32 %v2346, 4294901760
    %3397 = vmatmul.mubr.f32.gmra.mrb[0].mxu0 %v3396
    %v3398 = vpop.f32.mrb[0].mxu0
    %v3399 = vadd.f32 %v3226, %v3398
    %v3400 = vpop.f32.mrb[0].mxu0
    %3401 = vmatprep.mubr.f32.mxu0 0.0
    %v3402 = vand.u32 %v2347, 4294901760
    %3403 = vmatmul.mubr.f32.gmra.mrb[0].mxu0 %v3402
    %v3404 = vpop.f32.mrb[0].mxu0
    %v3405 = vadd.f32 %v3236, %v3404
    %v3406 = vpop.f32.mrb[0].mxu0
    %3407 = vdwg.mxu0
    %3408 = vmatprep.subr.mxu0 0.0
    %v3409 = vand.u32 %v2288, 4294901760
    %v3410 = vsub.f32 %v2288, %v3409
    %3411 = vmatpush1.msra.mxu0 %v3410
    %3412 = vmatprep.subr.mxu0 0.0
    %v3413 = vand.u32 %v2289, 4294901760
    %v3414 = vsub.f32 %v2289, %v3413
    %3415 = vmatpush1.msra.mxu0 %v3414
    %3416 = vmatprep.subr.mxu0 0.0
    %v3417 = vand.u32 %v2290, 4294901760
    %v3418 = vsub.f32 %v2290, %v3417
    %3419 = vmatpush1.msra.mxu0 %v3418
    %3420 = vmatprep.subr.mxu0 0.0
    %v3421 = vand.u32 %v2291, 4294901760
    %v3422 = vsub.f32 %v2291, %v3421
    %3423 = vmatpush1.msra.mxu0 %v3422
    %3424 = vmatprep.subr.mxu0 0.0
    %v3425 = vand.u32 %v2292, 4294901760
    %v3426 = vsub.f32 %v2292, %v3425
    %3427 = vmatpush1.msra.mxu0 %v3426
    %3428 = vmatprep.subr.mxu0 0.0
    %v3429 = vand.u32 %v2293, 4294901760
    %v3430 = vsub.f32 %v2293, %v3429
    %3431 = vmatpush1.msra.mxu0 %v3430
    %3432 = vmatprep.subr.mxu0 0.0
    %v3433 = vand.u32 %v2294, 4294901760
    %v3434 = vsub.f32 %v2294, %v3433
    %3435 = vmatpush1.msra.mxu0 %v3434
    %3436 = vmatprep.subr.mxu0 0.0
    %v3437 = vand.u32 %v2295, 4294901760
    %v3438 = vsub.f32 %v2295, %v3437
    %3439 = vmatpush1.msra.mxu0 %v3438
    %3440 = vmatprep.subr.mxu0 0.0
    %v3441 = vand.u32 %v2296, 4294901760
    %v3442 = vsub.f32 %v2296, %v3441
    %3443 = vmatpush1.msra.mxu0 %v3442
    %3444 = vmatprep.subr.mxu0 0.0
    %v3445 = vand.u32 %v2297, 4294901760
    %v3446 = vsub.f32 %v2297, %v3445
    %3447 = vmatpush1.msra.mxu0 %v3446
    %3448 = vmatprep.subr.mxu0 0.0
    %v3449 = vand.u32 %v2298, 4294901760
    %v3450 = vsub.f32 %v2298, %v3449
    %3451 = vmatpush1.msra.mxu0 %v3450
    %3452 = vmatprep.subr.mxu0 0.0
    %v3453 = vand.u32 %v2299, 4294901760
    %v3454 = vsub.f32 %v2299, %v3453
    %3455 = vmatpush1.msra.mxu0 %v3454
    %3456 = vmatprep.subr.mxu0 0.0
    %v3457 = vand.u32 %v2300, 4294901760
    %v3458 = vsub.f32 %v2300, %v3457
    %3459 = vmatpush1.msra.mxu0 %v3458
    %3460 = vmatprep.subr.mxu0 0.0
    %v3461 = vand.u32 %v2301, 4294901760
    %v3462 = vsub.f32 %v2301, %v3461
    %3463 = vmatpush1.msra.mxu0 %v3462
    %3464 = vmatprep.subr.mxu0 0.0
    %v3465 = vand.u32 %v2302, 4294901760
    %v3466 = vsub.f32 %v2302, %v3465
    %3467 = vmatpush1.msra.mxu0 %v3466
    %3468 = vmatprep.subr.mxu0 0.0
    %v3469 = vand.u32 %v2303, 4294901760
    %v3470 = vsub.f32 %v2303, %v3469
    %3471 = vmatpush1.msra.mxu0 %v3470
    %3472 = vmatprep.subr.mxu0 0.0
    %3473 = vmatpush1.msra.mxu0 0.0
    %3474 = vmatprep.subr.mxu0 0.0
    %3475 = vmatpush1.msra.mxu0 0.0
    %3476 = vmatprep.subr.mxu0 0.0
    %3477 = vmatpush1.msra.mxu0 0.0
    %3478 = vmatprep.subr.mxu0 0.0
    %3479 = vmatpush1.msra.mxu0 0.0
    %3480 = vmatprep.subr.mxu0 0.0
    %3481 = vmatpush1.msra.mxu0 0.0
    %3482 = vmatprep.subr.mxu0 0.0
    %3483 = vmatpush1.msra.mxu0 0.0
    %3484 = vmatprep.subr.mxu0 0.0
    %3485 = vmatpush1.msra.mxu0 0.0
    %3486 = vmatprep.subr.mxu0 0.0
    %3487 = vmatpush1.msra.mxu0 0.0
    %3488 = vmatprep.subr.mxu0 0.0
    %3489 = vmatpush1.msra.mxu0 0.0
    %3490 = vmatprep.subr.mxu0 0.0
    %3491 = vmatpush1.msra.mxu0 0.0
    %3492 = vmatprep.subr.mxu0 0.0
    %3493 = vmatpush1.msra.mxu0 0.0
    %3494 = vmatprep.subr.mxu0 0.0
    %3495 = vmatpush1.msra.mxu0 0.0
    %3496 = vmatprep.subr.mxu0 0.0
    %3497 = vmatpush1.msra.mxu0 0.0
    %3498 = vmatprep.subr.mxu0 0.0
    %3499 = vmatpush1.msra.mxu0 0.0
    %3500 = vmatprep.subr.mxu0 0.0
    %3501 = vmatpush1.msra.mxu0 0.0
    %3502 = vmatprep.subr.mxu0 0.0
    %3503 = vmatpush1.msra.mxu0 0.0
    %3504 = vmatprep.mubr.f32.mxu0 0.0
    %v3505 = vand.u32 %v2344, 4294901760
    %v3506 = vsub.f32 %v2344, %v3505
    %3507 = vmatmul.mubr.f32.gmra.mrb[0].mxu0 %v3506
    %v3508 = vpop.f32.mrb[0].mxu0
    %v3509 = vadd.f32 %v3387, %v3508
    %v3510 = vpop.f32.mrb[0].mxu0
    %3511 = vmatprep.mubr.f32.mxu0 0.0
    %v3512 = vand.u32 %v2345, 4294901760
    %v3513 = vsub.f32 %v2345, %v3512
    %3514 = vmatmul.mubr.f32.gmra.mrb[0].mxu0 %v3513
    %v3515 = vpop.f32.mrb[0].mxu0
    %v3516 = vadd.f32 %v3393, %v3515
    %v3517 = vpop.f32.mrb[0].mxu0
    %3518 = vmatprep.mubr.f32.mxu0 0.0
    %v3519 = vand.u32 %v2346, 4294901760
    %v3520 = vsub.f32 %v2346, %v3519
    %3521 = vmatmul.mubr.f32.gmra.mrb[0].mxu0 %v3520
    %v3522 = vpop.f32.mrb[0].mxu0
    %v3523 = vadd.f32 %v3399, %v3522
    %v3524 = vpop.f32.mrb[0].mxu0
    %3525 = vmatprep.mubr.f32.mxu0 0.0
    %v3526 = vand.u32 %v2347, 4294901760
    %v3527 = vsub.f32 %v2347, %v3526
    %3528 = vmatmul.mubr.f32.gmra.mrb[0].mxu0 %v3527
    %v3529 = vpop.f32.mrb[0].mxu0
    %v3530 = vadd.f32 %v3405, %v3529
    %v3531 = vpop.f32.mrb[0].mxu0
    %3532 = vdwg.mxu0
    %3533 = vmatprep.subr.mxu0 0.0
    %v3534 = vand.u32 %v2288, 4294901760
    %3535 = vmatpush1.msra.mxu0 %v3534
    %3536 = vmatprep.subr.mxu0 0.0
    %v3537 = vand.u32 %v2289, 4294901760
    %3538 = vmatpush1.msra.mxu0 %v3537
    %3539 = vmatprep.subr.mxu0 0.0
    %v3540 = vand.u32 %v2290, 4294901760
    %3541 = vmatpush1.msra.mxu0 %v3540
    %3542 = vmatprep.subr.mxu0 0.0
    %v3543 = vand.u32 %v2291, 4294901760
    %3544 = vmatpush1.msra.mxu0 %v3543
    %3545 = vmatprep.subr.mxu0 0.0
    %v3546 = vand.u32 %v2292, 4294901760
    %3547 = vmatpush1.msra.mxu0 %v3546
    %3548 = vmatprep.subr.mxu0 0.0
    %v3549 = vand.u32 %v2293, 4294901760
    %3550 = vmatpush1.msra.mxu0 %v3549
    %3551 = vmatprep.subr.mxu0 0.0
    %v3552 = vand.u32 %v2294, 4294901760
    %3553 = vmatpush1.msra.mxu0 %v3552
    %3554 = vmatprep.subr.mxu0 0.0
    %v3555 = vand.u32 %v2295, 4294901760
    %3556 = vmatpush1.msra.mxu0 %v3555
    %3557 = vmatprep.subr.mxu0 0.0
    %v3558 = vand.u32 %v2296, 4294901760
    %3559 = vmatpush1.msra.mxu0 %v3558
    %3560 = vmatprep.subr.mxu0 0.0
    %v3561 = vand.u32 %v2297, 4294901760
    %3562 = vmatpush1.msra.mxu0 %v3561
    %3563 = vmatprep.subr.mxu0 0.0
    %v3564 = vand.u32 %v2298, 4294901760
    %3565 = vmatpush1.msra.mxu0 %v3564
    %3566 = vmatprep.subr.mxu0 0.0
    %v3567 = vand.u32 %v2299, 4294901760
    %3568 = vmatpush1.msra.mxu0 %v3567
    %3569 = vmatprep.subr.mxu0 0.0
    %v3570 = vand.u32 %v2300, 4294901760
    %3571 = vmatpush1.msra.mxu0 %v3570
    %3572 = vmatprep.subr.mxu0 0.0
    %v3573 = vand.u32 %v2301, 4294901760
    %3574 = vmatpush1.msra.mxu0 %v3573
    %3575 = vmatprep.subr.mxu0 0.0
    %v3576 = vand.u32 %v2302, 4294901760
    %3577 = vmatpush1.msra.mxu0 %v3576
    %3578 = vmatprep.subr.mxu0 0.0
    %v3579 = vand.u32 %v2303, 4294901760
    %3580 = vmatpush1.msra.mxu0 %v3579
    %3581 = vmatprep.subr.mxu0 0.0
    %3582 = vmatpush1.msra.mxu0 0.0
    %3583 = vmatprep.subr.mxu0 0.0
    %3584 = vmatpush1.msra.mxu0 0.0
    %3585 = vmatprep.subr.mxu0 0.0
    %3586 = vmatpush1.msra.mxu0 0.0
    %3587 = vmatprep.subr.mxu0 0.0
    %3588 = vmatpush1.msra.mxu0 0.0
    %3589 = vmatprep.subr.mxu0 0.0
    %3590 = vmatpush1.msra.mxu0 0.0
    %3591 = vmatprep.subr.mxu0 0.0
    %3592 = vmatpush1.msra.mxu0 0.0
    %3593 = vmatprep.subr.mxu0 0.0
    %3594 = vmatpush1.msra.mxu0 0.0
    %3595 = vmatprep.subr.mxu0 0.0
    %3596 = vmatpush1.msra.mxu0 0.0
    %3597 = vmatprep.subr.mxu0 0.0
    %3598 = vmatpush1.msra.mxu0 0.0
    %3599 = vmatprep.subr.mxu0 0.0
    %3600 = vmatpush1.msra.mxu0 0.0
    %3601 = vmatprep.subr.mxu0 0.0
    %3602 = vmatpush1.msra.mxu0 0.0
    %3603 = vmatprep.subr.mxu0 0.0
    %3604 = vmatpush1.msra.mxu0 0.0
    %3605 = vmatprep.subr.mxu0 0.0
    %3606 = vmatpush1.msra.mxu0 0.0
    %3607 = vmatprep.subr.mxu0 0.0
    %3608 = vmatpush1.msra.mxu0 0.0
    %3609 = vmatprep.subr.mxu0 0.0
    %3610 = vmatpush1.msra.mxu0 0.0
    %3611 = vmatprep.subr.mxu0 0.0
    %3612 = vmatpush1.msra.mxu0 0.0
    %3613 = vmatprep.mubr.f32.mxu0 0.0
    %v3614 = vand.u32 %v2344, 4294901760
    %v3615 = vsub.f32 %v2344, %v3614
    %v3616 = vand.u32 %v3615, 4294901760
    %3617 = vmatmul.mubr.f32.gmra.mrb[0].mxu0 %v3616
    %v3618 = vpop.f32.mrb[0].mxu0
    %v3619 = vadd.f32 %v3509, %v3618
    %v3620 = vpop.f32.mrb[0].mxu0
    %3621 = vmatprep.mubr.f32.mxu0 0.0
    %v3622 = vand.u32 %v2345, 4294901760
    %v3623 = vsub.f32 %v2345, %v3622
    %v3624 = vand.u32 %v3623, 4294901760
    %3625 = vmatmul.mubr.f32.gmra.mrb[0].mxu0 %v3624
    %v3626 = vpop.f32.mrb[0].mxu0
    %v3627 = vadd.f32 %v3516, %v3626
    %v3628 = vpop.f32.mrb[0].mxu0
    %3629 = vmatprep.mubr.f32.mxu0 0.0
    %v3630 = vand.u32 %v2346, 4294901760
    %v3631 = vsub.f32 %v2346, %v3630
    %v3632 = vand.u32 %v3631, 4294901760
    %3633 = vmatmul.mubr.f32.gmra.mrb[0].mxu0 %v3632
    %v3634 = vpop.f32.mrb[0].mxu0
    %v3635 = vadd.f32 %v3523, %v3634
    %v3636 = vpop.f32.mrb[0].mxu0
    %3637 = vmatprep.mubr.f32.mxu0 0.0
    %v3638 = vand.u32 %v2347, 4294901760
    %v3639 = vsub.f32 %v2347, %v3638
    %v3640 = vand.u32 %v3639, 4294901760
    %3641 = vmatmul.mubr.f32.gmra.mrb[0].mxu0 %v3640
    %v3642 = vpop.f32.mrb[0].mxu0
    %v3643 = vadd.f32 %v3530, %v3642
    %v3644 = vpop.f32.mrb[0].mxu0
    %3645 = vdwg.mxu0
    %3646 = vmatprep.subr.mxu0 0.0
    %v3647 = vand.u32 %v2288, 4294901760
    %v3648 = vsub.f32 %v2288, %v3647
    %v3649 = vand.u32 %v3648, 4294901760
    %3650 = vmatpush1.msra.mxu0 %v3649
    %3651 = vmatprep.subr.mxu0 0.0
    %v3652 = vand.u32 %v2289, 4294901760
    %v3653 = vsub.f32 %v2289, %v3652
    %v3654 = vand.u32 %v3653, 4294901760
    %3655 = vmatpush1.msra.mxu0 %v3654
    %3656 = vmatprep.subr.mxu0 0.0
    %v3657 = vand.u32 %v2290, 4294901760
    %v3658 = vsub.f32 %v2290, %v3657
    %v3659 = vand.u32 %v3658, 4294901760
    %3660 = vmatpush1.msra.mxu0 %v3659
    %3661 = vmatprep.subr.mxu0 0.0
    %v3662 = vand.u32 %v2291, 4294901760
    %v3663 = vsub.f32 %v2291, %v3662
    %v3664 = vand.u32 %v3663, 4294901760
    %3665 = vmatpush1.msra.mxu0 %v3664
    %3666 = vmatprep.subr.mxu0 0.0
    %v3667 = vand.u32 %v2292, 4294901760
    %v3668 = vsub.f32 %v2292, %v3667
    %v3669 = vand.u32 %v3668, 4294901760
    %3670 = vmatpush1.msra.mxu0 %v3669
    %3671 = vmatprep.subr.mxu0 0.0
    %v3672 = vand.u32 %v2293, 4294901760
    %v3673 = vsub.f32 %v2293, %v3672
    %v3674 = vand.u32 %v3673, 4294901760
    %3675 = vmatpush1.msra.mxu0 %v3674
    %3676 = vmatprep.subr.mxu0 0.0
    %v3677 = vand.u32 %v2294, 4294901760
    %v3678 = vsub.f32 %v2294, %v3677
    %v3679 = vand.u32 %v3678, 4294901760
    %3680 = vmatpush1.msra.mxu0 %v3679
    %3681 = vmatprep.subr.mxu0 0.0
    %v3682 = vand.u32 %v2295, 4294901760
    %v3683 = vsub.f32 %v2295, %v3682
    %v3684 = vand.u32 %v3683, 4294901760
    %3685 = vmatpush1.msra.mxu0 %v3684
    %3686 = vmatprep.subr.mxu0 0.0
    %v3687 = vand.u32 %v2296, 4294901760
    %v3688 = vsub.f32 %v2296, %v3687
    %v3689 = vand.u32 %v3688, 4294901760
    %3690 = vmatpush1.msra.mxu0 %v3689
    %3691 = vmatprep.subr.mxu0 0.0
    %v3692 = vand.u32 %v2297, 4294901760
    %v3693 = vsub.f32 %v2297, %v3692
    %v3694 = vand.u32 %v3693, 4294901760
    %3695 = vmatpush1.msra.mxu0 %v3694
    %3696 = vmatprep.subr.mxu0 0.0
    %v3697 = vand.u32 %v2298, 4294901760
    %v3698 = vsub.f32 %v2298, %v3697
    %v3699 = vand.u32 %v3698, 4294901760
    %3700 = vmatpush1.msra.mxu0 %v3699
    %3701 = vmatprep.subr.mxu0 0.0
    %v3702 = vand.u32 %v2299, 4294901760
    %v3703 = vsub.f32 %v2299, %v3702
    %v3704 = vand.u32 %v3703, 4294901760
    %3705 = vmatpush1.msra.mxu0 %v3704
    %3706 = vmatprep.subr.mxu0 0.0
    %v3707 = vand.u32 %v2300, 4294901760
    %v3708 = vsub.f32 %v2300, %v3707
    %v3709 = vand.u32 %v3708, 4294901760
    %3710 = vmatpush1.msra.mxu0 %v3709
    %3711 = vmatprep.subr.mxu0 0.0
    %v3712 = vand.u32 %v2301, 4294901760
    %v3713 = vsub.f32 %v2301, %v3712
    %v3714 = vand.u32 %v3713, 4294901760
    %3715 = vmatpush1.msra.mxu0 %v3714
    %3716 = vmatprep.subr.mxu0 0.0
    %v3717 = vand.u32 %v2302, 4294901760
    %v3718 = vsub.f32 %v2302, %v3717
    %v3719 = vand.u32 %v3718, 4294901760
    %3720 = vmatpush1.msra.mxu0 %v3719
    %3721 = vmatprep.subr.mxu0 0.0
    %v3722 = vand.u32 %v2303, 4294901760
    %v3723 = vsub.f32 %v2303, %v3722
    %v3724 = vand.u32 %v3723, 4294901760
    %3725 = vmatpush1.msra.mxu0 %v3724
    %3726 = vmatprep.subr.mxu0 0.0
    %3727 = vmatpush1.msra.mxu0 0.0
    %3728 = vmatprep.subr.mxu0 0.0
    %3729 = vmatpush1.msra.mxu0 0.0
    %3730 = vmatprep.subr.mxu0 0.0
    %3731 = vmatpush1.msra.mxu0 0.0
    %3732 = vmatprep.subr.mxu0 0.0
    %3733 = vmatpush1.msra.mxu0 0.0
    %3734 = vmatprep.subr.mxu0 0.0
    %3735 = vmatpush1.msra.mxu0 0.0
    %3736 = vmatprep.subr.mxu0 0.0
    %3737 = vmatpush1.msra.mxu0 0.0
    %3738 = vmatprep.subr.mxu0 0.0
    %3739 = vmatpush1.msra.mxu0 0.0
    %3740 = vmatprep.subr.mxu0 0.0
    %3741 = vmatpush1.msra.mxu0 0.0
    %3742 = vmatprep.subr.mxu0 0.0
    %3743 = vmatpush1.msra.mxu0 0.0
    %3744 = vmatprep.subr.mxu0 0.0
    %3745 = vmatpush1.msra.mxu0 0.0
    %3746 = vmatprep.subr.mxu0 0.0
    %3747 = vmatpush1.msra.mxu0 0.0
    %3748 = vmatprep.subr.mxu0 0.0
    %3749 = vmatpush1.msra.mxu0 0.0
    %3750 = vmatprep.subr.mxu0 0.0
    %3751 = vmatpush1.msra.mxu0 0.0
    %3752 = vmatprep.subr.mxu0 0.0
    %3753 = vmatpush1.msra.mxu0 0.0
    %3754 = vmatprep.subr.mxu0 0.0
    %3755 = vmatpush1.msra.mxu0 0.0
    %3756 = vmatprep.subr.mxu0 0.0
    %3757 = vmatpush1.msra.mxu0 0.0
    %3758 = vmatprep.mubr.f32.mxu0 0.0
    %v3759 = vand.u32 %v2344, 4294901760
    %3760 = vmatmul.mubr.f32.gmra.mrb[0].mxu0 %v3759
    %v3761 = vpop.f32.mrb[0].mxu0
    %v3762 = vadd.f32 %v3619, %v3761
    %v3763 = vpop.f32.mrb[0].mxu0
    %3764 = vmatprep.mubr.f32.mxu0 0.0
    %v3765 = vand.u32 %v2345, 4294901760
    %3766 = vmatmul.mubr.f32.gmra.mrb[0].mxu0 %v3765
    %v3767 = vpop.f32.mrb[0].mxu0
    %v3768 = vadd.f32 %v3627, %v3767
    %v3769 = vpop.f32.mrb[0].mxu0
    %3770 = vmatprep.mubr.f32.mxu0 0.0
    %v3771 = vand.u32 %v2346, 4294901760
    %3772 = vmatmul.mubr.f32.gmra.mrb[0].mxu0 %v3771
    %v3773 = vpop.f32.mrb[0].mxu0
    %v3774 = vadd.f32 %v3635, %v3773
    %v3775 = vpop.f32.mrb[0].mxu0
    %3776 = vmatprep.mubr.f32.mxu0 0.0
    %v3777 = vand.u32 %v2347, 4294901760
    %3778 = vmatmul.mubr.f32.gmra.mrb[0].mxu0 %v3777
    %v3779 = vpop.f32.mrb[0].mxu0
    %v3780 = vadd.f32 %v3643, %v3779
    %v3781 = vpop.f32.mrb[0].mxu0
    %3782 = vdwg.mxu0
    %3783 = vmatprep.subr.mxu0 0.0
    %v3784 = vand.u32 %v2288, 4294901760
    %3785 = vmatpush1.msra.mxu0 %v3784
    %3786 = vmatprep.subr.mxu0 0.0
    %v3787 = vand.u32 %v2289, 4294901760
    %3788 = vmatpush1.msra.mxu0 %v3787
    %3789 = vmatprep.subr.mxu0 0.0
    %v3790 = vand.u32 %v2290, 4294901760
    %3791 = vmatpush1.msra.mxu0 %v3790
    %3792 = vmatprep.subr.mxu0 0.0
    %v3793 = vand.u32 %v2291, 4294901760
    %3794 = vmatpush1.msra.mxu0 %v3793
    %3795 = vmatprep.subr.mxu0 0.0
    %v3796 = vand.u32 %v2292, 4294901760
    %3797 = vmatpush1.msra.mxu0 %v3796
    %3798 = vmatprep.subr.mxu0 0.0
    %v3799 = vand.u32 %v2293, 4294901760
    %3800 = vmatpush1.msra.mxu0 %v3799
    %3801 = vmatprep.subr.mxu0 0.0
    %v3802 = vand.u32 %v2294, 4294901760
    %3803 = vmatpush1.msra.mxu0 %v3802
    %3804 = vmatprep.subr.mxu0 0.0
    %v3805 = vand.u32 %v2295, 4294901760
    %3806 = vmatpush1.msra.mxu0 %v3805
    %3807 = vmatprep.subr.mxu0 0.0
    %v3808 = vand.u32 %v2296, 4294901760
    %3809 = vmatpush1.msra.mxu0 %v3808
    %3810 = vmatprep.subr.mxu0 0.0
    %v3811 = vand.u32 %v2297, 4294901760
    %3812 = vmatpush1.msra.mxu0 %v3811
    %3813 = vmatprep.subr.mxu0 0.0
    %v3814 = vand.u32 %v2298, 4294901760
    %3815 = vmatpush1.msra.mxu0 %v3814
    %3816 = vmatprep.subr.mxu0 0.0
    %v3817 = vand.u32 %v2299, 4294901760
    %3818 = vmatpush1.msra.mxu0 %v3817
    %3819 = vmatprep.subr.mxu0 0.0
    %v3820 = vand.u32 %v2300, 4294901760
    %3821 = vmatpush1.msra.mxu0 %v3820
    %3822 = vmatprep.subr.mxu0 0.0
    %v3823 = vand.u32 %v2301, 4294901760
    %3824 = vmatpush1.msra.mxu0 %v3823
    %3825 = vmatprep.subr.mxu0 0.0
    %v3826 = vand.u32 %v2302, 4294901760
    %3827 = vmatpush1.msra.mxu0 %v3826
    %3828 = vmatprep.subr.mxu0 0.0
    %v3829 = vand.u32 %v2303, 4294901760
    %3830 = vmatpush1.msra.mxu0 %v3829
    %3831 = vmatprep.subr.mxu0 0.0
    %3832 = vmatpush1.msra.mxu0 0.0
    %3833 = vmatprep.subr.mxu0 0.0
    %3834 = vmatpush1.msra.mxu0 0.0
    %3835 = vmatprep.subr.mxu0 0.0
    %3836 = vmatpush1.msra.mxu0 0.0
    %3837 = vmatprep.subr.mxu0 0.0
    %3838 = vmatpush1.msra.mxu0 0.0
    %3839 = vmatprep.subr.mxu0 0.0
    %3840 = vmatpush1.msra.mxu0 0.0
    %3841 = vmatprep.subr.mxu0 0.0
    %3842 = vmatpush1.msra.mxu0 0.0
    %3843 = vmatprep.subr.mxu0 0.0
    %3844 = vmatpush1.msra.mxu0 0.0
    %3845 = vmatprep.subr.mxu0 0.0
    %3846 = vmatpush1.msra.mxu0 0.0
    %3847 = vmatprep.subr.mxu0 0.0
    %3848 = vmatpush1.msra.mxu0 0.0
    %3849 = vmatprep.subr.mxu0 0.0
    %3850 = vmatpush1.msra.mxu0 0.0
    %3851 = vmatprep.subr.mxu0 0.0
    %3852 = vmatpush1.msra.mxu0 0.0
    %3853 = vmatprep.subr.mxu0 0.0
    %3854 = vmatpush1.msra.mxu0 0.0
    %3855 = vmatprep.subr.mxu0 0.0
    %3856 = vmatpush1.msra.mxu0 0.0
    %3857 = vmatprep.subr.mxu0 0.0
    %3858 = vmatpush1.msra.mxu0 0.0
    %3859 = vmatprep.subr.mxu0 0.0
    %3860 = vmatpush1.msra.mxu0 0.0
    %3861 = vmatprep.subr.mxu0 0.0
    %3862 = vmatpush1.msra.mxu0 0.0
    %3863 = vmatprep.mubr.f32.mxu0 0.0
    %v3864 = vand.u32 %v2344, 4294901760
    %3865 = vmatmul.mubr.f32.gmra.mrb[0].mxu0 %v3864
    %v3866 = vpop.f32.mrb[0].mxu0
    %v3867 = vadd.f32 %v3762, %v3866
    %v3868 = vpop.f32.mrb[0].mxu0
    %3869 = vmatprep.mubr.f32.mxu0 0.0
    %v3870 = vand.u32 %v2345, 4294901760
    %3871 = vmatmul.mubr.f32.gmra.mrb[0].mxu0 %v3870
    %v3872 = vpop.f32.mrb[0].mxu0
    %v3873 = vadd.f32 %v3768, %v3872
    %v3874 = vpop.f32.mrb[0].mxu0
    %3875 = vmatprep.mubr.f32.mxu0 0.0
    %v3876 = vand.u32 %v2346, 4294901760
    %3877 = vmatmul.mubr.f32.gmra.mrb[0].mxu0 %v3876
    %v3878 = vpop.f32.mrb[0].mxu0
    %v3879 = vadd.f32 %v3774, %v3878
    %v3880 = vpop.f32.mrb[0].mxu0
    %3881 = vmatprep.mubr.f32.mxu0 0.0
    %v3882 = vand.u32 %v2347, 4294901760
    %3883 = vmatmul.mubr.f32.gmra.mrb[0].mxu0 %v3882
    %v3884 = vpop.f32.mrb[0].mxu0
    %v3885 = vadd.f32 %v3780, %v3884
    %v3886 = vpop.f32.mrb[0].mxu0
    %3887 = vdwg.mxu0
    %v3888 = vrot.slane %v2284, 1
    %v3889 = vrot.slane %v2285, 1
    %v3890 = vrot.slane %v2286, 1
    %v3891 = vrot.slane %v2287, 1
    %v3892 = vsel %vm1515, %v3890, %v3891
    %v3893 = vsel %vm1515, %v3889, %v3890
    %v3894 = vsel %vm1515, %v3888, %v3889
    %v3895 = vsel %vm1515, %v3891, %v3888
    %v3896 = vsel %vm1524, %v3894, 0.0
    %v3897 = vsel %vm1525, %v3893, 0.0
    %v3898 = vsel %vm1526, %v3892, 0.0
    %v3899 = vsel %vm1527, %v3895, 0.0
    %3900 = vmatprep.subr.mxu0 0.0
    %v3901 = vand.u32 %v2320, 4294901760
    %3902 = vmatpush1.msra.mxu0 %v3901
    %3903 = vmatprep.subr.mxu0 0.0
    %v3904 = vand.u32 %v2321, 4294901760
    %3905 = vmatpush1.msra.mxu0 %v3904
    %3906 = vmatprep.subr.mxu0 0.0
    %v3907 = vand.u32 %v2322, 4294901760
    %3908 = vmatpush1.msra.mxu0 %v3907
    %3909 = vmatprep.subr.mxu0 0.0
    %v3910 = vand.u32 %v2323, 4294901760
    %3911 = vmatpush1.msra.mxu0 %v3910
    %3912 = vmatprep.subr.mxu0 0.0
    %v3913 = vand.u32 %v2324, 4294901760
    %3914 = vmatpush1.msra.mxu0 %v3913
    %3915 = vmatprep.subr.mxu0 0.0
    %v3916 = vand.u32 %v2325, 4294901760
    %3917 = vmatpush1.msra.mxu0 %v3916
    %3918 = vmatprep.subr.mxu0 0.0
    %v3919 = vand.u32 %v2326, 4294901760
    %3920 = vmatpush1.msra.mxu0 %v3919
    %3921 = vmatprep.subr.mxu0 0.0
    %v3922 = vand.u32 %v2327, 4294901760
    %3923 = vmatpush1.msra.mxu0 %v3922
    %3924 = vmatprep.subr.mxu0 0.0
    %v3925 = vand.u32 %v2328, 4294901760
    %3926 = vmatpush1.msra.mxu0 %v3925
    %3927 = vmatprep.subr.mxu0 0.0
    %v3928 = vand.u32 %v2329, 4294901760
    %3929 = vmatpush1.msra.mxu0 %v3928
    %3930 = vmatprep.subr.mxu0 0.0
    %v3931 = vand.u32 %v2330, 4294901760
    %3932 = vmatpush1.msra.mxu0 %v3931
    %3933 = vmatprep.subr.mxu0 0.0
    %v3934 = vand.u32 %v2331, 4294901760
    %3935 = vmatpush1.msra.mxu0 %v3934
    %3936 = vmatprep.subr.mxu0 0.0
    %v3937 = vand.u32 %v2332, 4294901760
    %3938 = vmatpush1.msra.mxu0 %v3937
    %3939 = vmatprep.subr.mxu0 0.0
    %v3940 = vand.u32 %v2333, 4294901760
    %3941 = vmatpush1.msra.mxu0 %v3940
    %3942 = vmatprep.subr.mxu0 0.0
    %v3943 = vand.u32 %v2334, 4294901760
    %3944 = vmatpush1.msra.mxu0 %v3943
    %3945 = vmatprep.subr.mxu0 0.0
    %v3946 = vand.u32 %v2335, 4294901760
    %3947 = vmatpush1.msra.mxu0 %v3946
    %3948 = vmatprep.subr.mxu0 0.0
    %3949 = vmatpush1.msra.mxu0 0.0
    %3950 = vmatprep.subr.mxu0 0.0
    %3951 = vmatpush1.msra.mxu0 0.0
    %3952 = vmatprep.subr.mxu0 0.0
    %3953 = vmatpush1.msra.mxu0 0.0
    %3954 = vmatprep.subr.mxu0 0.0
    %3955 = vmatpush1.msra.mxu0 0.0
    %3956 = vmatprep.subr.mxu0 0.0
    %3957 = vmatpush1.msra.mxu0 0.0
    %3958 = vmatprep.subr.mxu0 0.0
    %3959 = vmatpush1.msra.mxu0 0.0
    %3960 = vmatprep.subr.mxu0 0.0
    %3961 = vmatpush1.msra.mxu0 0.0
    %3962 = vmatprep.subr.mxu0 0.0
    %3963 = vmatpush1.msra.mxu0 0.0
    %3964 = vmatprep.subr.mxu0 0.0
    %3965 = vmatpush1.msra.mxu0 0.0
    %3966 = vmatprep.subr.mxu0 0.0
    %3967 = vmatpush1.msra.mxu0 0.0
    %3968 = vmatprep.subr.mxu0 0.0
    %3969 = vmatpush1.msra.mxu0 0.0
    %3970 = vmatprep.subr.mxu0 0.0
    %3971 = vmatpush1.msra.mxu0 0.0
    %3972 = vmatprep.subr.mxu0 0.0
    %3973 = vmatpush1.msra.mxu0 0.0
    %3974 = vmatprep.subr.mxu0 0.0
    %3975 = vmatpush1.msra.mxu0 0.0
    %3976 = vmatprep.subr.mxu0 0.0
    %3977 = vmatpush1.msra.mxu0 0.0
    %3978 = vmatprep.subr.mxu0 0.0
    %3979 = vmatpush1.msra.mxu0 0.0
    %3980 = vmatprep.mubr.f32.mxu0 0.0
    %v3981 = vand.u32 %v3896, 4294901760
    %v3982 = vsub.f32 %v3896, %v3981
    %v3983 = vand.u32 %v3982, 4294901760
    %v3984 = vsub.f32 %v3982, %v3983
    %v3985 = vand.u32 %v3984, 4294901760
    %3986 = vmatmul.mubr.f32.gmra.mrb[0].mxu0 %v3985
    %v3987 = vpop.f32.mrb[0].mxu0
    %v3988 = vadd.f32 0.0, %v3987
    %v3989 = vpop.f32.mrb[0].mxu0
    %3990 = vmatprep.mubr.f32.mxu0 0.0
    %v3991 = vand.u32 %v3897, 4294901760
    %v3992 = vsub.f32 %v3897, %v3991
    %v3993 = vand.u32 %v3992, 4294901760
    %v3994 = vsub.f32 %v3992, %v3993
    %v3995 = vand.u32 %v3994, 4294901760
    %3996 = vmatmul.mubr.f32.gmra.mrb[0].mxu0 %v3995
    %v3997 = vpop.f32.mrb[0].mxu0
    %v3998 = vadd.f32 0.0, %v3997
    %v3999 = vpop.f32.mrb[0].mxu0
    %4000 = vmatprep.mubr.f32.mxu0 0.0
    %v4001 = vand.u32 %v3898, 4294901760
    %v4002 = vsub.f32 %v3898, %v4001
    %v4003 = vand.u32 %v4002, 4294901760
    %v4004 = vsub.f32 %v4002, %v4003
    %v4005 = vand.u32 %v4004, 4294901760
    %4006 = vmatmul.mubr.f32.gmra.mrb[0].mxu0 %v4005
    %v4007 = vpop.f32.mrb[0].mxu0
    %v4008 = vadd.f32 0.0, %v4007
    %v4009 = vpop.f32.mrb[0].mxu0
    %4010 = vmatprep.mubr.f32.mxu0 0.0
    %v4011 = vand.u32 %v3899, 4294901760
    %v4012 = vsub.f32 %v3899, %v4011
    %v4013 = vand.u32 %v4012, 4294901760
    %v4014 = vsub.f32 %v4012, %v4013
    %v4015 = vand.u32 %v4014, 4294901760
    %4016 = vmatmul.mubr.f32.gmra.mrb[0].mxu0 %v4015
    %v4017 = vpop.f32.mrb[0].mxu0
    %v4018 = vadd.f32 0.0, %v4017
    %v4019 = vpop.f32.mrb[0].mxu0
    %4020 = vdwg.mxu0
    %4021 = vmatprep.subr.mxu0 0.0
    %v4022 = vand.u32 %v2320, 4294901760
    %v4023 = vsub.f32 %v2320, %v4022
    %v4024 = vand.u32 %v4023, 4294901760
    %v4025 = vsub.f32 %v4023, %v4024
    %v4026 = vand.u32 %v4025, 4294901760
    %4027 = vmatpush1.msra.mxu0 %v4026
    %4028 = vmatprep.subr.mxu0 0.0
    %v4029 = vand.u32 %v2321, 4294901760
    %v4030 = vsub.f32 %v2321, %v4029
    %v4031 = vand.u32 %v4030, 4294901760
    %v4032 = vsub.f32 %v4030, %v4031
    %v4033 = vand.u32 %v4032, 4294901760
    %4034 = vmatpush1.msra.mxu0 %v4033
    %4035 = vmatprep.subr.mxu0 0.0
    %v4036 = vand.u32 %v2322, 4294901760
    %v4037 = vsub.f32 %v2322, %v4036
    %v4038 = vand.u32 %v4037, 4294901760
    %v4039 = vsub.f32 %v4037, %v4038
    %v4040 = vand.u32 %v4039, 4294901760
    %4041 = vmatpush1.msra.mxu0 %v4040
    %4042 = vmatprep.subr.mxu0 0.0
    %v4043 = vand.u32 %v2323, 4294901760
    %v4044 = vsub.f32 %v2323, %v4043
    %v4045 = vand.u32 %v4044, 4294901760
    %v4046 = vsub.f32 %v4044, %v4045
    %v4047 = vand.u32 %v4046, 4294901760
    %4048 = vmatpush1.msra.mxu0 %v4047
    %4049 = vmatprep.subr.mxu0 0.0
    %v4050 = vand.u32 %v2324, 4294901760
    %v4051 = vsub.f32 %v2324, %v4050
    %v4052 = vand.u32 %v4051, 4294901760
    %v4053 = vsub.f32 %v4051, %v4052
    %v4054 = vand.u32 %v4053, 4294901760
    %4055 = vmatpush1.msra.mxu0 %v4054
    %4056 = vmatprep.subr.mxu0 0.0
    %v4057 = vand.u32 %v2325, 4294901760
    %v4058 = vsub.f32 %v2325, %v4057
    %v4059 = vand.u32 %v4058, 4294901760
    %v4060 = vsub.f32 %v4058, %v4059
    %v4061 = vand.u32 %v4060, 4294901760
    %4062 = vmatpush1.msra.mxu0 %v4061
    %4063 = vmatprep.subr.mxu0 0.0
    %v4064 = vand.u32 %v2326, 4294901760
    %v4065 = vsub.f32 %v2326, %v4064
    %v4066 = vand.u32 %v4065, 4294901760
    %v4067 = vsub.f32 %v4065, %v4066
    %v4068 = vand.u32 %v4067, 4294901760
    %4069 = vmatpush1.msra.mxu0 %v4068
    %4070 = vmatprep.subr.mxu0 0.0
    %v4071 = vand.u32 %v2327, 4294901760
    %v4072 = vsub.f32 %v2327, %v4071
    %v4073 = vand.u32 %v4072, 4294901760
    %v4074 = vsub.f32 %v4072, %v4073
    %v4075 = vand.u32 %v4074, 4294901760
    %4076 = vmatpush1.msra.mxu0 %v4075
    %4077 = vmatprep.subr.mxu0 0.0
    %v4078 = vand.u32 %v2328, 4294901760
    %v4079 = vsub.f32 %v2328, %v4078
    %v4080 = vand.u32 %v4079, 4294901760
    %v4081 = vsub.f32 %v4079, %v4080
    %v4082 = vand.u32 %v4081, 4294901760
    %4083 = vmatpush1.msra.mxu0 %v4082
    %4084 = vmatprep.subr.mxu0 0.0
    %v4085 = vand.u32 %v2329, 4294901760
    %v4086 = vsub.f32 %v2329, %v4085
    %v4087 = vand.u32 %v4086, 4294901760
    %v4088 = vsub.f32 %v4086, %v4087
    %v4089 = vand.u32 %v4088, 4294901760
    %4090 = vmatpush1.msra.mxu0 %v4089
    %4091 = vmatprep.subr.mxu0 0.0
    %v4092 = vand.u32 %v2330, 4294901760
    %v4093 = vsub.f32 %v2330, %v4092
    %v4094 = vand.u32 %v4093, 4294901760
    %v4095 = vsub.f32 %v4093, %v4094
    %v4096 = vand.u32 %v4095, 4294901760
    %4097 = vmatpush1.msra.mxu0 %v4096
    %4098 = vmatprep.subr.mxu0 0.0
    %v4099 = vand.u32 %v2331, 4294901760
    %v4100 = vsub.f32 %v2331, %v4099
    %v4101 = vand.u32 %v4100, 4294901760
    %v4102 = vsub.f32 %v4100, %v4101
    %v4103 = vand.u32 %v4102, 4294901760
    %4104 = vmatpush1.msra.mxu0 %v4103
    %4105 = vmatprep.subr.mxu0 0.0
    %v4106 = vand.u32 %v2332, 4294901760
    %v4107 = vsub.f32 %v2332, %v4106
    %v4108 = vand.u32 %v4107, 4294901760
    %v4109 = vsub.f32 %v4107, %v4108
    %v4110 = vand.u32 %v4109, 4294901760
    %4111 = vmatpush1.msra.mxu0 %v4110
    %4112 = vmatprep.subr.mxu0 0.0
    %v4113 = vand.u32 %v2333, 4294901760
    %v4114 = vsub.f32 %v2333, %v4113
    %v4115 = vand.u32 %v4114, 4294901760
    %v4116 = vsub.f32 %v4114, %v4115
    %v4117 = vand.u32 %v4116, 4294901760
    %4118 = vmatpush1.msra.mxu0 %v4117
    %4119 = vmatprep.subr.mxu0 0.0
    %v4120 = vand.u32 %v2334, 4294901760
    %v4121 = vsub.f32 %v2334, %v4120
    %v4122 = vand.u32 %v4121, 4294901760
    %v4123 = vsub.f32 %v4121, %v4122
    %v4124 = vand.u32 %v4123, 4294901760
    %4125 = vmatpush1.msra.mxu0 %v4124
    %4126 = vmatprep.subr.mxu0 0.0
    %v4127 = vand.u32 %v2335, 4294901760
    %v4128 = vsub.f32 %v2335, %v4127
    %v4129 = vand.u32 %v4128, 4294901760
    %v4130 = vsub.f32 %v4128, %v4129
    %v4131 = vand.u32 %v4130, 4294901760
    %4132 = vmatpush1.msra.mxu0 %v4131
    %4133 = vmatprep.subr.mxu0 0.0
    %4134 = vmatpush1.msra.mxu0 0.0
    %4135 = vmatprep.subr.mxu0 0.0
    %4136 = vmatpush1.msra.mxu0 0.0
    %4137 = vmatprep.subr.mxu0 0.0
    %4138 = vmatpush1.msra.mxu0 0.0
    %4139 = vmatprep.subr.mxu0 0.0
    %4140 = vmatpush1.msra.mxu0 0.0
    %4141 = vmatprep.subr.mxu0 0.0
    %4142 = vmatpush1.msra.mxu0 0.0
    %4143 = vmatprep.subr.mxu0 0.0
    %4144 = vmatpush1.msra.mxu0 0.0
    %4145 = vmatprep.subr.mxu0 0.0
    %4146 = vmatpush1.msra.mxu0 0.0
    %4147 = vmatprep.subr.mxu0 0.0
    %4148 = vmatpush1.msra.mxu0 0.0
    %4149 = vmatprep.subr.mxu0 0.0
    %4150 = vmatpush1.msra.mxu0 0.0
    %4151 = vmatprep.subr.mxu0 0.0
    %4152 = vmatpush1.msra.mxu0 0.0
    %4153 = vmatprep.subr.mxu0 0.0
    %4154 = vmatpush1.msra.mxu0 0.0
    %4155 = vmatprep.subr.mxu0 0.0
    %4156 = vmatpush1.msra.mxu0 0.0
    %4157 = vmatprep.subr.mxu0 0.0
    %4158 = vmatpush1.msra.mxu0 0.0
    %4159 = vmatprep.subr.mxu0 0.0
    %4160 = vmatpush1.msra.mxu0 0.0
    %4161 = vmatprep.subr.mxu0 0.0
    %4162 = vmatpush1.msra.mxu0 0.0
    %4163 = vmatprep.subr.mxu0 0.0
    %4164 = vmatpush1.msra.mxu0 0.0
    %4165 = vmatprep.mubr.f32.mxu0 0.0
    %v4166 = vand.u32 %v3896, 4294901760
    %4167 = vmatmul.mubr.f32.gmra.mrb[0].mxu0 %v4166
    %v4168 = vpop.f32.mrb[0].mxu0
    %v4169 = vadd.f32 %v3988, %v4168
    %v4170 = vpop.f32.mrb[0].mxu0
    %4171 = vmatprep.mubr.f32.mxu0 0.0
    %v4172 = vand.u32 %v3897, 4294901760
    %4173 = vmatmul.mubr.f32.gmra.mrb[0].mxu0 %v4172
    %v4174 = vpop.f32.mrb[0].mxu0
    %v4175 = vadd.f32 %v3998, %v4174
    %v4176 = vpop.f32.mrb[0].mxu0
    %4177 = vmatprep.mubr.f32.mxu0 0.0
    %v4178 = vand.u32 %v3898, 4294901760
    %4179 = vmatmul.mubr.f32.gmra.mrb[0].mxu0 %v4178
    %v4180 = vpop.f32.mrb[0].mxu0
    %v4181 = vadd.f32 %v4008, %v4180
    %v4182 = vpop.f32.mrb[0].mxu0
    %4183 = vmatprep.mubr.f32.mxu0 0.0
    %v4184 = vand.u32 %v3899, 4294901760
    %4185 = vmatmul.mubr.f32.gmra.mrb[0].mxu0 %v4184
    %v4186 = vpop.f32.mrb[0].mxu0
    %v4187 = vadd.f32 %v4018, %v4186
    %v4188 = vpop.f32.mrb[0].mxu0
    %4189 = vdwg.mxu0
    %4190 = vmatprep.subr.mxu0 0.0
    %v4191 = vand.u32 %v2320, 4294901760
    %v4192 = vsub.f32 %v2320, %v4191
    %4193 = vmatpush1.msra.mxu0 %v4192
    %4194 = vmatprep.subr.mxu0 0.0
    %v4195 = vand.u32 %v2321, 4294901760
    %v4196 = vsub.f32 %v2321, %v4195
    %4197 = vmatpush1.msra.mxu0 %v4196
    %4198 = vmatprep.subr.mxu0 0.0
    %v4199 = vand.u32 %v2322, 4294901760
    %v4200 = vsub.f32 %v2322, %v4199
    %4201 = vmatpush1.msra.mxu0 %v4200
    %4202 = vmatprep.subr.mxu0 0.0
    %v4203 = vand.u32 %v2323, 4294901760
    %v4204 = vsub.f32 %v2323, %v4203
    %4205 = vmatpush1.msra.mxu0 %v4204
    %4206 = vmatprep.subr.mxu0 0.0
    %v4207 = vand.u32 %v2324, 4294901760
    %v4208 = vsub.f32 %v2324, %v4207
    %4209 = vmatpush1.msra.mxu0 %v4208
    %4210 = vmatprep.subr.mxu0 0.0
    %v4211 = vand.u32 %v2325, 4294901760
    %v4212 = vsub.f32 %v2325, %v4211
    %4213 = vmatpush1.msra.mxu0 %v4212
    %4214 = vmatprep.subr.mxu0 0.0
    %v4215 = vand.u32 %v2326, 4294901760
    %v4216 = vsub.f32 %v2326, %v4215
    %4217 = vmatpush1.msra.mxu0 %v4216
    %4218 = vmatprep.subr.mxu0 0.0
    %v4219 = vand.u32 %v2327, 4294901760
    %v4220 = vsub.f32 %v2327, %v4219
    %4221 = vmatpush1.msra.mxu0 %v4220
    %4222 = vmatprep.subr.mxu0 0.0
    %v4223 = vand.u32 %v2328, 4294901760
    %v4224 = vsub.f32 %v2328, %v4223
    %4225 = vmatpush1.msra.mxu0 %v4224
    %4226 = vmatprep.subr.mxu0 0.0
    %v4227 = vand.u32 %v2329, 4294901760
    %v4228 = vsub.f32 %v2329, %v4227
    %4229 = vmatpush1.msra.mxu0 %v4228
    %4230 = vmatprep.subr.mxu0 0.0
    %v4231 = vand.u32 %v2330, 4294901760
    %v4232 = vsub.f32 %v2330, %v4231
    %4233 = vmatpush1.msra.mxu0 %v4232
    %4234 = vmatprep.subr.mxu0 0.0
    %v4235 = vand.u32 %v2331, 4294901760
    %v4236 = vsub.f32 %v2331, %v4235
    %4237 = vmatpush1.msra.mxu0 %v4236
    %4238 = vmatprep.subr.mxu0 0.0
    %v4239 = vand.u32 %v2332, 4294901760
    %v4240 = vsub.f32 %v2332, %v4239
    %4241 = vmatpush1.msra.mxu0 %v4240
    %4242 = vmatprep.subr.mxu0 0.0
    %v4243 = vand.u32 %v2333, 4294901760
    %v4244 = vsub.f32 %v2333, %v4243
    %4245 = vmatpush1.msra.mxu0 %v4244
    %4246 = vmatprep.subr.mxu0 0.0
    %v4247 = vand.u32 %v2334, 4294901760
    %v4248 = vsub.f32 %v2334, %v4247
    %4249 = vmatpush1.msra.mxu0 %v4248
    %4250 = vmatprep.subr.mxu0 0.0
    %v4251 = vand.u32 %v2335, 4294901760
    %v4252 = vsub.f32 %v2335, %v4251
    %4253 = vmatpush1.msra.mxu0 %v4252
    %4254 = vmatprep.subr.mxu0 0.0
    %4255 = vmatpush1.msra.mxu0 0.0
    %4256 = vmatprep.subr.mxu0 0.0
    %4257 = vmatpush1.msra.mxu0 0.0
    %4258 = vmatprep.subr.mxu0 0.0
    %4259 = vmatpush1.msra.mxu0 0.0
    %4260 = vmatprep.subr.mxu0 0.0
    %4261 = vmatpush1.msra.mxu0 0.0
    %4262 = vmatprep.subr.mxu0 0.0
    %4263 = vmatpush1.msra.mxu0 0.0
    %4264 = vmatprep.subr.mxu0 0.0
    %4265 = vmatpush1.msra.mxu0 0.0
    %4266 = vmatprep.subr.mxu0 0.0
    %4267 = vmatpush1.msra.mxu0 0.0
    %4268 = vmatprep.subr.mxu0 0.0
    %4269 = vmatpush1.msra.mxu0 0.0
    %4270 = vmatprep.subr.mxu0 0.0
    %4271 = vmatpush1.msra.mxu0 0.0
    %4272 = vmatprep.subr.mxu0 0.0
    %4273 = vmatpush1.msra.mxu0 0.0
    %4274 = vmatprep.subr.mxu0 0.0
    %4275 = vmatpush1.msra.mxu0 0.0
    %4276 = vmatprep.subr.mxu0 0.0
    %4277 = vmatpush1.msra.mxu0 0.0
    %4278 = vmatprep.subr.mxu0 0.0
    %4279 = vmatpush1.msra.mxu0 0.0
    %4280 = vmatprep.subr.mxu0 0.0
    %4281 = vmatpush1.msra.mxu0 0.0
    %4282 = vmatprep.subr.mxu0 0.0
    %4283 = vmatpush1.msra.mxu0 0.0
    %4284 = vmatprep.subr.mxu0 0.0
    %4285 = vmatpush1.msra.mxu0 0.0
    %4286 = vmatprep.mubr.f32.mxu0 0.0
    %v4287 = vand.u32 %v3896, 4294901760
    %v4288 = vsub.f32 %v3896, %v4287
    %4289 = vmatmul.mubr.f32.gmra.mrb[0].mxu0 %v4288
    %v4290 = vpop.f32.mrb[0].mxu0
    %v4291 = vadd.f32 %v4169, %v4290
    %v4292 = vpop.f32.mrb[0].mxu0
    %4293 = vmatprep.mubr.f32.mxu0 0.0
    %v4294 = vand.u32 %v3897, 4294901760
    %v4295 = vsub.f32 %v3897, %v4294
    %4296 = vmatmul.mubr.f32.gmra.mrb[0].mxu0 %v4295
    %v4297 = vpop.f32.mrb[0].mxu0
    %v4298 = vadd.f32 %v4175, %v4297
    %v4299 = vpop.f32.mrb[0].mxu0
    %4300 = vmatprep.mubr.f32.mxu0 0.0
    %v4301 = vand.u32 %v3898, 4294901760
    %v4302 = vsub.f32 %v3898, %v4301
    %4303 = vmatmul.mubr.f32.gmra.mrb[0].mxu0 %v4302
    %v4304 = vpop.f32.mrb[0].mxu0
    %v4305 = vadd.f32 %v4181, %v4304
    %v4306 = vpop.f32.mrb[0].mxu0
    %4307 = vmatprep.mubr.f32.mxu0 0.0
    %v4308 = vand.u32 %v3899, 4294901760
    %v4309 = vsub.f32 %v3899, %v4308
    %4310 = vmatmul.mubr.f32.gmra.mrb[0].mxu0 %v4309
    %v4311 = vpop.f32.mrb[0].mxu0
    %v4312 = vadd.f32 %v4187, %v4311
    %v4313 = vpop.f32.mrb[0].mxu0
    %4314 = vdwg.mxu0
    %4315 = vmatprep.subr.mxu0 0.0
    %v4316 = vand.u32 %v2320, 4294901760
    %4317 = vmatpush1.msra.mxu0 %v4316
    %4318 = vmatprep.subr.mxu0 0.0
    %v4319 = vand.u32 %v2321, 4294901760
    %4320 = vmatpush1.msra.mxu0 %v4319
    %4321 = vmatprep.subr.mxu0 0.0
    %v4322 = vand.u32 %v2322, 4294901760
    %4323 = vmatpush1.msra.mxu0 %v4322
    %4324 = vmatprep.subr.mxu0 0.0
    %v4325 = vand.u32 %v2323, 4294901760
    %4326 = vmatpush1.msra.mxu0 %v4325
    %4327 = vmatprep.subr.mxu0 0.0
    %v4328 = vand.u32 %v2324, 4294901760
    %4329 = vmatpush1.msra.mxu0 %v4328
    %4330 = vmatprep.subr.mxu0 0.0
    %v4331 = vand.u32 %v2325, 4294901760
    %4332 = vmatpush1.msra.mxu0 %v4331
    %4333 = vmatprep.subr.mxu0 0.0
    %v4334 = vand.u32 %v2326, 4294901760
    %4335 = vmatpush1.msra.mxu0 %v4334
    %4336 = vmatprep.subr.mxu0 0.0
    %v4337 = vand.u32 %v2327, 4294901760
    %4338 = vmatpush1.msra.mxu0 %v4337
    %4339 = vmatprep.subr.mxu0 0.0
    %v4340 = vand.u32 %v2328, 4294901760
    %4341 = vmatpush1.msra.mxu0 %v4340
    %4342 = vmatprep.subr.mxu0 0.0
    %v4343 = vand.u32 %v2329, 4294901760
    %4344 = vmatpush1.msra.mxu0 %v4343
    %4345 = vmatprep.subr.mxu0 0.0
    %v4346 = vand.u32 %v2330, 4294901760
    %4347 = vmatpush1.msra.mxu0 %v4346
    %4348 = vmatprep.subr.mxu0 0.0
    %v4349 = vand.u32 %v2331, 4294901760
    %4350 = vmatpush1.msra.mxu0 %v4349
    %4351 = vmatprep.subr.mxu0 0.0
    %v4352 = vand.u32 %v2332, 4294901760
    %4353 = vmatpush1.msra.mxu0 %v4352
    %4354 = vmatprep.subr.mxu0 0.0
    %v4355 = vand.u32 %v2333, 4294901760
    %4356 = vmatpush1.msra.mxu0 %v4355
    %4357 = vmatprep.subr.mxu0 0.0
    %v4358 = vand.u32 %v2334, 4294901760
    %4359 = vmatpush1.msra.mxu0 %v4358
    %4360 = vmatprep.subr.mxu0 0.0
    %v4361 = vand.u32 %v2335, 4294901760
    %4362 = vmatpush1.msra.mxu0 %v4361
    %4363 = vmatprep.subr.mxu0 0.0
    %4364 = vmatpush1.msra.mxu0 0.0
    %4365 = vmatprep.subr.mxu0 0.0
    %4366 = vmatpush1.msra.mxu0 0.0
    %4367 = vmatprep.subr.mxu0 0.0
    %4368 = vmatpush1.msra.mxu0 0.0
    %4369 = vmatprep.subr.mxu0 0.0
    %4370 = vmatpush1.msra.mxu0 0.0
    %4371 = vmatprep.subr.mxu0 0.0
    %4372 = vmatpush1.msra.mxu0 0.0
    %4373 = vmatprep.subr.mxu0 0.0
    %4374 = vmatpush1.msra.mxu0 0.0
    %4375 = vmatprep.subr.mxu0 0.0
    %4376 = vmatpush1.msra.mxu0 0.0
    %4377 = vmatprep.subr.mxu0 0.0
    %4378 = vmatpush1.msra.mxu0 0.0
    %4379 = vmatprep.subr.mxu0 0.0
    %4380 = vmatpush1.msra.mxu0 0.0
    %4381 = vmatprep.subr.mxu0 0.0
    %4382 = vmatpush1.msra.mxu0 0.0
    %4383 = vmatprep.subr.mxu0 0.0
    %4384 = vmatpush1.msra.mxu0 0.0
    %4385 = vmatprep.subr.mxu0 0.0
    %4386 = vmatpush1.msra.mxu0 0.0
    %4387 = vmatprep.subr.mxu0 0.0
    %4388 = vmatpush1.msra.mxu0 0.0
    %4389 = vmatprep.subr.mxu0 0.0
    %4390 = vmatpush1.msra.mxu0 0.0
    %4391 = vmatprep.subr.mxu0 0.0
    %4392 = vmatpush1.msra.mxu0 0.0
    %4393 = vmatprep.subr.mxu0 0.0
    %4394 = vmatpush1.msra.mxu0 0.0
    %4395 = vmatprep.mubr.f32.mxu0 0.0
    %v4396 = vand.u32 %v3896, 4294901760
    %v4397 = vsub.f32 %v3896, %v4396
    %v4398 = vand.u32 %v4397, 4294901760
    %4399 = vmatmul.mubr.f32.gmra.mrb[0].mxu0 %v4398
    %v4400 = vpop.f32.mrb[0].mxu0
    %v4401 = vadd.f32 %v4291, %v4400
    %v4402 = vpop.f32.mrb[0].mxu0
    %4403 = vmatprep.mubr.f32.mxu0 0.0
    %v4404 = vand.u32 %v3897, 4294901760
    %v4405 = vsub.f32 %v3897, %v4404
    %v4406 = vand.u32 %v4405, 4294901760
    %4407 = vmatmul.mubr.f32.gmra.mrb[0].mxu0 %v4406
    %v4408 = vpop.f32.mrb[0].mxu0
    %v4409 = vadd.f32 %v4298, %v4408
    %v4410 = vpop.f32.mrb[0].mxu0
    %4411 = vmatprep.mubr.f32.mxu0 0.0
    %v4412 = vand.u32 %v3898, 4294901760
    %v4413 = vsub.f32 %v3898, %v4412
    %v4414 = vand.u32 %v4413, 4294901760
    %4415 = vmatmul.mubr.f32.gmra.mrb[0].mxu0 %v4414
    %v4416 = vpop.f32.mrb[0].mxu0
    %v4417 = vadd.f32 %v4305, %v4416
    %v4418 = vpop.f32.mrb[0].mxu0
    %4419 = vmatprep.mubr.f32.mxu0 0.0
    %v4420 = vand.u32 %v3899, 4294901760
    %v4421 = vsub.f32 %v3899, %v4420
    %v4422 = vand.u32 %v4421, 4294901760
    %4423 = vmatmul.mubr.f32.gmra.mrb[0].mxu0 %v4422
    %v4424 = vpop.f32.mrb[0].mxu0
    %v4425 = vadd.f32 %v4312, %v4424
    %v4426 = vpop.f32.mrb[0].mxu0
    %4427 = vdwg.mxu0
    %4428 = vmatprep.subr.mxu0 0.0
    %v4429 = vand.u32 %v2320, 4294901760
    %v4430 = vsub.f32 %v2320, %v4429
    %v4431 = vand.u32 %v4430, 4294901760
    %4432 = vmatpush1.msra.mxu0 %v4431
    %4433 = vmatprep.subr.mxu0 0.0
    %v4434 = vand.u32 %v2321, 4294901760
    %v4435 = vsub.f32 %v2321, %v4434
    %v4436 = vand.u32 %v4435, 4294901760
    %4437 = vmatpush1.msra.mxu0 %v4436
    %4438 = vmatprep.subr.mxu0 0.0
    %v4439 = vand.u32 %v2322, 4294901760
    %v4440 = vsub.f32 %v2322, %v4439
    %v4441 = vand.u32 %v4440, 4294901760
    %4442 = vmatpush1.msra.mxu0 %v4441
    %4443 = vmatprep.subr.mxu0 0.0
    %v4444 = vand.u32 %v2323, 4294901760
    %v4445 = vsub.f32 %v2323, %v4444
    %v4446 = vand.u32 %v4445, 4294901760
    %4447 = vmatpush1.msra.mxu0 %v4446
    %4448 = vmatprep.subr.mxu0 0.0
    %v4449 = vand.u32 %v2324, 4294901760
    %v4450 = vsub.f32 %v2324, %v4449
    %v4451 = vand.u32 %v4450, 4294901760
    %4452 = vmatpush1.msra.mxu0 %v4451
    %4453 = vmatprep.subr.mxu0 0.0
    %v4454 = vand.u32 %v2325, 4294901760
    %v4455 = vsub.f32 %v2325, %v4454
    %v4456 = vand.u32 %v4455, 4294901760
    %4457 = vmatpush1.msra.mxu0 %v4456
    %4458 = vmatprep.subr.mxu0 0.0
    %v4459 = vand.u32 %v2326, 4294901760
    %v4460 = vsub.f32 %v2326, %v4459
    %v4461 = vand.u32 %v4460, 4294901760
    %4462 = vmatpush1.msra.mxu0 %v4461
    %4463 = vmatprep.subr.mxu0 0.0
    %v4464 = vand.u32 %v2327, 4294901760
    %v4465 = vsub.f32 %v2327, %v4464
    %v4466 = vand.u32 %v4465, 4294901760
    %4467 = vmatpush1.msra.mxu0 %v4466
    %4468 = vmatprep.subr.mxu0 0.0
    %v4469 = vand.u32 %v2328, 4294901760
    %v4470 = vsub.f32 %v2328, %v4469
    %v4471 = vand.u32 %v4470, 4294901760
    %4472 = vmatpush1.msra.mxu0 %v4471
    %4473 = vmatprep.subr.mxu0 0.0
    %v4474 = vand.u32 %v2329, 4294901760
    %v4475 = vsub.f32 %v2329, %v4474
    %v4476 = vand.u32 %v4475, 4294901760
    %4477 = vmatpush1.msra.mxu0 %v4476
    %4478 = vmatprep.subr.mxu0 0.0
    %v4479 = vand.u32 %v2330, 4294901760
    %v4480 = vsub.f32 %v2330, %v4479
    %v4481 = vand.u32 %v4480, 4294901760
    %4482 = vmatpush1.msra.mxu0 %v4481
    %4483 = vmatprep.subr.mxu0 0.0
    %v4484 = vand.u32 %v2331, 4294901760
    %v4485 = vsub.f32 %v2331, %v4484
    %v4486 = vand.u32 %v4485, 4294901760
    %4487 = vmatpush1.msra.mxu0 %v4486
    %4488 = vmatprep.subr.mxu0 0.0
    %v4489 = vand.u32 %v2332, 4294901760
    %v4490 = vsub.f32 %v2332, %v4489
    %v4491 = vand.u32 %v4490, 4294901760
    %4492 = vmatpush1.msra.mxu0 %v4491
    %4493 = vmatprep.subr.mxu0 0.0
    %v4494 = vand.u32 %v2333, 4294901760
    %v4495 = vsub.f32 %v2333, %v4494
    %v4496 = vand.u32 %v4495, 4294901760
    %4497 = vmatpush1.msra.mxu0 %v4496
    %4498 = vmatprep.subr.mxu0 0.0
    %v4499 = vand.u32 %v2334, 4294901760
    %v4500 = vsub.f32 %v2334, %v4499
    %v4501 = vand.u32 %v4500, 4294901760
    %4502 = vmatpush1.msra.mxu0 %v4501
    %4503 = vmatprep.subr.mxu0 0.0
    %v4504 = vand.u32 %v2335, 4294901760
    %v4505 = vsub.f32 %v2335, %v4504
    %v4506 = vand.u32 %v4505, 4294901760
    %4507 = vmatpush1.msra.mxu0 %v4506
    %4508 = vmatprep.subr.mxu0 0.0
    %4509 = vmatpush1.msra.mxu0 0.0
    %4510 = vmatprep.subr.mxu0 0.0
    %4511 = vmatpush1.msra.mxu0 0.0
    %4512 = vmatprep.subr.mxu0 0.0
    %4513 = vmatpush1.msra.mxu0 0.0
    %4514 = vmatprep.subr.mxu0 0.0
    %4515 = vmatpush1.msra.mxu0 0.0
    %4516 = vmatprep.subr.mxu0 0.0
    %4517 = vmatpush1.msra.mxu0 0.0
    %4518 = vmatprep.subr.mxu0 0.0
    %4519 = vmatpush1.msra.mxu0 0.0
    %4520 = vmatprep.subr.mxu0 0.0
    %4521 = vmatpush1.msra.mxu0 0.0
    %4522 = vmatprep.subr.mxu0 0.0
    %4523 = vmatpush1.msra.mxu0 0.0
    %4524 = vmatprep.subr.mxu0 0.0
    %4525 = vmatpush1.msra.mxu0 0.0
    %4526 = vmatprep.subr.mxu0 0.0
    %4527 = vmatpush1.msra.mxu0 0.0
    %4528 = vmatprep.subr.mxu0 0.0
    %4529 = vmatpush1.msra.mxu0 0.0
    %4530 = vmatprep.subr.mxu0 0.0
    %4531 = vmatpush1.msra.mxu0 0.0
    %4532 = vmatprep.subr.mxu0 0.0
    %4533 = vmatpush1.msra.mxu0 0.0
    %4534 = vmatprep.subr.mxu0 0.0
    %4535 = vmatpush1.msra.mxu0 0.0
    %4536 = vmatprep.subr.mxu0 0.0
    %4537 = vmatpush1.msra.mxu0 0.0
    %4538 = vmatprep.subr.mxu0 0.0
    %4539 = vmatpush1.msra.mxu0 0.0
    %4540 = vmatprep.mubr.f32.mxu0 0.0
    %v4541 = vand.u32 %v3896, 4294901760
    %4542 = vmatmul.mubr.f32.gmra.mrb[0].mxu0 %v4541
    %v4543 = vpop.f32.mrb[0].mxu0
    %v4544 = vadd.f32 %v4401, %v4543
    %v4545 = vpop.f32.mrb[0].mxu0
    %4546 = vmatprep.mubr.f32.mxu0 0.0
    %v4547 = vand.u32 %v3897, 4294901760
    %4548 = vmatmul.mubr.f32.gmra.mrb[0].mxu0 %v4547
    %v4549 = vpop.f32.mrb[0].mxu0
    %v4550 = vadd.f32 %v4409, %v4549
    %v4551 = vpop.f32.mrb[0].mxu0
    %4552 = vmatprep.mubr.f32.mxu0 0.0
    %v4553 = vand.u32 %v3898, 4294901760
    %4554 = vmatmul.mubr.f32.gmra.mrb[0].mxu0 %v4553
    %v4555 = vpop.f32.mrb[0].mxu0
    %v4556 = vadd.f32 %v4417, %v4555
    %v4557 = vpop.f32.mrb[0].mxu0
    %4558 = vmatprep.mubr.f32.mxu0 0.0
    %v4559 = vand.u32 %v3899, 4294901760
    %4560 = vmatmul.mubr.f32.gmra.mrb[0].mxu0 %v4559
    %v4561 = vpop.f32.mrb[0].mxu0
    %v4562 = vadd.f32 %v4425, %v4561
    %v4563 = vpop.f32.mrb[0].mxu0
    %4564 = vdwg.mxu0
    %4565 = vmatprep.subr.mxu0 0.0
    %v4566 = vand.u32 %v2320, 4294901760
    %4567 = vmatpush1.msra.mxu0 %v4566
    %4568 = vmatprep.subr.mxu0 0.0
    %v4569 = vand.u32 %v2321, 4294901760
    %4570 = vmatpush1.msra.mxu0 %v4569
    %4571 = vmatprep.subr.mxu0 0.0
    %v4572 = vand.u32 %v2322, 4294901760
    %4573 = vmatpush1.msra.mxu0 %v4572
    %4574 = vmatprep.subr.mxu0 0.0
    %v4575 = vand.u32 %v2323, 4294901760
    %4576 = vmatpush1.msra.mxu0 %v4575
    %4577 = vmatprep.subr.mxu0 0.0
    %v4578 = vand.u32 %v2324, 4294901760
    %4579 = vmatpush1.msra.mxu0 %v4578
    %4580 = vmatprep.subr.mxu0 0.0
    %v4581 = vand.u32 %v2325, 4294901760
    %4582 = vmatpush1.msra.mxu0 %v4581
    %4583 = vmatprep.subr.mxu0 0.0
    %v4584 = vand.u32 %v2326, 4294901760
    %4585 = vmatpush1.msra.mxu0 %v4584
    %4586 = vmatprep.subr.mxu0 0.0
    %v4587 = vand.u32 %v2327, 4294901760
    %4588 = vmatpush1.msra.mxu0 %v4587
    %4589 = vmatprep.subr.mxu0 0.0
    %v4590 = vand.u32 %v2328, 4294901760
    %4591 = vmatpush1.msra.mxu0 %v4590
    %4592 = vmatprep.subr.mxu0 0.0
    %v4593 = vand.u32 %v2329, 4294901760
    %4594 = vmatpush1.msra.mxu0 %v4593
    %4595 = vmatprep.subr.mxu0 0.0
    %v4596 = vand.u32 %v2330, 4294901760
    %4597 = vmatpush1.msra.mxu0 %v4596
    %4598 = vmatprep.subr.mxu0 0.0
    %v4599 = vand.u32 %v2331, 4294901760
    %4600 = vmatpush1.msra.mxu0 %v4599
    %4601 = vmatprep.subr.mxu0 0.0
    %v4602 = vand.u32 %v2332, 4294901760
    %4603 = vmatpush1.msra.mxu0 %v4602
    %4604 = vmatprep.subr.mxu0 0.0
    %v4605 = vand.u32 %v2333, 4294901760
    %4606 = vmatpush1.msra.mxu0 %v4605
    %4607 = vmatprep.subr.mxu0 0.0
    %v4608 = vand.u32 %v2334, 4294901760
    %4609 = vmatpush1.msra.mxu0 %v4608
    %4610 = vmatprep.subr.mxu0 0.0
    %v4611 = vand.u32 %v2335, 4294901760
    %4612 = vmatpush1.msra.mxu0 %v4611
    %4613 = vmatprep.subr.mxu0 0.0
    %4614 = vmatpush1.msra.mxu0 0.0
    %4615 = vmatprep.subr.mxu0 0.0
    %4616 = vmatpush1.msra.mxu0 0.0
    %4617 = vmatprep.subr.mxu0 0.0
    %4618 = vmatpush1.msra.mxu0 0.0
    %4619 = vmatprep.subr.mxu0 0.0
    %4620 = vmatpush1.msra.mxu0 0.0
    %4621 = vmatprep.subr.mxu0 0.0
    %4622 = vmatpush1.msra.mxu0 0.0
    %4623 = vmatprep.subr.mxu0 0.0
    %4624 = vmatpush1.msra.mxu0 0.0
    %4625 = vmatprep.subr.mxu0 0.0
    %4626 = vmatpush1.msra.mxu0 0.0
    %4627 = vmatprep.subr.mxu0 0.0
    %4628 = vmatpush1.msra.mxu0 0.0
    %4629 = vmatprep.subr.mxu0 0.0
    %4630 = vmatpush1.msra.mxu0 0.0
    %4631 = vmatprep.subr.mxu0 0.0
    %4632 = vmatpush1.msra.mxu0 0.0
    %4633 = vmatprep.subr.mxu0 0.0
    %4634 = vmatpush1.msra.mxu0 0.0
    %4635 = vmatprep.subr.mxu0 0.0
    %4636 = vmatpush1.msra.mxu0 0.0
    %4637 = vmatprep.subr.mxu0 0.0
    %4638 = vmatpush1.msra.mxu0 0.0
    %4639 = vmatprep.subr.mxu0 0.0
    %4640 = vmatpush1.msra.mxu0 0.0
    %4641 = vmatprep.subr.mxu0 0.0
    %4642 = vmatpush1.msra.mxu0 0.0
    %4643 = vmatprep.subr.mxu0 0.0
    %4644 = vmatpush1.msra.mxu0 0.0
    %4645 = vmatprep.mubr.f32.mxu0 0.0
    %v4646 = vand.u32 %v3896, 4294901760
    %4647 = vmatmul.mubr.f32.gmra.mrb[0].mxu0 %v4646
    %v4648 = vpop.f32.mrb[0].mxu0
    %v4649 = vadd.f32 %v4544, %v4648
    %v4650 = vpop.f32.mrb[0].mxu0
    %4651 = vmatprep.mubr.f32.mxu0 0.0
    %v4652 = vand.u32 %v3897, 4294901760
    %4653 = vmatmul.mubr.f32.gmra.mrb[0].mxu0 %v4652
    %v4654 = vpop.f32.mrb[0].mxu0
    %v4655 = vadd.f32 %v4550, %v4654
    %v4656 = vpop.f32.mrb[0].mxu0
    %4657 = vmatprep.mubr.f32.mxu0 0.0
    %v4658 = vand.u32 %v3898, 4294901760
    %4659 = vmatmul.mubr.f32.gmra.mrb[0].mxu0 %v4658
    %v4660 = vpop.f32.mrb[0].mxu0
    %v4661 = vadd.f32 %v4556, %v4660
    %v4662 = vpop.f32.mrb[0].mxu0
    %4663 = vmatprep.mubr.f32.mxu0 0.0
    %v4664 = vand.u32 %v3899, 4294901760
    %4665 = vmatmul.mubr.f32.gmra.mrb[0].mxu0 %v4664
    %v4666 = vpop.f32.mrb[0].mxu0
    %v4667 = vadd.f32 %v4562, %v4666
    %v4668 = vpop.f32.mrb[0].mxu0
    %4669 = vdwg.mxu0
    %v4670 = vadd.f32 %v3867, %v4649
    %v4671 = vadd.f32 %v3873, %v4655
    %v4672 = vadd.f32 %v3879, %v4661
    %v4673 = vadd.f32 %v3885, %v4667
    %v4674 = vadd.f32 %v4670, %v4671
    %v4675 = vadd.f32 %v4674, %v4672
    %v4676 = vadd.f32 %v4675, %v4673
    %v4677 = vrot.slane %v4676, 4
    %v4678 = vadd.f32 %v4676, %v4677
    %v4679 = vrot.slane %v4678, 2
    %v4680 = vadd.f32 %v4678, %v4679
    %v4681 = vrot.slane %v4680, 1
    %v4682 = vadd.f32 %v4680, %v4681
    %v4683 = vmul.f32 %v4670, %v4670
    %v4684 = vmul.f32 %v4671, %v4671
    %v4685 = vmul.f32 %v4672, %v4672
    %v4686 = vmul.f32 %v4673, %v4673
    %v4687 = vadd.f32 %v4683, %v4684
    %v4688 = vadd.f32 %v4687, %v4685
    %v4689 = vadd.f32 %v4688, %v4686
    %v4690 = vrot.slane %v4689, 4
    %v4691 = vadd.f32 %v4689, %v4690
    %v4692 = vrot.slane %v4691, 2
    %v4693 = vadd.f32 %v4691, %v4692
    %v4694 = vrot.slane %v4693, 1
    %v4695 = vadd.f32 %v4693, %v4694
    %v4696 = vsel %vm2236, %v4682, %v4695
    %4697 = vrot.lane.b32.xlu0 %v4696, 8
    %v4698 = vpop.permute.xlu0 %4697
    %v4699 = vadd.f32 %v4696, %v4698
    %4700 = vrot.lane.b32.xlu0 %v4699, 16
    %v4701 = vpop.permute.xlu0 %4700
    %v4702 = vadd.f32 %v4699, %v4701
    %4703 = vrot.lane.b32.xlu0 %v4702, 32
    %v4704 = vpop.permute.xlu0 %4703
    %v4705 = vadd.f32 %v4702, %v4704
    %4706 = vrot.lane.b32.xlu0 %v4705, 64
    %v4707 = vpop.permute.xlu0 %4706
    %v4708 = vadd.f32 %v4705, %v4707
    %v4709 = vmul.f32 %v4708, 0.001953125
    %v4710 = vmul.f32 %v4709, %v4709
    %v4712 = vrot.slane %v4710, 7
    %v4714 = vsub.f32 %v4709, %v4712
    %v4715 = vmax.f32 %v4714, 0.0
    %v4716 = vadd.f32 %v4715, 1e-05
    %v4717 = vrsqrt.pop %v4716
    %v4719 = vrot.slane %v4717, 7
    %v4721 = vmul.f32 %v43, %v4719
    %v4723 = vrot.slane %v4709, 6
    %v4725 = vmul.f32 %v4721, %v4723
    %v4727 = vrot.slane %v4725, 7
    %v4729 = vsub.f32 %v43, %v4727
    %v4730 = vlaneseq
    %v4731 = vshrl.u32 %v4730, 7
    %v4732 = vsub.s32 2, %v4731
    %v4733 = vrot.slane %v4721, %v4732
    %v4734 = vmul.f32 %v4670, %v4733
    %v4735 = vmul.f32 %v4671, %v4733
    %v4736 = vmul.f32 %v4672, %v4733
    %v4737 = vmul.f32 %v4673, %v4733
    %v4738 = vlaneseq
    %v4739 = vshrl.u32 %v4738, 7
    %v4740 = vsub.s32 3, %v4739
    %v4741 = vrot.slane %v4729, %v4740
    %v4742 = vadd.f32 %v4734, %v4741
    %v4743 = vadd.f32 %v4735, %v4741
    %v4744 = vadd.f32 %v4736, %v4741
    %v4745 = vadd.f32 %v4737, %v4741
    %v4746 = vmax.f32 %v4742, 0.0
    %v4747 = vmax.f32 %v4743, 0.0
    %v4748 = vmax.f32 %v4744, 0.0
    %v4749 = vmax.f32 %v4745, 0.0
    %4750 = vst [vmem:[#allocation7] sm:$0xff] %v4746
    %4751 = vst [vmem:[#allocation7 + $0x8] sm:$0xff] %v4747
    %4752 = vst [vmem:[#allocation7 + $0x10] sm:$0xff] %v4748
    %4753 = vst [vmem:[#allocation7 + $0x18] sm:$0xff] %v4749
    // Predicated region
    $region22: #{tpu_custom_call.1} parent=1 // pred_check
      _
    $region23: #{tpu_custom_call.1} parent=1 // pred_check_branch
      %4755 = sbr.rel (0) target = $region25
    $region24: #{tpu_custom_call.1} parent=1 // pred_region
      %s4757 = ssub.s32 512, 512
      %4758 = vsyncadd [#allocation4], %s4757
      %s4759 = sshll.u32 [#allocation7], 4
      %s4760 = int_to_ptr.vmem [resolvable:$true] %s4759
      %4765 = dma.vmem_to_hbm [thread:$0]  %s4760, 512, %s3, [#allocation4], 128, 128, 8
    $region25: #{tpu_custom_call.1} parent=1 // pred_fallthru
      _
    // Predicated region
    $region26: #{tpu_custom_call.1} parent=1 // pred_check
      _
    $region27: #{tpu_custom_call.1} parent=1 // pred_check_branch
      %4767 = sbr.rel (0) target = $region29
    $region28: #{tpu_custom_call.1} parent=1 // pred_region
      %4768 = dma.done [#allocation4], 512
    $region29: #{tpu_custom_call.1} parent=1 // pred_fallthru
      _
    %4769 = vsyncpa [#allocation3], 1
    %4770 = vsyncpa [#allocation6], 1
    %4771 = vsyncpa [#allocation4], 1

</llo_original>
